<compile_context>
chip_gen: v7x
topology: tpu7x:2x2x1
jax: 0.10.0
libtpu: 0.0.40
codegen_flags: <defaults>
</compile_context>

<pallas_src>
import functools

import jax
import jax.numpy as jnp
from jax.experimental import pallas as pl
from jax.experimental.pallas import tpu as pltpu


def _layernorm(x, gamma, beta, eps=1e-5):
    # single-pass variance: mean(x*x) - mu*mu (one fewer (S,E) VPU pass)
    mu = jnp.mean(x, axis=-1, keepdims=True)
    var = jnp.mean(x * x, axis=-1, keepdims=True) - mu * mu
    return (x - mu) * jax.lax.rsqrt(var + eps) * gamma + beta


def transformer_block_kernel(vh_ref, kh_ref, qh_ref, qres_ref,
                             wfc3_ref, bfc_ref,
                             w1_ref, b1_ref, w2_ref, b2_ref,
                             g1_ref, be1_ref, g2_ref, be2_ref,
                             out_ref):
    """One (batch, query-tile) step of the TransformerBlock.

    vh/kh: (H, S,  D) bf16   qh: (H, tq, D) bf16 (pre-scaled by 1/sqrt(E))
    qres:  (tq, E) f32 (residual path)
    wfc3:  (H, D, E) bf16    w1: (E, F) bf16    w2: (F, E) bf16
    biases / LayerNorm params: (1, dim) f32.
    """
    qh = qh_ref[...]
    kh = kh_ref[...]
    vh = vh_ref[...]

    # ---- multi-head self-attention (per-head Linear layers of the reference
    #      are never applied in forward(); Q/K/V are the raw inputs) ----------
    # energy[h,q,k] = sum_d qh[h,q,d] * kh[h,k,d]; heads is a leading batch dim.
    energy = jnp.einsum('hqd,hkd->hqk', qh, kh,
                        preferred_element_type=jnp.float32)        # (H,tq,S) f32
    # TODO(synk): attention mask support (reference default path uses mask=None).

    # softmax over keys with DEFERRED normalization: keep probabilities
    # unnormalized (bf16), accumulate the row-sum in f32, and rescale the much
    # smaller (H,tq,D) context instead of the (H,tq,S) probability matrix.
    m = jnp.max(energy, axis=-1, keepdims=True)
    p = jnp.exp(energy - m).astype(jnp.bfloat16)                   # (H,tq,S) bf16
    denom = jnp.sum(p, axis=-1, keepdims=True, dtype=jnp.float32)  # (H,tq,1) f32

    ctx = jnp.einsum('hqk,hkd->hqd', p, vh,
                     preferred_element_type=jnp.float32)           # (H,tq,D) f32
    ctx = ctx * pl.reciprocal(denom, approx=True)                  # EUP rcp

    # fc_out fused into the head contraction: per-head (tq,D)@(D,E) then a sum
    # over heads -- no (tq,H,D)->(tq,E) lane-merge reshape, full E-deep output.
    proj = jnp.einsum('hqd,hde->hqe', ctx.astype(jnp.bfloat16), wfc3_ref[...],
                      preferred_element_type=jnp.float32)          # (H,tq,E) f32
    attn_out = jnp.sum(proj, axis=0) + bfc_ref[...]                # (tq,E) f32

    # residual (query) + LayerNorm1; dropout = identity (eval mode)
    h1 = _layernorm(attn_out + qres_ref[...], g1_ref[...], be1_ref[...])

    # FFN: Linear(E,F) -> ReLU -> Linear(F,E)  (bf16 MXU inputs, f32 accum)
    f = jnp.dot(h1.astype(jnp.bfloat16), w1_ref[...],
                preferred_element_type=jnp.float32) + b1_ref[...]
    f = jnp.maximum(f, 0.0)
    f = jnp.dot(f.astype(jnp.bfloat16), w2_ref[...],
                preferred_element_type=jnp.float32) + b2_ref[...]

    # residual + LayerNorm2; dropout = identity (eval mode)
    out_ref[...] = _layernorm(f + h1, g2_ref[...], be2_ref[...]).astype(out_ref.dtype)


def prepare_params(p, heads):
    """One-time (hoisted out of the call path) weight layout prep:
    transpose to (in,out), cast to bf16, split fc_out per head."""
    E = p["w_fc"].shape[0]
    D = E // heads
    return {
        # w_fc is (out,in); w_fc.T[h*D+d, e] reshaped -> wfc3[h,d,e]
        "wfc3": jnp.asarray(p["w_fc"].T, jnp.bfloat16).reshape(heads, D, E),
        "b_fc": p["b_fc"],
        "w1": jnp.asarray(p["w1"].T, jnp.bfloat16),   # (E, F)
        "b1": p["b1"],
        "w2": jnp.asarray(p["w2"].T, jnp.bfloat16),   # (F, E)
        "b2": p["b2"],
        "g1": p["g1"], "be1": p["be1"],
        "g2": p["g2"], "be2": p["be2"],
    }


def _split_heads_bf16(x, heads, scale=None):
    """(N,S,E) f32 -> (N,heads,S,D) bf16 (cast fused with the split on host)."""
    N, S, E = x.shape
    D = E // heads
    xh = x.reshape(N, S, heads, D).transpose(0, 2, 1, 3)
    if scale is not None:
        xh = xh * scale
    return xh.astype(jnp.bfloat16)


def _vmem_limit_bytes(S, E, F, H, tq):
    """Footprint-derived VMEM limit (weights single-buffered, acts double)."""
    D = E // H
    bf, f32 = 2, 4
    kv = 2 * (2 * H * S * D * bf)                           # k,v (double-buffered)
    qio = 2 * (H * tq * D * bf + 2 * tq * E * f32)          # qh + q residual + out
    wts = (H * D * E + 2 * E * F) * bf + (5 * E + F) * f32  # Buffered(1) constants
    tmp = (H * tq * S * (f32 + bf) + H * tq * E * f32
           + tq * F * f32 + 6 * tq * E * f32)               # kernel temporaries
    est = kv + qio + wts + tmp
    return int(min(100 * 2 ** 20, max(32 * 2 ** 20, 2 * est)))


@functools.partial(jax.jit, static_argnames=("heads", "q_block"))
def transformer_block(value, key, query, prepared, *, heads, q_block=128):
    """value/key/query: (N, S, E) f32.  prepared: output of prepare_params()."""
    N, S, E = query.shape
    assert E % heads == 0
    D = E // heads
    F = prepared["w1"].shape[1]
    tq = q_block if (S % q_block == 0) else S
    scale = 1.0 / (float(E) ** 0.5)          # divide by embed_size**0.5 (as in ref)

    # Host-side per-call activation prep: head-major bf16 Q/K/V (the cast+split
    # is one fused XLA pass); the f32 query is kept separately for the residual.
    vh = _split_heads_bf16(value, heads)                  # (N,H,S,D) bf16
    kh = _split_heads_bf16(key, heads)                    # (N,H,S,D) bf16
    qh = _split_heads_bf16(query, heads, scale=scale)     # (N,H,S,D) bf16, scaled

    def act4(blk_s, idx):
        return pl.BlockSpec((pl.Squeezed(),) + blk_s, idx)

    def const_spec(shape):
        zeros = (0,) * len(shape)
        return pl.BlockSpec(shape, lambda n, qi, _z=zeros: _z,
                            pipeline_mode=pl.Buffered(1))

    # Advisory cost estimate for XLA's scheduler.
    flops = N * (4 * S * S * E + 2 * S * E * E + 4 * S * E * F)
    transcendentals = N * (heads * S * S + heads * S + 2 * S)
    bytes_accessed = (N * S * E * (3 * 2 + 2 * 4)          # bf16 qkv + f32 q,out
                      + 2 * (E * E + 2 * E * F)            # bf16 weights
                      + 4 * (6 * E + F))                   # biases + LN params
    cost = pl.CostEstimate(flops=int(flops),
                           transcendentals=int(transcendentals),
                           bytes_accessed=int(bytes_accessed))

    return pl.pallas_call(
        transformer_block_kernel,
        out_shape=jax.ShapeDtypeStruct((N, S, E), jnp.float32),
        grid_spec=pltpu.PrefetchScalarGridSpec(
            num_scalar_prefetch=0,
            grid=(N, S // tq),
            in_specs=[
                act4((heads, S, D), lambda n, qi: (n, 0, 0, 0)),    # value heads
                act4((heads, S, D), lambda n, qi: (n, 0, 0, 0)),    # key heads
                act4((heads, tq, D), lambda n, qi: (n, 0, qi, 0)),  # query heads
                act4((tq, E), lambda n, qi: (n, qi, 0)),            # query residual
                const_spec((heads, D, E)),   # fc_out weight, head-split (bf16)
                const_spec((1, E)),          # fc_out bias
                const_spec((E, F)),          # ffn W1^T (bf16)
                const_spec((1, F)),          # ffn b1
                const_spec((F, E)),          # ffn W2^T (bf16)
                const_spec((1, E)),          # ffn b2
                const_spec((1, E)),          # ln1 gamma
                const_spec((1, E)),          # ln1 beta
                const_spec((1, E)),          # ln2 gamma
                const_spec((1, E)),          # ln2 beta
            ],
            out_specs=pl.BlockSpec((pl.Squeezed(), tq, E),
                                   lambda n, qi: (n, qi, 0)),
        ),
        compiler_params=pltpu.CompilerParams(
            dimension_semantics=("parallel", "parallel"),   # batch x query tiles
            vmem_limit_bytes=_vmem_limit_bytes(S, E, F, heads, tq),
        ),
        cost_estimate=cost,
    )(vh, kh, qh, query,
      prepared["wfc3"], prepared["b_fc"],
      prepared["w1"], prepared["b1"], prepared["w2"], prepared["b2"],
      prepared["g1"], prepared["be1"], prepared["g2"], prepared["be2"])


def init_params(key, embed_size, forward_expansion):
    F = forward_expansion * embed_size
    k0, k1, k2 = jax.random.split(key, 3)
    return {
        # PyTorch Linear convention: weight is (out_features, in_features).
        "w_fc": jax.random.normal(k0, (embed_size, embed_size), jnp.float32) * 0.02,
        "b_fc": jnp.zeros((1, embed_size), jnp.float32),
        "w1": jax.random.normal(k1, (F, embed_size), jnp.float32) * 0.02,
        "b1": jnp.zeros((1, F), jnp.float32),
        "w2": jax.random.normal(k2, (embed_size, F), jnp.float32) * 0.02,
        "b2": jnp.zeros((1, embed_size), jnp.float32),
        "g1": jnp.ones((1, embed_size), jnp.float32),
        "be1": jnp.zeros((1, embed_size), jnp.float32),
        "g2": jnp.ones((1, embed_size), jnp.float32),
        "be2": jnp.zeros((1, embed_size), jnp.float32),
    }


def _reference(value, key, query, p, heads):
    """Pure-JAX f32 reference of the PyTorch forward (mask=None, eval dropout)."""
    N, S, E = query.shape
    D = E // heads
    v = value.reshape(N, S, heads, D)
    k = key.reshape(N, S, heads, D)
    q = query.reshape(N, S, heads, D)
    energy = jnp.einsum('nqhd,nkhd->nhqk', q, k)
    attn = jax.nn.softmax(energy / (E ** 0.5), axis=-1)
    out = jnp.einsum('nhqk,nkhd->nqhd', attn, v).reshape(N, S, E)
    out = out @ p["w_fc"].T + p["b_fc"]

    def ln(x, g, b):
        mu = x.mean(-1, keepdims=True)
        var = ((x - mu) ** 2).mean(-1, keepdims=True)
        return (x - mu) / jnp.sqrt(var + 1e-5) * g + b

    h1 = ln(out + query, p["g1"], p["be1"])
    f = jnp.maximum(h1 @ p["w1"].T + p["b1"], 0.0) @ p["w2"].T + p["b2"]
    return ln(f + h1, p["g2"], p["be2"])


if __name__ == "__main__":
    # Lane-dense toy shapes: E, F multiples of 128; S a multiple of the 128-row
    # query tile so the grid is (batch, S/tq) = (2, 2) and exercises q-tiling.
    batch = 2
    seq = 256
    embed_size = 128
    heads = 4
    forward_expansion = 4

    root = jax.random.PRNGKey(0)
    pkey, vkey, kkey, qkey = jax.random.split(root, 4)
    params = init_params(pkey, embed_size, forward_expansion)
    prepared = prepare_params(params, heads)        # one-time weight layout prep

    value = jax.random.normal(vkey, (batch, seq, embed_size), jnp.float32)
    key_in = jax.random.normal(kkey, (batch, seq, embed_size), jnp.float32)
    query = jax.random.normal(qkey, (batch, seq, embed_size), jnp.float32)

    out = transformer_block(value, key_in, query, prepared,
                            heads=heads, q_block=128)
    out = jax.block_until_ready(out)
    assert out.shape == (batch, seq, embed_size), out.shape
    assert bool(jnp.isfinite(out).all())

    # Loose sanity check vs. f32 reference (bf16 matmuls + approx reciprocal).
    ref = _reference(value, key_in, query, params, heads)
    max_err = float(jnp.max(jnp.abs(out - ref)))
    assert max_err < 1e-1, f"max abs error too large: {max_err}"

    print("KERNEL_OK")
</pallas_src>

<mosaic_0001>
module attributes {stable_mosaic.version = 11 : i64} {
  func.func @transformer_block_kernel(%arg0: i32, %arg1: i32, %arg2: memref<1x4x256x32xbf16, #tpu.memory_space<vmem>>, %arg3: memref<1x4x256x32xbf16, #tpu.memory_space<vmem>>, %arg4: memref<1x4x128x32xbf16, #tpu.memory_space<vmem>>, %arg5: memref<1x128x128xf32, #tpu.memory_space<vmem>>, %arg6: memref<4x32x128xbf16, #tpu.memory_space<vmem>>, %arg7: memref<1x128xf32, #tpu.memory_space<vmem>>, %arg8: memref<128x512xbf16, #tpu.memory_space<vmem>>, %arg9: memref<1x512xf32, #tpu.memory_space<vmem>>, %arg10: memref<512x128xbf16, #tpu.memory_space<vmem>>, %arg11: memref<1x128xf32, #tpu.memory_space<vmem>>, %arg12: memref<1x128xf32, #tpu.memory_space<vmem>>, %arg13: memref<1x128xf32, #tpu.memory_space<vmem>>, %arg14: memref<1x128xf32, #tpu.memory_space<vmem>>, %arg15: memref<1x128xf32, #tpu.memory_space<vmem>>, %arg16: memref<1x128x128xf32, #tpu.memory_space<vmem>>) attributes {dimension_semantics = [#tpu.dimension_semantics<parallel>, #tpu.dimension_semantics<parallel>], iteration_bounds = array<i64: 2, 2>, scalar_prefetch = 0 : i64, scratch_operands = 0 : i64, tpu.core_type = #tpu.core_type<tc>, window_params = [{transform_indices = @transform_0, window_bounds = array<i64: 1, 4, 256, 32>}, {transform_indices = @transform_1, window_bounds = array<i64: 1, 4, 256, 32>}, {transform_indices = @transform_2, window_bounds = array<i64: 1, 4, 128, 32>}, {transform_indices = @transform_3, window_bounds = array<i64: 1, 128, 128>}, {pipeline_mode = #tpu.pipeline_mode<synchronous>, transform_indices = @transform_4, window_bounds = array<i64: 4, 32, 128>}, {pipeline_mode = #tpu.pipeline_mode<synchronous>, transform_indices = @transform_5, window_bounds = array<i64: 1, 128>}, {pipeline_mode = #tpu.pipeline_mode<synchronous>, transform_indices = @transform_6, window_bounds = array<i64: 128, 512>}, {pipeline_mode = #tpu.pipeline_mode<synchronous>, transform_indices = @transform_7, window_bounds = array<i64: 1, 512>}, {pipeline_mode = #tpu.pipeline_mode<synchronous>, transform_indices = @transform_8, window_bounds = array<i64: 512, 128>}, {pipeline_mode = #tpu.pipeline_mode<synchronous>, transform_indices = @transform_9, window_bounds = array<i64: 1, 128>}, {pipeline_mode = #tpu.pipeline_mode<synchronous>, transform_indices = @transform_10, window_bounds = array<i64: 1, 128>}, {pipeline_mode = #tpu.pipeline_mode<synchronous>, transform_indices = @transform_11, window_bounds = array<i64: 1, 128>}, {pipeline_mode = #tpu.pipeline_mode<synchronous>, transform_indices = @transform_12, window_bounds = array<i64: 1, 128>}, {pipeline_mode = #tpu.pipeline_mode<synchronous>, transform_indices = @transform_13, window_bounds = array<i64: 1, 128>}, {transform_indices = @transform_14, window_bounds = array<i64: 1, 128, 128>}]} {
    %c0 = arith.constant 0 : index
    %c0_0 = arith.constant 0 : index
    %c0_1 = arith.constant 0 : index
    %c0_2 = arith.constant 0 : index
    %0 = vector.load %arg4[%c0, %c0_0, %c0_1, %c0_2] : memref<1x4x128x32xbf16, #tpu.memory_space<vmem>>, vector<1x4x128x32xbf16>
    %1 = vector.shape_cast %0 : vector<1x4x128x32xbf16> to vector<4x128x32xbf16>
    %c0_3 = arith.constant 0 : index
    %c0_4 = arith.constant 0 : index
    %c0_5 = arith.constant 0 : index
    %c0_6 = arith.constant 0 : index
    %2 = vector.load %arg3[%c0_3, %c0_4, %c0_5, %c0_6] : memref<1x4x256x32xbf16, #tpu.memory_space<vmem>>, vector<1x4x256x32xbf16>
    %3 = vector.shape_cast %2 : vector<1x4x256x32xbf16> to vector<4x256x32xbf16>
    %c0_7 = arith.constant 0 : index
    %c0_8 = arith.constant 0 : index
    %c0_9 = arith.constant 0 : index
    %c0_10 = arith.constant 0 : index
    %4 = vector.load %arg2[%c0_7, %c0_8, %c0_9, %c0_10] : memref<1x4x256x32xbf16, #tpu.memory_space<vmem>>, vector<1x4x256x32xbf16>
    %5 = vector.shape_cast %4 : vector<1x4x256x32xbf16> to vector<4x256x32xbf16>
    "tpu.trace_start"() <{level = 10 : i32, message = "hqd,hkd->hqk"}> : () -> ()
    %cst = arith.constant dense<0.000000e+00> : vector<4x128x256xf32>
    %6 = tpu.matmul %1, %3, %cst {dimension_numbers = #tpu.dot_dimension_numbers<[2], [2], [1], [1], [0, 0, 0, 1, 1, 1], [0], [0]>} : vector<4x128x32xbf16>, vector<4x256x32xbf16>, vector<4x128x256xf32> -> vector<4x128x256xf32>
    "tpu.trace_stop"() : () -> ()
    %cst_11 = arith.constant dense<0xFF800000> : vector<4x128xf32>
    %7 = vector.multi_reduction <maximumf>, %6, %cst_11 [2] : vector<4x128x256xf32> to vector<4x128xf32>
    %8 = vector.shape_cast %7 : vector<4x128xf32> to vector<4x128x1xf32>
    %9 = vector.broadcast %8 : vector<4x128x1xf32> to vector<4x128x256xf32>
    %10 = arith.subf %6, %9 : vector<4x128x256xf32>
    %11 = math.exp %10 : vector<4x128x256xf32>
    %12 = arith.truncf %11 : vector<4x128x256xf32> to vector<4x128x256xbf16>
    %13 = arith.extf %12 : vector<4x128x256xbf16> to vector<4x128x256xf32>
    %cst_12 = arith.constant dense<0.000000e+00> : vector<4x128xf32>
    %14 = vector.multi_reduction <add>, %13, %cst_12 [2] : vector<4x128x256xf32> to vector<4x128xf32>
    %15 = vector.shape_cast %14 : vector<4x128xf32> to vector<4x128x1xf32>
    "tpu.trace_start"() <{level = 10 : i32, message = "hqk,hkd->hqd"}> : () -> ()
    %cst_13 = arith.constant dense<0.000000e+00> : vector<4x128x32xf32>
    %16 = tpu.matmul %12, %5, %cst_13 {dimension_numbers = #tpu.dot_dimension_numbers<[2], [1], [1], [2], [0, 0, 0, 1, 1, 2], [0], [0]>} : vector<4x128x256xbf16>, vector<4x256x32xbf16>, vector<4x128x32xf32> -> vector<4x128x32xf32>
    "tpu.trace_stop"() : () -> ()
    %17 = tpu.reciprocal %15 {approx = true} : vector<4x128x1xf32> -> vector<4x128x1xf32>
    %18 = vector.broadcast %17 : vector<4x128x1xf32> to vector<4x128x32xf32>
    %19 = arith.mulf %16, %18 : vector<4x128x32xf32>
    %20 = arith.truncf %19 : vector<4x128x32xf32> to vector<4x128x32xbf16>
    %c0_14 = arith.constant 0 : index
    %c0_15 = arith.constant 0 : index
    %c0_16 = arith.constant 0 : index
    %21 = vector.load %arg6[%c0_14, %c0_15, %c0_16] : memref<4x32x128xbf16, #tpu.memory_space<vmem>>, vector<4x32x128xbf16>
    "tpu.trace_start"() <{level = 10 : i32, message = "hqd,hde->hqe"}> : () -> ()
    %cst_17 = arith.constant dense<0.000000e+00> : vector<4x128x128xf32>
    %22 = tpu.matmul %20, %21, %cst_17 {dimension_numbers = #tpu.dot_dimension_numbers<[2], [1], [1], [2], [0, 0, 0, 1, 1, 2], [0], [0]>} : vector<4x128x32xbf16>, vector<4x32x128xbf16>, vector<4x128x128xf32> -> vector<4x128x128xf32>
    "tpu.trace_stop"() : () -> ()
    %cst_18 = arith.constant dense<0.000000e+00> : vector<128x128xf32>
    %23 = vector.multi_reduction <add>, %22, %cst_18 [0] : vector<4x128x128xf32> to vector<128x128xf32>
    %c0_19 = arith.constant 0 : index
    %c0_20 = arith.constant 0 : index
    %24 = vector.load %arg7[%c0_19, %c0_20] : memref<1x128xf32, #tpu.memory_space<vmem>>, vector<1x128xf32>
    %25 = vector.broadcast %24 : vector<1x128xf32> to vector<128x128xf32>
    %26 = arith.addf %23, %25 : vector<128x128xf32>
    %c0_21 = arith.constant 0 : index
    %c0_22 = arith.constant 0 : index
    %c0_23 = arith.constant 0 : index
    %27 = vector.load %arg5[%c0_21, %c0_22, %c0_23] : memref<1x128x128xf32, #tpu.memory_space<vmem>>, vector<1x128x128xf32>
    %28 = vector.shape_cast %27 : vector<1x128x128xf32> to vector<128x128xf32>
    %29 = arith.addf %26, %28 : vector<128x128xf32>
    %c0_24 = arith.constant 0 : index
    %c0_25 = arith.constant 0 : index
    %30 = vector.load %arg12[%c0_24, %c0_25] : memref<1x128xf32, #tpu.memory_space<vmem>>, vector<1x128xf32>
    %c0_26 = arith.constant 0 : index
    %c0_27 = arith.constant 0 : index
    %31 = vector.load %arg13[%c0_26, %c0_27] : memref<1x128xf32, #tpu.memory_space<vmem>>, vector<1x128xf32>
    %cst_28 = arith.constant dense<0.000000e+00> : vector<128xf32>
    %32 = vector.multi_reduction <add>, %29, %cst_28 [1] : vector<128x128xf32> to vector<128xf32>
    %33 = vector.shape_cast %32 : vector<128xf32> to vector<128x1xf32>
    %cst_29 = arith.constant 1.280000e+02 : f32
    %34 = vector.broadcast %cst_29 : f32 to vector<128x1xf32>
    %35 = arith.divf %33, %34 : vector<128x1xf32>
    %36 = arith.mulf %29, %29 : vector<128x128xf32>
    %cst_30 = arith.constant dense<0.000000e+00> : vector<128xf32>
    %37 = vector.multi_reduction <add>, %36, %cst_30 [1] : vector<128x128xf32> to vector<128xf32>
    %38 = vector.shape_cast %37 : vector<128xf32> to vector<128x1xf32>
    %cst_31 = arith.constant 1.280000e+02 : f32
    %39 = vector.broadcast %cst_31 : f32 to vector<128x1xf32>
    %40 = arith.divf %38, %39 : vector<128x1xf32>
    %41 = arith.mulf %35, %35 : vector<128x1xf32>
    %42 = arith.subf %40, %41 : vector<128x1xf32>
    %43 = vector.broadcast %35 : vector<128x1xf32> to vector<128x128xf32>
    %44 = arith.subf %29, %43 : vector<128x128xf32>
    %cst_32 = arith.constant 9.99999974E-6 : f32
    %45 = vector.broadcast %cst_32 : f32 to vector<128x1xf32>
    %46 = arith.addf %42, %45 : vector<128x1xf32>
    %47 = math.rsqrt %46 : vector<128x1xf32>
    %48 = vector.broadcast %47 : vector<128x1xf32> to vector<128x128xf32>
    %49 = arith.mulf %44, %48 : vector<128x128xf32>
    %50 = vector.broadcast %30 : vector<1x128xf32> to vector<128x128xf32>
    %51 = arith.mulf %49, %50 : vector<128x128xf32>
    %52 = vector.broadcast %31 : vector<1x128xf32> to vector<128x128xf32>
    %53 = arith.addf %51, %52 : vector<128x128xf32>
    %54 = arith.truncf %53 : vector<128x128xf32> to vector<128x128xbf16>
    %c0_33 = arith.constant 0 : index
    %c0_34 = arith.constant 0 : index
    %55 = vector.load %arg8[%c0_33, %c0_34] : memref<128x512xbf16, #tpu.memory_space<vmem>>, vector<128x512xbf16>
    %cst_35 = arith.constant dense<0.000000e+00> : vector<128x512xf32>
    %56 = tpu.matmul %54, %55, %cst_35 {dimension_numbers = #tpu.dot_dimension_numbers<[1], [0], [0], [1], [0, 0, 1, 1], [], []>} : vector<128x128xbf16>, vector<128x512xbf16>, vector<128x512xf32> -> vector<128x512xf32>
    %c0_36 = arith.constant 0 : index
    %c0_37 = arith.constant 0 : index
    %57 = vector.load %arg9[%c0_36, %c0_37] : memref<1x512xf32, #tpu.memory_space<vmem>>, vector<1x512xf32>
    %58 = vector.broadcast %57 : vector<1x512xf32> to vector<128x512xf32>
    %59 = arith.addf %56, %58 : vector<128x512xf32>
    %cst_38 = arith.constant 0.000000e+00 : f32
    %60 = vector.broadcast %cst_38 : f32 to vector<128x512xf32>
    %61 = arith.maximumf %59, %60 : vector<128x512xf32>
    %62 = arith.truncf %61 : vector<128x512xf32> to vector<128x512xbf16>
    %c0_39 = arith.constant 0 : index
    %c0_40 = arith.constant 0 : index
    %63 = vector.load %arg10[%c0_39, %c0_40] : memref<512x128xbf16, #tpu.memory_space<vmem>>, vector<512x128xbf16>
    %cst_41 = arith.constant dense<0.000000e+00> : vector<128x128xf32>
    %64 = tpu.matmul %62, %63, %cst_41 {dimension_numbers = #tpu.dot_dimension_numbers<[1], [0], [0], [1], [0, 0, 1, 1], [], []>} : vector<128x512xbf16>, vector<512x128xbf16>, vector<128x128xf32> -> vector<128x128xf32>
    %c0_42 = arith.constant 0 : index
    %c0_43 = arith.constant 0 : index
    %65 = vector.load %arg11[%c0_42, %c0_43] : memref<1x128xf32, #tpu.memory_space<vmem>>, vector<1x128xf32>
    %66 = vector.broadcast %65 : vector<1x128xf32> to vector<128x128xf32>
    %67 = arith.addf %64, %66 : vector<128x128xf32>
    %68 = arith.addf %67, %53 : vector<128x128xf32>
    %c0_44 = arith.constant 0 : index
    %c0_45 = arith.constant 0 : index
    %69 = vector.load %arg14[%c0_44, %c0_45] : memref<1x128xf32, #tpu.memory_space<vmem>>, vector<1x128xf32>
    %c0_46 = arith.constant 0 : index
    %c0_47 = arith.constant 0 : index
    %70 = vector.load %arg15[%c0_46, %c0_47] : memref<1x128xf32, #tpu.memory_space<vmem>>, vector<1x128xf32>
    %cst_48 = arith.constant dense<0.000000e+00> : vector<128xf32>
    %71 = vector.multi_reduction <add>, %68, %cst_48 [1] : vector<128x128xf32> to vector<128xf32>
    %72 = vector.shape_cast %71 : vector<128xf32> to vector<128x1xf32>
    %cst_49 = arith.constant 1.280000e+02 : f32
    %73 = vector.broadcast %cst_49 : f32 to vector<128x1xf32>
    %74 = arith.divf %72, %73 : vector<128x1xf32>
    %75 = arith.mulf %68, %68 : vector<128x128xf32>
    %cst_50 = arith.constant dense<0.000000e+00> : vector<128xf32>
    %76 = vector.multi_reduction <add>, %75, %cst_50 [1] : vector<128x128xf32> to vector<128xf32>
    %77 = vector.shape_cast %76 : vector<128xf32> to vector<128x1xf32>
    %cst_51 = arith.constant 1.280000e+02 : f32
    %78 = vector.broadcast %cst_51 : f32 to vector<128x1xf32>
    %79 = arith.divf %77, %78 : vector<128x1xf32>
    %80 = arith.mulf %74, %74 : vector<128x1xf32>
    %81 = arith.subf %79, %80 : vector<128x1xf32>
    %82 = vector.broadcast %74 : vector<128x1xf32> to vector<128x128xf32>
    %83 = arith.subf %68, %82 : vector<128x128xf32>
    %cst_52 = arith.constant 9.99999974E-6 : f32
    %84 = vector.broadcast %cst_52 : f32 to vector<128x1xf32>
    %85 = arith.addf %81, %84 : vector<128x1xf32>
    %86 = math.rsqrt %85 : vector<128x1xf32>
    %87 = vector.broadcast %86 : vector<128x1xf32> to vector<128x128xf32>
    %88 = arith.mulf %83, %87 : vector<128x128xf32>
    %89 = vector.broadcast %69 : vector<1x128xf32> to vector<128x128xf32>
    %90 = arith.mulf %88, %89 : vector<128x128xf32>
    %91 = vector.broadcast %70 : vector<1x128xf32> to vector<128x128xf32>
    %92 = arith.addf %90, %91 : vector<128x128xf32>
    %c0_53 = arith.constant 0 : index
    %c0_54 = arith.constant 0 : index
    %c0_55 = arith.constant 0 : index
    %93 = vector.load %arg16[%c0_53, %c0_54, %c0_55] : memref<1x128x128xf32, #tpu.memory_space<vmem>>, vector<1x128x128xf32>
    %94 = vector.shape_cast %93 : vector<1x128x128xf32> to vector<128x128xf32>
    %95 = vector.shape_cast %92 : vector<128x128xf32> to vector<1x128x128xf32>
    tpu.vector_store %arg16[%c0_53, %c0_54, %c0_55], %95 {strides = array<i32>} : memref<1x128x128xf32, #tpu.memory_space<vmem>>, vector<1x128x128xf32>,
    return
  }
  func.func @transform_0(%arg0: i32, %arg1: i32) -> (i32, i32, i32, i32) {
    %c0_i32 = arith.constant 0 : i32
    %c0_i32_0 = arith.constant 0 : i32
    %c0_i32_1 = arith.constant 0 : i32
    %c0_i32_2 = arith.constant 0 : i32
    return %arg0, %c0_i32, %c0_i32_0, %c0_i32_1 : i32, i32, i32, i32
  }
  func.func @transform_1(%arg0: i32, %arg1: i32) -> (i32, i32, i32, i32) {
    %c0_i32 = arith.constant 0 : i32
    %c0_i32_0 = arith.constant 0 : i32
    %c0_i32_1 = arith.constant 0 : i32
    %c0_i32_2 = arith.constant 0 : i32
    return %arg0, %c0_i32, %c0_i32_0, %c0_i32_1 : i32, i32, i32, i32
  }
  func.func @transform_2(%arg0: i32, %arg1: i32) -> (i32, i32, i32, i32) {
    %c0_i32 = arith.constant 0 : i32
    %c0_i32_0 = arith.constant 0 : i32
    %c0_i32_1 = arith.constant 0 : i32
    return %arg0, %c0_i32, %arg1, %c0_i32_0 : i32, i32, i32, i32
  }
  func.func @transform_3(%arg0: i32, %arg1: i32) -> (i32, i32, i32) {
    %c0_i32 = arith.constant 0 : i32
    %c0_i32_0 = arith.constant 0 : i32
    return %arg0, %arg1, %c0_i32 : i32, i32, i32
  }
  func.func @transform_4(%arg0: i32, %arg1: i32) -> (i32, i32, i32) {
    %c0_i32 = arith.constant 0 : i32
    %c0_i32_0 = arith.constant 0 : i32
    %c0_i32_1 = arith.constant 0 : i32
    %c0_i32_2 = arith.constant 0 : i32
    return %c0_i32, %c0_i32_0, %c0_i32_1 : i32, i32, i32
  }
  func.func @transform_5(%arg0: i32, %arg1: i32) -> (i32, i32) {
    %c0_i32 = arith.constant 0 : i32
    %c0_i32_0 = arith.constant 0 : i32
    %c0_i32_1 = arith.constant 0 : i32
    return %c0_i32, %c0_i32_0 : i32, i32
  }
  func.func @transform_6(%arg0: i32, %arg1: i32) -> (i32, i32) {
    %c0_i32 = arith.constant 0 : i32
    %c0_i32_0 = arith.constant 0 : i32
    %c0_i32_1 = arith.constant 0 : i32
    return %c0_i32, %c0_i32_0 : i32, i32
  }
  func.func @transform_7(%arg0: i32, %arg1: i32) -> (i32, i32) {
    %c0_i32 = arith.constant 0 : i32
    %c0_i32_0 = arith.constant 0 : i32
    %c0_i32_1 = arith.constant 0 : i32
    return %c0_i32, %c0_i32_0 : i32, i32
  }
  func.func @transform_8(%arg0: i32, %arg1: i32) -> (i32, i32) {
    %c0_i32 = arith.constant 0 : i32
    %c0_i32_0 = arith.constant 0 : i32
    %c0_i32_1 = arith.constant 0 : i32
    return %c0_i32, %c0_i32_0 : i32, i32
  }
  func.func @transform_9(%arg0: i32, %arg1: i32) -> (i32, i32) {
    %c0_i32 = arith.constant 0 : i32
    %c0_i32_0 = arith.constant 0 : i32
    %c0_i32_1 = arith.constant 0 : i32
    return %c0_i32, %c0_i32_0 : i32, i32
  }
  func.func @transform_10(%arg0: i32, %arg1: i32) -> (i32, i32) {
    %c0_i32 = arith.constant 0 : i32
    %c0_i32_0 = arith.constant 0 : i32
    %c0_i32_1 = arith.constant 0 : i32
    return %c0_i32, %c0_i32_0 : i32, i32
  }
  func.func @transform_11(%arg0: i32, %arg1: i32) -> (i32, i32) {
    %c0_i32 = arith.constant 0 : i32
    %c0_i32_0 = arith.constant 0 : i32
    %c0_i32_1 = arith.constant 0 : i32
    return %c0_i32, %c0_i32_0 : i32, i32
  }
  func.func @transform_12(%arg0: i32, %arg1: i32) -> (i32, i32) {
    %c0_i32 = arith.constant 0 : i32
    %c0_i32_0 = arith.constant 0 : i32
    %c0_i32_1 = arith.constant 0 : i32
    return %c0_i32, %c0_i32_0 : i32, i32
  }
  func.func @transform_13(%arg0: i32, %arg1: i32) -> (i32, i32) {
    %c0_i32 = arith.constant 0 : i32
    %c0_i32_0 = arith.constant 0 : i32
    %c0_i32_1 = arith.constant 0 : i32
    return %c0_i32, %c0_i32_0 : i32, i32
  }
  func.func @transform_14(%arg0: i32, %arg1: i32) -> (i32, i32, i32) {
    %c0_i32 = arith.constant 0 : i32
    %c0_i32_0 = arith.constant 0 : i32
    return %arg0, %arg1, %c0_i32 : i32, i32, i32
  }
}

</mosaic_0001>

<llo_original>
// kernel: transformer_block.1
$region0: #{transformer_block.1}
  #allocation0 [shape = 'u32[]', space=smem, size = 0x4, offset = 0x4, fixed_abs, tag = 'smem constant byte address 0x4 - core index']
  #allocation1 [shape = 'u32[144,128]{1,0:T(1,128)}', space=vmem, size = 0x12000, scoped, tag = 'internal scratch']
  %s0 = inlined_call_operand.vmem [shape: bf16[2,4,256,32], index: 0, kind: input, shape index: {}]
  %s1 = inlined_call_operand.vmem [shape: bf16[2,4,256,32], index: 1, kind: input, shape index: {}]
  %s2 = inlined_call_operand.vmem [shape: bf16[2,4,256,32], index: 2, kind: input, shape index: {}]
  %s3 = inlined_call_operand.vmem [shape: f32[2,256,128], index: 3, kind: input, shape index: {}]
  %s4 = inlined_call_operand.vmem [shape: bf16[4,32,128], index: 4, kind: input, shape index: {}]
  %s5 = inlined_call_operand.vmem [shape: f32[1,128], index: 5, kind: input, shape index: {}]
  %s6 = inlined_call_operand.vmem [shape: bf16[128,512], index: 6, kind: input, shape index: {}]
  %s7 = inlined_call_operand.vmem [shape: f32[1,512], index: 7, kind: input, shape index: {}]
  %s8 = inlined_call_operand.vmem [shape: bf16[512,128], index: 8, kind: input, shape index: {}]
  %s9 = inlined_call_operand.vmem [shape: f32[1,128], index: 9, kind: input, shape index: {}]
  %s10 = inlined_call_operand.vmem [shape: f32[1,128], index: 10, kind: input, shape index: {}]
  %s11 = inlined_call_operand.vmem [shape: f32[1,128], index: 11, kind: input, shape index: {}]
  %s12 = inlined_call_operand.vmem [shape: f32[1,128], index: 12, kind: input, shape index: {}]
  %s13 = inlined_call_operand.vmem [shape: f32[1,128], index: 13, kind: input, shape index: {}]
  %s14 = inlined_call_operand.hbm [shape: f32[2,256,128], index: 14, kind: output, shape index: {}]
  %s15 = sld [smem:[#allocation0]]
  $region130: #{transformer_block.1} parent=0
    _
  %s17 = ssub.s32 1, %s15
  %s18 = scalar_select 0, %s17, %s15
  $region1: #{transformer_block.1} parent=0
    #allocation2 [shape = 'u8[262144]{0}', space=vmem, size = 0x40000, scoped, tag = 'input window, operand 2']
    #allocation3 [shape = 'u8[131072]{0}', space=vmem, size = 0x20000, scoped, tag = 'output window, operand 0']
    #allocation4 [shape = 's32[2]{0}', space=sflag, size = 0x8, scoped, tag = 'scoped memory for transformer_block.1']
    %19 = vsyncpa [#allocation4], 0
    %s20 = scalar_lea.sflag [#allocation4], 1
    %21 = vsyncpa %s20, 0
    loop: start=0, step=1, limit=6
    $region2: #{transformer_block.1} parent=1 // loop_pre_header
      _
    $region3: #{transformer_block.1} parent=1 // loop_header
      %s23 = sphi 0, %s27
      %p24 = scmp.ge.s32.totalorder %s23, 6
      %s30 = sphi 0, %s42
      %s31 = sphi 0, %s38
      %s32 = sphi 0, %s30
      %s33 = sphi 0, %s31
      %s34 = sphi 0, %s32
      %s35 = sphi 0, %s33
      %s45 = sphi 0, %s47
      %s48 = sphi 0, %s45
      %s49 = sphi 0, %s48
      %s65 = sphi 0, %s49
      %s71 = sphi 0, %s73
      %s74 = sphi 0, %s71
      %s75 = sphi 0, %s74
      %s91 = sphi 0, %s75
      %s99 = sphi 0, %s101
      %s102 = sphi 0, %s99
      %s103 = sphi 0, %s102
      %s119 = sphi 0, %s103
      %s127 = sphi 0, %s129
      %s130 = sphi 0, %s127
      %s131 = sphi 0, %s130
      %s147 = sphi 0, %s131
      %s151 = sphi 0, %s151
      %s153 = sphi 0, %s151
      %s154 = sphi 0, %s153
      %s168 = sphi 0, %s154
      %s172 = sphi 0, %s172
      %s174 = sphi 0, %s172
      %s175 = sphi 0, %s174
      %s189 = sphi 0, %s175
      %s193 = sphi 0, %s193
      %s195 = sphi 0, %s193
      %s196 = sphi 0, %s195
      %s210 = sphi 0, %s196
      %s214 = sphi 0, %s214
      %s216 = sphi 0, %s214
      %s217 = sphi 0, %s216
      %s231 = sphi 0, %s217
      %s235 = sphi 0, %s235
      %s237 = sphi 0, %s235
      %s238 = sphi 0, %s237
      %s252 = sphi 0, %s238
      %s256 = sphi 0, %s256
      %s258 = sphi 0, %s256
      %s259 = sphi 0, %s258
      %s273 = sphi 0, %s259
      %s277 = sphi 0, %s277
      %s279 = sphi 0, %s277
      %s280 = sphi 0, %s279
      %s294 = sphi 0, %s280
      %s298 = sphi 0, %s298
      %s300 = sphi 0, %s298
      %s301 = sphi 0, %s300
      %s315 = sphi 0, %s301
      %s319 = sphi 0, %s319
      %s321 = sphi 0, %s319
      %s322 = sphi 0, %s321
      %s336 = sphi 0, %s322
      %s340 = sphi 0, %s340
      %s342 = sphi 0, %s340
      %s343 = sphi 0, %s342
      %s357 = sphi 0, %s343
      %s365 = sphi 0, %s367
      %s368 = sphi 0, %s365
      %s369 = sphi 0, %s368
      %s385 = sphi 0, %s369
    $region4: #{transformer_block.1} parent=1 // loop_header_branch
      %26 = sbr.rel (%p24) target = $region8
    $region5: #{transformer_block.1} parent=1 // loop_body
      %s28 = ssub.s32 %s23, 1
      %s29 = ssub.s32 %s23, 2
      %s36 = sadd.s32 1, %s31
      %p37 = scmp.ge.s32.totalorder %s36, 2
      %s38 = scalar_select %p37, 0, %s36
      %s39 = sadd.s32 1, %s30
      %s40 = scalar_select %p37, %s39, %s30
      %p41 = scmp.ge.s32.totalorder %s40, 2
      %s42 = scalar_select %p41, 0, %s40
      %s43 = ssub.s32 %s30, %s42
      %p44 = scmp.eq.s32.totalorder %s43, 0
      %s46 = sadd.s32 %s45, 1
      %s47 = scalar_select %p44, %s45, %s46
      %p50 = pneg %p44
      %p51 = scmp.eq.s32.totalorder %s23, 3
      %p52 = por %p50, %p51
      %p53 = scmp.ne.s32.totalorder %s45, %s48
      %p54 = scmp.eq.s32.totalorder %s23, 0
      %p55 = por %p53, %p54
      %p56 = scmp.ne.s32.totalorder %s45, %s48
      %p57 = scmp.eq.s32.totalorder %s28, 3
      %p58 = por %p56, %p57
      %p59 = scmp.ne.s32.totalorder %s48, %s49
      %p60 = scmp.eq.s32.totalorder %s28, 0
      %p61 = por %p59, %p60
      %p62 = scmp.ne.s32.totalorder %s48, %s49
      %p63 = scmp.eq.s32.totalorder %s29, 3
      %p64 = por %p62, %p63
      %p66 = scmp.ne.s32.totalorder %s49, %s65
      %p67 = scmp.eq.s32.totalorder %s29, 0
      %p68 = por %p66, %p67
      %s69 = ssub.s32 %s30, %s42
      %p70 = scmp.eq.s32.totalorder %s69, 0
      %s72 = sadd.s32 %s71, 1
      %s73 = scalar_select %p70, %s71, %s72
      %p76 = pneg %p70
      %p77 = scmp.eq.s32.totalorder %s23, 3
      %p78 = por %p76, %p77
      %p79 = scmp.ne.s32.totalorder %s71, %s74
      %p80 = scmp.eq.s32.totalorder %s23, 0
      %p81 = por %p79, %p80
      %p82 = scmp.ne.s32.totalorder %s71, %s74
      %p83 = scmp.eq.s32.totalorder %s28, 3
      %p84 = por %p82, %p83
      %p85 = scmp.ne.s32.totalorder %s74, %s75
      %p86 = scmp.eq.s32.totalorder %s28, 0
      %p87 = por %p85, %p86
      %p88 = scmp.ne.s32.totalorder %s74, %s75
      %p89 = scmp.eq.s32.totalorder %s29, 3
      %p90 = por %p88, %p89
      %p92 = scmp.ne.s32.totalorder %s75, %s91
      %p93 = scmp.eq.s32.totalorder %s29, 0
      %p94 = por %p92, %p93
      %s95 = ssub.s32 %s30, %s42
      %s96 = ssub.s32 %s31, %s38
      %s97 = sor.u32 %s95, %s96
      %p98 = scmp.eq.s32.totalorder %s97, 0
      %s100 = sadd.s32 %s99, 1
      %s101 = scalar_select %p98, %s99, %s100
      %p104 = pneg %p98
      %p105 = scmp.eq.s32.totalorder %s23, 3
      %p106 = por %p104, %p105
      %p107 = scmp.ne.s32.totalorder %s99, %s102
      %p108 = scmp.eq.s32.totalorder %s23, 0
      %p109 = por %p107, %p108
      %p110 = scmp.ne.s32.totalorder %s99, %s102
      %p111 = scmp.eq.s32.totalorder %s28, 3
      %p112 = por %p110, %p111
      %p113 = scmp.ne.s32.totalorder %s102, %s103
      %p114 = scmp.eq.s32.totalorder %s28, 0
      %p115 = por %p113, %p114
      %p116 = scmp.ne.s32.totalorder %s102, %s103
      %p117 = scmp.eq.s32.totalorder %s29, 3
      %p118 = por %p116, %p117
      %p120 = scmp.ne.s32.totalorder %s103, %s119
      %p121 = scmp.eq.s32.totalorder %s29, 0
      %p122 = por %p120, %p121
      %s123 = ssub.s32 %s30, %s42
      %s124 = ssub.s32 %s31, %s38
      %s125 = sor.u32 %s123, %s124
      %p126 = scmp.eq.s32.totalorder %s125, 0
      %s128 = sadd.s32 %s127, 1
      %s129 = scalar_select %p126, %s127, %s128
      %p132 = pneg %p126
      %p133 = scmp.eq.s32.totalorder %s23, 3
      %p134 = por %p132, %p133
      %p135 = scmp.ne.s32.totalorder %s127, %s130
      %p136 = scmp.eq.s32.totalorder %s23, 0
      %p137 = por %p135, %p136
      %p138 = scmp.ne.s32.totalorder %s127, %s130
      %p139 = scmp.eq.s32.totalorder %s28, 3
      %p140 = por %p138, %p139
      %p141 = scmp.ne.s32.totalorder %s130, %s131
      %p142 = scmp.eq.s32.totalorder %s28, 0
      %p143 = por %p141, %p142
      %p144 = scmp.ne.s32.totalorder %s130, %s131
      %p145 = scmp.eq.s32.totalorder %s29, 3
      %p146 = por %p144, %p145
      %p148 = scmp.ne.s32.totalorder %s131, %s147
      %p149 = scmp.eq.s32.totalorder %s29, 0
      %p150 = por %p148, %p149
      %s152 = sadd.s32 %s151, 1
      %p155 = scmp.eq.s32.totalorder %s23, 3
      %p156 = scmp.ne.s32.totalorder %s151, %s153
      %p157 = scmp.eq.s32.totalorder %s23, 0
      %p158 = por %p156, %p157
      %p159 = scmp.ne.s32.totalorder %s151, %s153
      %p160 = scmp.eq.s32.totalorder %s28, 3
      %p161 = por %p159, %p160
      %p162 = scmp.ne.s32.totalorder %s153, %s154
      %p163 = scmp.eq.s32.totalorder %s28, 0
      %p164 = por %p162, %p163
      %p165 = scmp.ne.s32.totalorder %s153, %s154
      %p166 = scmp.eq.s32.totalorder %s29, 3
      %p167 = por %p165, %p166
      %p169 = scmp.ne.s32.totalorder %s154, %s168
      %p170 = scmp.eq.s32.totalorder %s29, 0
      %p171 = por %p169, %p170
      %s173 = sadd.s32 %s172, 1
      %p176 = scmp.eq.s32.totalorder %s23, 3
      %p177 = scmp.ne.s32.totalorder %s172, %s174
      %p178 = scmp.eq.s32.totalorder %s23, 0
      %p179 = por %p177, %p178
      %p180 = scmp.ne.s32.totalorder %s172, %s174
      %p181 = scmp.eq.s32.totalorder %s28, 3
      %p182 = por %p180, %p181
      %p183 = scmp.ne.s32.totalorder %s174, %s175
      %p184 = scmp.eq.s32.totalorder %s28, 0
      %p185 = por %p183, %p184
      %p186 = scmp.ne.s32.totalorder %s174, %s175
      %p187 = scmp.eq.s32.totalorder %s29, 3
      %p188 = por %p186, %p187
      %p190 = scmp.ne.s32.totalorder %s175, %s189
      %p191 = scmp.eq.s32.totalorder %s29, 0
      %p192 = por %p190, %p191
      %s194 = sadd.s32 %s193, 1
      %p197 = scmp.eq.s32.totalorder %s23, 3
      %p198 = scmp.ne.s32.totalorder %s193, %s195
      %p199 = scmp.eq.s32.totalorder %s23, 0
      %p200 = por %p198, %p199
      %p201 = scmp.ne.s32.totalorder %s193, %s195
      %p202 = scmp.eq.s32.totalorder %s28, 3
      %p203 = por %p201, %p202
      %p204 = scmp.ne.s32.totalorder %s195, %s196
      %p205 = scmp.eq.s32.totalorder %s28, 0
      %p206 = por %p204, %p205
      %p207 = scmp.ne.s32.totalorder %s195, %s196
      %p208 = scmp.eq.s32.totalorder %s29, 3
      %p209 = por %p207, %p208
      %p211 = scmp.ne.s32.totalorder %s196, %s210
      %p212 = scmp.eq.s32.totalorder %s29, 0
      %p213 = por %p211, %p212
      %s215 = sadd.s32 %s214, 1
      %p218 = scmp.eq.s32.totalorder %s23, 3
      %p219 = scmp.ne.s32.totalorder %s214, %s216
      %p220 = scmp.eq.s32.totalorder %s23, 0
      %p221 = por %p219, %p220
      %p222 = scmp.ne.s32.totalorder %s214, %s216
      %p223 = scmp.eq.s32.totalorder %s28, 3
      %p224 = por %p222, %p223
      %p225 = scmp.ne.s32.totalorder %s216, %s217
      %p226 = scmp.eq.s32.totalorder %s28, 0
      %p227 = por %p225, %p226
      %p228 = scmp.ne.s32.totalorder %s216, %s217
      %p229 = scmp.eq.s32.totalorder %s29, 3
      %p230 = por %p228, %p229
      %p232 = scmp.ne.s32.totalorder %s217, %s231
      %p233 = scmp.eq.s32.totalorder %s29, 0
      %p234 = por %p232, %p233
      %s236 = sadd.s32 %s235, 1
      %p239 = scmp.eq.s32.totalorder %s23, 3
      %p240 = scmp.ne.s32.totalorder %s235, %s237
      %p241 = scmp.eq.s32.totalorder %s23, 0
      %p242 = por %p240, %p241
      %p243 = scmp.ne.s32.totalorder %s235, %s237
      %p244 = scmp.eq.s32.totalorder %s28, 3
      %p245 = por %p243, %p244
      %p246 = scmp.ne.s32.totalorder %s237, %s238
      %p247 = scmp.eq.s32.totalorder %s28, 0
      %p248 = por %p246, %p247
      %p249 = scmp.ne.s32.totalorder %s237, %s238
      %p250 = scmp.eq.s32.totalorder %s29, 3
      %p251 = por %p249, %p250
      %p253 = scmp.ne.s32.totalorder %s238, %s252
      %p254 = scmp.eq.s32.totalorder %s29, 0
      %p255 = por %p253, %p254
      %s257 = sadd.s32 %s256, 1
      %p260 = scmp.eq.s32.totalorder %s23, 3
      %p261 = scmp.ne.s32.totalorder %s256, %s258
      %p262 = scmp.eq.s32.totalorder %s23, 0
      %p263 = por %p261, %p262
      %p264 = scmp.ne.s32.totalorder %s256, %s258
      %p265 = scmp.eq.s32.totalorder %s28, 3
      %p266 = por %p264, %p265
      %p267 = scmp.ne.s32.totalorder %s258, %s259
      %p268 = scmp.eq.s32.totalorder %s28, 0
      %p269 = por %p267, %p268
      %p270 = scmp.ne.s32.totalorder %s258, %s259
      %p271 = scmp.eq.s32.totalorder %s29, 3
      %p272 = por %p270, %p271
      %p274 = scmp.ne.s32.totalorder %s259, %s273
      %p275 = scmp.eq.s32.totalorder %s29, 0
      %p276 = por %p274, %p275
      %s278 = sadd.s32 %s277, 1
      %p281 = scmp.eq.s32.totalorder %s23, 3
      %p282 = scmp.ne.s32.totalorder %s277, %s279
      %p283 = scmp.eq.s32.totalorder %s23, 0
      %p284 = por %p282, %p283
      %p285 = scmp.ne.s32.totalorder %s277, %s279
      %p286 = scmp.eq.s32.totalorder %s28, 3
      %p287 = por %p285, %p286
      %p288 = scmp.ne.s32.totalorder %s279, %s280
      %p289 = scmp.eq.s32.totalorder %s28, 0
      %p290 = por %p288, %p289
      %p291 = scmp.ne.s32.totalorder %s279, %s280
      %p292 = scmp.eq.s32.totalorder %s29, 3
      %p293 = por %p291, %p292
      %p295 = scmp.ne.s32.totalorder %s280, %s294
      %p296 = scmp.eq.s32.totalorder %s29, 0
      %p297 = por %p295, %p296
      %s299 = sadd.s32 %s298, 1
      %p302 = scmp.eq.s32.totalorder %s23, 3
      %p303 = scmp.ne.s32.totalorder %s298, %s300
      %p304 = scmp.eq.s32.totalorder %s23, 0
      %p305 = por %p303, %p304
      %p306 = scmp.ne.s32.totalorder %s298, %s300
      %p307 = scmp.eq.s32.totalorder %s28, 3
      %p308 = por %p306, %p307
      %p309 = scmp.ne.s32.totalorder %s300, %s301
      %p310 = scmp.eq.s32.totalorder %s28, 0
      %p311 = por %p309, %p310
      %p312 = scmp.ne.s32.totalorder %s300, %s301
      %p313 = scmp.eq.s32.totalorder %s29, 3
      %p314 = por %p312, %p313
      %p316 = scmp.ne.s32.totalorder %s301, %s315
      %p317 = scmp.eq.s32.totalorder %s29, 0
      %p318 = por %p316, %p317
      %s320 = sadd.s32 %s319, 1
      %p323 = scmp.eq.s32.totalorder %s23, 3
      %p324 = scmp.ne.s32.totalorder %s319, %s321
      %p325 = scmp.eq.s32.totalorder %s23, 0
      %p326 = por %p324, %p325
      %p327 = scmp.ne.s32.totalorder %s319, %s321
      %p328 = scmp.eq.s32.totalorder %s28, 3
      %p329 = por %p327, %p328
      %p330 = scmp.ne.s32.totalorder %s321, %s322
      %p331 = scmp.eq.s32.totalorder %s28, 0
      %p332 = por %p330, %p331
      %p333 = scmp.ne.s32.totalorder %s321, %s322
      %p334 = scmp.eq.s32.totalorder %s29, 3
      %p335 = por %p333, %p334
      %p337 = scmp.ne.s32.totalorder %s322, %s336
      %p338 = scmp.eq.s32.totalorder %s29, 0
      %p339 = por %p337, %p338
      %s341 = sadd.s32 %s340, 1
      %p344 = scmp.eq.s32.totalorder %s23, 3
      %p345 = scmp.ne.s32.totalorder %s340, %s342
      %p346 = scmp.eq.s32.totalorder %s23, 0
      %p347 = por %p345, %p346
      %p348 = scmp.ne.s32.totalorder %s340, %s342
      %p349 = scmp.eq.s32.totalorder %s28, 3
      %p350 = por %p348, %p349
      %p351 = scmp.ne.s32.totalorder %s342, %s343
      %p352 = scmp.eq.s32.totalorder %s28, 0
      %p353 = por %p351, %p352
      %p354 = scmp.ne.s32.totalorder %s342, %s343
      %p355 = scmp.eq.s32.totalorder %s29, 3
      %p356 = por %p354, %p355
      %p358 = scmp.ne.s32.totalorder %s343, %s357
      %p359 = scmp.eq.s32.totalorder %s29, 0
      %p360 = por %p358, %p359
      %s361 = ssub.s32 %s30, %s42
      %s362 = ssub.s32 %s31, %s38
      %s363 = sor.u32 %s361, %s362
      %p364 = scmp.eq.s32.totalorder %s363, 0
      %s366 = sadd.s32 %s365, 1
      %s367 = scalar_select %p364, %s365, %s366
      %p370 = pneg %p364
      %p371 = scmp.eq.s32.totalorder %s23, 3
      %p372 = por %p370, %p371
      %p373 = scmp.ne.s32.totalorder %s365, %s368
      %p374 = scmp.eq.s32.totalorder %s23, 0
      %p375 = por %p373, %p374
      %p376 = scmp.ne.s32.totalorder %s365, %s368
      %p377 = scmp.eq.s32.totalorder %s28, 3
      %p378 = por %p376, %p377
      %p379 = scmp.ne.s32.totalorder %s368, %s369
      %p380 = scmp.eq.s32.totalorder %s28, 0
      %p381 = por %p379, %p380
      %p382 = scmp.ne.s32.totalorder %s368, %s369
      %p383 = scmp.eq.s32.totalorder %s29, 3
      %p384 = por %p382, %p383
      %p386 = scmp.ne.s32.totalorder %s369, %s385
      %p387 = scmp.eq.s32.totalorder %s29, 0
      %p388 = por %p386, %p387
      %p389 = scmp.le.s32.totalorder 1, %s23
      %p390 = scmp.lt.s32.totalorder %s23, 5
      %p391 = pnand %p389, %p390
      %p392 = pneg %p391
      // Predicated region
      $region9: #{transformer_block.1} parent=5 // pred_check
        _
      $region10: #{transformer_block.1} parent=5 // pred_check_branch
        %394 = sbr.rel (%p391) target = $region12
      $region11: #{transformer_block.1} parent=5 // pred_region
        %s395 = ssub.s32 %s23, 1
        // Predicated region
        $region13: #{transformer_block.1} parent=11 // pred_check
          %p396 = pneg %p164
        $region14: #{transformer_block.1} parent=11 // pred_check_branch
          %398 = sbr.rel (%p396) target = $region16
        $region15: #{transformer_block.1} parent=11 // pred_region
          _
        $region16: #{transformer_block.1} parent=11 // pred_fallthru
          _
        // Predicated region
        $region17: #{transformer_block.1} parent=11 // pred_check
          %p399 = pneg %p185
        $region18: #{transformer_block.1} parent=11 // pred_check_branch
          %401 = sbr.rel (%p399) target = $region20
        $region19: #{transformer_block.1} parent=11 // pred_region
          _
        $region20: #{transformer_block.1} parent=11 // pred_fallthru
          _
        // Predicated region
        $region21: #{transformer_block.1} parent=11 // pred_check
          %p402 = pneg %p206
        $region22: #{transformer_block.1} parent=11 // pred_check_branch
          %404 = sbr.rel (%p402) target = $region24
        $region23: #{transformer_block.1} parent=11 // pred_region
          _
        $region24: #{transformer_block.1} parent=11 // pred_fallthru
          _
        // Predicated region
        $region25: #{transformer_block.1} parent=11 // pred_check
          %p405 = pneg %p227
        $region26: #{transformer_block.1} parent=11 // pred_check_branch
          %407 = sbr.rel (%p405) target = $region28
        $region27: #{transformer_block.1} parent=11 // pred_region
          _
        $region28: #{transformer_block.1} parent=11 // pred_fallthru
          _
        // Predicated region
        $region29: #{transformer_block.1} parent=11 // pred_check
          %p408 = pneg %p248
        $region30: #{transformer_block.1} parent=11 // pred_check_branch
          %410 = sbr.rel (%p408) target = $region32
        $region31: #{transformer_block.1} parent=11 // pred_region
          _
        $region32: #{transformer_block.1} parent=11 // pred_fallthru
          _
        // Predicated region
        $region33: #{transformer_block.1} parent=11 // pred_check
          %p411 = pneg %p269
        $region34: #{transformer_block.1} parent=11 // pred_check_branch
          %413 = sbr.rel (%p411) target = $region36
        $region35: #{transformer_block.1} parent=11 // pred_region
          _
        $region36: #{transformer_block.1} parent=11 // pred_fallthru
          _
        // Predicated region
        $region37: #{transformer_block.1} parent=11 // pred_check
          %p414 = pneg %p290
        $region38: #{transformer_block.1} parent=11 // pred_check_branch
          %416 = sbr.rel (%p414) target = $region40
        $region39: #{transformer_block.1} parent=11 // pred_region
          _
        $region40: #{transformer_block.1} parent=11 // pred_fallthru
          _
        // Predicated region
        $region41: #{transformer_block.1} parent=11 // pred_check
          %p417 = pneg %p311
        $region42: #{transformer_block.1} parent=11 // pred_check_branch
          %419 = sbr.rel (%p417) target = $region44
        $region43: #{transformer_block.1} parent=11 // pred_region
          _
        $region44: #{transformer_block.1} parent=11 // pred_fallthru
          _
        // Predicated region
        $region45: #{transformer_block.1} parent=11 // pred_check
          %p420 = pneg %p332
        $region46: #{transformer_block.1} parent=11 // pred_check_branch
          %422 = sbr.rel (%p420) target = $region48
        $region47: #{transformer_block.1} parent=11 // pred_region
          _
        $region48: #{transformer_block.1} parent=11 // pred_fallthru
          _
        // Predicated region
        $region49: #{transformer_block.1} parent=11 // pred_check
          %p423 = pneg %p353
        $region50: #{transformer_block.1} parent=11 // pred_check_branch
          %425 = sbr.rel (%p423) target = $region52
        $region51: #{transformer_block.1} parent=11 // pred_region
          _
        $region52: #{transformer_block.1} parent=11 // pred_fallthru
          _
      $region12: #{transformer_block.1} parent=5 // pred_fallthru
        _
      %p426 = scmp.lt.s32.totalorder %s23, 4
      // Predicated region
      $region53: #{transformer_block.1} parent=5 // pred_check
        %p427 = pneg %p426
      $region54: #{transformer_block.1} parent=5 // pred_check_branch
        %429 = sbr.rel (%p427) target = $region56
      $region55: #{transformer_block.1} parent=5 // pred_region
        // Predicated region
        $region57: #{transformer_block.1} parent=55 // pred_check
          %p430 = pneg %p55
        $region58: #{transformer_block.1} parent=55 // pred_check_branch
          %432 = sbr.rel (%p430) target = $region60
        $region59: #{transformer_block.1} parent=55 // pred_region
          %p433 = scmp.lt.s32.totalorder %s30, 1
          %s434 = scalar_select %p433, %s30, 1
          %s435 = smul.addr %s434, 128
          %s436 = smul.addr %s435, 4
          %s437 = scalar_lea.vmem %s0, %s436
        $region60: #{transformer_block.1} parent=55 // pred_fallthru
          _
        // Predicated region
        $region61: #{transformer_block.1} parent=55 // pred_check
          %p438 = pneg %p81
        $region62: #{transformer_block.1} parent=55 // pred_check_branch
          %440 = sbr.rel (%p438) target = $region64
        $region63: #{transformer_block.1} parent=55 // pred_region
          %p441 = scmp.lt.s32.totalorder %s30, 1
          %s442 = scalar_select %p441, %s30, 1
          %s443 = smul.addr %s442, 128
          %s444 = smul.addr %s443, 4
          %s445 = scalar_lea.vmem %s1, %s444
        $region64: #{transformer_block.1} parent=55 // pred_fallthru
          _
        // Predicated region
        $region65: #{transformer_block.1} parent=55 // pred_check
          %p446 = pneg %p109
        $region66: #{transformer_block.1} parent=55 // pred_check_branch
          %448 = sbr.rel (%p446) target = $region68
        $region67: #{transformer_block.1} parent=55 // pred_region
          %s449 = sand.u32 %s99, 1
          %s450 = sand.u32 %s99, 1
          %s451 = smul.addr %s450, 256
          %s452 = scalar_lea.vmem [#allocation2], %s451
          %s453 = smul.u32 16, %s31
          %s454 = smul.addr %s30, 128
          %s455 = sadd.s32 %s453, %s454
          %s456 = smul.addr %s455, 4
          %s457 = scalar_lea.vmem %s2, %s456
          // Predicated region
          $region69: #{transformer_block.1} parent=67 // pred_check
            _
          $region70: #{transformer_block.1} parent=67 // pred_check_branch
            %459 = sbr.rel (0) target = $region72
          $region71: #{transformer_block.1} parent=67 // pred_region
            // Predicated region
            $region73: #{transformer_block.1} parent=71 // pred_check
              _
            $region74: #{transformer_block.1} parent=71 // pred_check_branch
              %461 = sbr.rel target = $region76
            $region75: #{transformer_block.1} parent=71 // pred_region
              // Predicated region
              $region88: #{transformer_block.1} parent=75 // pred_check
                _
              $region89: #{transformer_block.1} parent=75 // pred_check_branch
                %602 = sbr.rel (0) target = $region91
              $region90: #{transformer_block.1} parent=75 // pred_region
                loop: start=0, step=1, limit=1
                $region92: #{transformer_block.1} parent=90 // loop_pre_header
                  _
                $region93: #{transformer_block.1} parent=90 // loop_header
                  %s604 = sphi 0, %s608
                  %p605 = scmp.ge.s32.totalorder %s604, 1
                  %s609 = sphi %s457, %s457
                  %s610 = sphi %s452, %s452
                $region94: #{transformer_block.1} parent=90 // loop_header_branch
                  %607 = sbr.rel (%p605) target = $region98
                $region95: #{transformer_block.1} parent=90 // loop_body
                  _
                $region96: #{transformer_block.1} parent=90 // loop_footer
                  %s608 = sadd.s32 1, %s604
                $region97: #{transformer_block.1} parent=90 // loop_footer_branch
                  %603 = sbr.rel target = $region93
                $region98: #{transformer_block.1} parent=90 // loop_exit
                  _
                loop: start=0, step=1, limit=1
                $region99: #{transformer_block.1} parent=90 // loop_pre_header
                  _
                $region100: #{transformer_block.1} parent=90 // loop_header
                  %s613 = sphi 0, %s617
                  %p614 = scmp.ge.s32.totalorder %s613, 1
                  %s618 = sphi %s457, %s457
                  %s619 = sphi %s452, %s452
                $region101: #{transformer_block.1} parent=90 // loop_header_branch
                  %616 = sbr.rel (%p614) target = $region105
                $region102: #{transformer_block.1} parent=90 // loop_body
                  %v620 = vld [vmem:[%s618] sm:$0xf]
                  %621 = vst [vmem:[%s619] sm:$0xf] %v620
                  %v622 = vld [vmem:[%s618 + $0x4] sm:$0xf]
                  %623 = vst [vmem:[%s619 + $0x4] sm:$0xf] %v622
                  %v624 = vld [vmem:[%s618 + $0x8] sm:$0xf]
                  %625 = vst [vmem:[%s619 + $0x8] sm:$0xf] %v624
                  %v626 = vld [vmem:[%s618 + $0xc] sm:$0xf]
                  %627 = vst [vmem:[%s619 + $0xc] sm:$0xf] %v626
                  %v628 = vld [vmem:[%s618 + $0x10] sm:$0xf]
                  %629 = vst [vmem:[%s619 + $0x10] sm:$0xf] %v628
                  %v630 = vld [vmem:[%s618 + $0x14] sm:$0xf]
                  %631 = vst [vmem:[%s619 + $0x14] sm:$0xf] %v630
                  %v632 = vld [vmem:[%s618 + $0x18] sm:$0xf]
                  %633 = vst [vmem:[%s619 + $0x18] sm:$0xf] %v632
                  %v634 = vld [vmem:[%s618 + $0x1c] sm:$0xf]
                  %635 = vst [vmem:[%s619 + $0x1c] sm:$0xf] %v634
                  %v636 = vld [vmem:[%s618 + $0x20] sm:$0xf]
                  %637 = vst [vmem:[%s619 + $0x20] sm:$0xf] %v636
                  %v638 = vld [vmem:[%s618 + $0x24] sm:$0xf]
                  %639 = vst [vmem:[%s619 + $0x24] sm:$0xf] %v638
                  %v640 = vld [vmem:[%s618 + $0x28] sm:$0xf]
                  %641 = vst [vmem:[%s619 + $0x28] sm:$0xf] %v640
                  %v642 = vld [vmem:[%s618 + $0x2c] sm:$0xf]
                  %643 = vst [vmem:[%s619 + $0x2c] sm:$0xf] %v642
                  %v644 = vld [vmem:[%s618 + $0x30] sm:$0xf]
                  %645 = vst [vmem:[%s619 + $0x30] sm:$0xf] %v644
                  %v646 = vld [vmem:[%s618 + $0x34] sm:$0xf]
                  %647 = vst [vmem:[%s619 + $0x34] sm:$0xf] %v646
                  %v648 = vld [vmem:[%s618 + $0x38] sm:$0xf]
                  %649 = vst [vmem:[%s619 + $0x38] sm:$0xf] %v648
                  %v650 = vld [vmem:[%s618 + $0x3c] sm:$0xf]
                  %651 = vst [vmem:[%s619 + $0x3c] sm:$0xf] %v650
                  %v652 = vld [vmem:[%s618 + $0x80] sm:$0xf]
                  %653 = vst [vmem:[%s619 + $0x40] sm:$0xf] %v652
                  %v654 = vld [vmem:[%s618 + $0x84] sm:$0xf]
                  %655 = vst [vmem:[%s619 + $0x44] sm:$0xf] %v654
                  %v656 = vld [vmem:[%s618 + $0x88] sm:$0xf]
                  %657 = vst [vmem:[%s619 + $0x48] sm:$0xf] %v656
                  %v658 = vld [vmem:[%s618 + $0x8c] sm:$0xf]
                  %659 = vst [vmem:[%s619 + $0x4c] sm:$0xf] %v658
                  %v660 = vld [vmem:[%s618 + $0x90] sm:$0xf]
                  %661 = vst [vmem:[%s619 + $0x50] sm:$0xf] %v660
                  %v662 = vld [vmem:[%s618 + $0x94] sm:$0xf]
                  %663 = vst [vmem:[%s619 + $0x54] sm:$0xf] %v662
                  %v664 = vld [vmem:[%s618 + $0x98] sm:$0xf]
                  %665 = vst [vmem:[%s619 + $0x58] sm:$0xf] %v664
                  %v666 = vld [vmem:[%s618 + $0x9c] sm:$0xf]
                  %667 = vst [vmem:[%s619 + $0x5c] sm:$0xf] %v666
                  %v668 = vld [vmem:[%s618 + $0xa0] sm:$0xf]
                  %669 = vst [vmem:[%s619 + $0x60] sm:$0xf] %v668
                  %v670 = vld [vmem:[%s618 + $0xa4] sm:$0xf]
                  %671 = vst [vmem:[%s619 + $0x64] sm:$0xf] %v670
                  %v672 = vld [vmem:[%s618 + $0xa8] sm:$0xf]
                  %673 = vst [vmem:[%s619 + $0x68] sm:$0xf] %v672
                  %v674 = vld [vmem:[%s618 + $0xac] sm:$0xf]
                  %675 = vst [vmem:[%s619 + $0x6c] sm:$0xf] %v674
                  %v676 = vld [vmem:[%s618 + $0xb0] sm:$0xf]
                  %677 = vst [vmem:[%s619 + $0x70] sm:$0xf] %v676
                  %v678 = vld [vmem:[%s618 + $0xb4] sm:$0xf]
                  %679 = vst [vmem:[%s619 + $0x74] sm:$0xf] %v678
                  %v680 = vld [vmem:[%s618 + $0xb8] sm:$0xf]
                  %681 = vst [vmem:[%s619 + $0x78] sm:$0xf] %v680
                  %v682 = vld [vmem:[%s618 + $0xbc] sm:$0xf]
                  %683 = vst [vmem:[%s619 + $0x7c] sm:$0xf] %v682
                  %v684 = vld [vmem:[%s618 + $0x100] sm:$0xf]
                  %685 = vst [vmem:[%s619 + $0x80] sm:$0xf] %v684
                  %v686 = vld [vmem:[%s618 + $0x104] sm:$0xf]
                  %687 = vst [vmem:[%s619 + $0x84] sm:$0xf] %v686
                  %v688 = vld [vmem:[%s618 + $0x108] sm:$0xf]
                  %689 = vst [vmem:[%s619 + $0x88] sm:$0xf] %v688
                  %v690 = vld [vmem:[%s618 + $0x10c] sm:$0xf]
                  %691 = vst [vmem:[%s619 + $0x8c] sm:$0xf] %v690
                  %v692 = vld [vmem:[%s618 + $0x110] sm:$0xf]
                  %693 = vst [vmem:[%s619 + $0x90] sm:$0xf] %v692
                  %v694 = vld [vmem:[%s618 + $0x114] sm:$0xf]
                  %695 = vst [vmem:[%s619 + $0x94] sm:$0xf] %v694
                  %v696 = vld [vmem:[%s618 + $0x118] sm:$0xf]
                  %697 = vst [vmem:[%s619 + $0x98] sm:$0xf] %v696
                  %v698 = vld [vmem:[%s618 + $0x11c] sm:$0xf]
                  %699 = vst [vmem:[%s619 + $0x9c] sm:$0xf] %v698
                  %v700 = vld [vmem:[%s618 + $0x120] sm:$0xf]
                  %701 = vst [vmem:[%s619 + $0xa0] sm:$0xf] %v700
                  %v702 = vld [vmem:[%s618 + $0x124] sm:$0xf]
                  %703 = vst [vmem:[%s619 + $0xa4] sm:$0xf] %v702
                  %v704 = vld [vmem:[%s618 + $0x128] sm:$0xf]
                  %705 = vst [vmem:[%s619 + $0xa8] sm:$0xf] %v704
                  %v706 = vld [vmem:[%s618 + $0x12c] sm:$0xf]
                  %707 = vst [vmem:[%s619 + $0xac] sm:$0xf] %v706
                  %v708 = vld [vmem:[%s618 + $0x130] sm:$0xf]
                  %709 = vst [vmem:[%s619 + $0xb0] sm:$0xf] %v708
                  %v710 = vld [vmem:[%s618 + $0x134] sm:$0xf]
                  %711 = vst [vmem:[%s619 + $0xb4] sm:$0xf] %v710
                  %v712 = vld [vmem:[%s618 + $0x138] sm:$0xf]
                  %713 = vst [vmem:[%s619 + $0xb8] sm:$0xf] %v712
                  %v714 = vld [vmem:[%s618 + $0x13c] sm:$0xf]
                  %715 = vst [vmem:[%s619 + $0xbc] sm:$0xf] %v714
                  %v716 = vld [vmem:[%s618 + $0x180] sm:$0xf]
                  %717 = vst [vmem:[%s619 + $0xc0] sm:$0xf] %v716
                  %v718 = vld [vmem:[%s618 + $0x184] sm:$0xf]
                  %719 = vst [vmem:[%s619 + $0xc4] sm:$0xf] %v718
                  %v720 = vld [vmem:[%s618 + $0x188] sm:$0xf]
                  %721 = vst [vmem:[%s619 + $0xc8] sm:$0xf] %v720
                  %v722 = vld [vmem:[%s618 + $0x18c] sm:$0xf]
                  %723 = vst [vmem:[%s619 + $0xcc] sm:$0xf] %v722
                  %v724 = vld [vmem:[%s618 + $0x190] sm:$0xf]
                  %725 = vst [vmem:[%s619 + $0xd0] sm:$0xf] %v724
                  %v726 = vld [vmem:[%s618 + $0x194] sm:$0xf]
                  %727 = vst [vmem:[%s619 + $0xd4] sm:$0xf] %v726
                  %v728 = vld [vmem:[%s618 + $0x198] sm:$0xf]
                  %729 = vst [vmem:[%s619 + $0xd8] sm:$0xf] %v728
                  %v730 = vld [vmem:[%s618 + $0x19c] sm:$0xf]
                  %731 = vst [vmem:[%s619 + $0xdc] sm:$0xf] %v730
                  %v732 = vld [vmem:[%s618 + $0x1a0] sm:$0xf]
                  %733 = vst [vmem:[%s619 + $0xe0] sm:$0xf] %v732
                  %v734 = vld [vmem:[%s618 + $0x1a4] sm:$0xf]
                  %735 = vst [vmem:[%s619 + $0xe4] sm:$0xf] %v734
                  %v736 = vld [vmem:[%s618 + $0x1a8] sm:$0xf]
                  %737 = vst [vmem:[%s619 + $0xe8] sm:$0xf] %v736
                  %v738 = vld [vmem:[%s618 + $0x1ac] sm:$0xf]
                  %739 = vst [vmem:[%s619 + $0xec] sm:$0xf] %v738
                  %v740 = vld [vmem:[%s618 + $0x1b0] sm:$0xf]
                  %741 = vst [vmem:[%s619 + $0xf0] sm:$0xf] %v740
                  %v742 = vld [vmem:[%s618 + $0x1b4] sm:$0xf]
                  %743 = vst [vmem:[%s619 + $0xf4] sm:$0xf] %v742
                  %v744 = vld [vmem:[%s618 + $0x1b8] sm:$0xf]
                  %745 = vst [vmem:[%s619 + $0xf8] sm:$0xf] %v744
                  %v746 = vld [vmem:[%s618 + $0x1bc] sm:$0xf]
                  %747 = vst [vmem:[%s619 + $0xfc] sm:$0xf] %v746
                $region103: #{transformer_block.1} parent=90 // loop_footer
                  %s617 = sadd.s32 1, %s613
                $region104: #{transformer_block.1} parent=90 // loop_footer_branch
                  %612 = sbr.rel target = $region100
                $region105: #{transformer_block.1} parent=90 // loop_exit
                  _
              $region91: #{transformer_block.1} parent=75 // pred_fallthru
                _
            $region76: #{transformer_block.1} parent=71 // pred_fallthru
              _
            // Predicated region
            $region77: #{transformer_block.1} parent=71 // pred_check
              _
            $region78: #{transformer_block.1} parent=71 // pred_check_branch
              %463 = sbr.rel (0) target = $region80
            $region79: #{transformer_block.1} parent=71 // pred_region
              loop: start=0, step=1, limit=1
              $region81: #{transformer_block.1} parent=79 // loop_pre_header
                _
              $region82: #{transformer_block.1} parent=79 // loop_header
                %s466 = sphi 0, %s470
                %p467 = scmp.ge.s32.totalorder %s466, 1
                %s471 = sphi %s457, %s457
                %s472 = sphi %s452, %s452
              $region83: #{transformer_block.1} parent=79 // loop_header_branch
                %469 = sbr.rel (%p467) target = $region87
              $region84: #{transformer_block.1} parent=79 // loop_body
                %v473 = vld [vmem:[%s471] sm:$0xf]
                %474 = vst [vmem:[%s472] sm:$0xf] %v473
                %v475 = vld [vmem:[%s471 + $0x4] sm:$0xf]
                %476 = vst [vmem:[%s472 + $0x4] sm:$0xf] %v475
                %v477 = vld [vmem:[%s471 + $0x8] sm:$0xf]
                %478 = vst [vmem:[%s472 + $0x8] sm:$0xf] %v477
                %v479 = vld [vmem:[%s471 + $0xc] sm:$0xf]
                %480 = vst [vmem:[%s472 + $0xc] sm:$0xf] %v479
                %v481 = vld [vmem:[%s471 + $0x10] sm:$0xf]
                %482 = vst [vmem:[%s472 + $0x10] sm:$0xf] %v481
                %v483 = vld [vmem:[%s471 + $0x14] sm:$0xf]
                %484 = vst [vmem:[%s472 + $0x14] sm:$0xf] %v483
                %v485 = vld [vmem:[%s471 + $0x18] sm:$0xf]
                %486 = vst [vmem:[%s472 + $0x18] sm:$0xf] %v485
                %v487 = vld [vmem:[%s471 + $0x1c] sm:$0xf]
                %488 = vst [vmem:[%s472 + $0x1c] sm:$0xf] %v487
                %v489 = vld [vmem:[%s471 + $0x20] sm:$0xf]
                %490 = vst [vmem:[%s472 + $0x20] sm:$0xf] %v489
                %v491 = vld [vmem:[%s471 + $0x24] sm:$0xf]
                %492 = vst [vmem:[%s472 + $0x24] sm:$0xf] %v491
                %v493 = vld [vmem:[%s471 + $0x28] sm:$0xf]
                %494 = vst [vmem:[%s472 + $0x28] sm:$0xf] %v493
                %v495 = vld [vmem:[%s471 + $0x2c] sm:$0xf]
                %496 = vst [vmem:[%s472 + $0x2c] sm:$0xf] %v495
                %v497 = vld [vmem:[%s471 + $0x30] sm:$0xf]
                %498 = vst [vmem:[%s472 + $0x30] sm:$0xf] %v497
                %v499 = vld [vmem:[%s471 + $0x34] sm:$0xf]
                %500 = vst [vmem:[%s472 + $0x34] sm:$0xf] %v499
                %v501 = vld [vmem:[%s471 + $0x38] sm:$0xf]
                %502 = vst [vmem:[%s472 + $0x38] sm:$0xf] %v501
                %v503 = vld [vmem:[%s471 + $0x3c] sm:$0xf]
                %504 = vst [vmem:[%s472 + $0x3c] sm:$0xf] %v503
                %v505 = vld [vmem:[%s471 + $0x80] sm:$0xf]
                %506 = vst [vmem:[%s472 + $0x40] sm:$0xf] %v505
                %v507 = vld [vmem:[%s471 + $0x84] sm:$0xf]
                %508 = vst [vmem:[%s472 + $0x44] sm:$0xf] %v507
                %v509 = vld [vmem:[%s471 + $0x88] sm:$0xf]
                %510 = vst [vmem:[%s472 + $0x48] sm:$0xf] %v509
                %v511 = vld [vmem:[%s471 + $0x8c] sm:$0xf]
                %512 = vst [vmem:[%s472 + $0x4c] sm:$0xf] %v511
                %v513 = vld [vmem:[%s471 + $0x90] sm:$0xf]
                %514 = vst [vmem:[%s472 + $0x50] sm:$0xf] %v513
                %v515 = vld [vmem:[%s471 + $0x94] sm:$0xf]
                %516 = vst [vmem:[%s472 + $0x54] sm:$0xf] %v515
                %v517 = vld [vmem:[%s471 + $0x98] sm:$0xf]
                %518 = vst [vmem:[%s472 + $0x58] sm:$0xf] %v517
                %v519 = vld [vmem:[%s471 + $0x9c] sm:$0xf]
                %520 = vst [vmem:[%s472 + $0x5c] sm:$0xf] %v519
                %v521 = vld [vmem:[%s471 + $0xa0] sm:$0xf]
                %522 = vst [vmem:[%s472 + $0x60] sm:$0xf] %v521
                %v523 = vld [vmem:[%s471 + $0xa4] sm:$0xf]
                %524 = vst [vmem:[%s472 + $0x64] sm:$0xf] %v523
                %v525 = vld [vmem:[%s471 + $0xa8] sm:$0xf]
                %526 = vst [vmem:[%s472 + $0x68] sm:$0xf] %v525
                %v527 = vld [vmem:[%s471 + $0xac] sm:$0xf]
                %528 = vst [vmem:[%s472 + $0x6c] sm:$0xf] %v527
                %v529 = vld [vmem:[%s471 + $0xb0] sm:$0xf]
                %530 = vst [vmem:[%s472 + $0x70] sm:$0xf] %v529
                %v531 = vld [vmem:[%s471 + $0xb4] sm:$0xf]
                %532 = vst [vmem:[%s472 + $0x74] sm:$0xf] %v531
                %v533 = vld [vmem:[%s471 + $0xb8] sm:$0xf]
                %534 = vst [vmem:[%s472 + $0x78] sm:$0xf] %v533
                %v535 = vld [vmem:[%s471 + $0xbc] sm:$0xf]
                %536 = vst [vmem:[%s472 + $0x7c] sm:$0xf] %v535
                %v537 = vld [vmem:[%s471 + $0x100] sm:$0xf]
                %538 = vst [vmem:[%s472 + $0x80] sm:$0xf] %v537
                %v539 = vld [vmem:[%s471 + $0x104] sm:$0xf]
                %540 = vst [vmem:[%s472 + $0x84] sm:$0xf] %v539
                %v541 = vld [vmem:[%s471 + $0x108] sm:$0xf]
                %542 = vst [vmem:[%s472 + $0x88] sm:$0xf] %v541
                %v543 = vld [vmem:[%s471 + $0x10c] sm:$0xf]
                %544 = vst [vmem:[%s472 + $0x8c] sm:$0xf] %v543
                %v545 = vld [vmem:[%s471 + $0x110] sm:$0xf]
                %546 = vst [vmem:[%s472 + $0x90] sm:$0xf] %v545
                %v547 = vld [vmem:[%s471 + $0x114] sm:$0xf]
                %548 = vst [vmem:[%s472 + $0x94] sm:$0xf] %v547
                %v549 = vld [vmem:[%s471 + $0x118] sm:$0xf]
                %550 = vst [vmem:[%s472 + $0x98] sm:$0xf] %v549
                %v551 = vld [vmem:[%s471 + $0x11c] sm:$0xf]
                %552 = vst [vmem:[%s472 + $0x9c] sm:$0xf] %v551
                %v553 = vld [vmem:[%s471 + $0x120] sm:$0xf]
                %554 = vst [vmem:[%s472 + $0xa0] sm:$0xf] %v553
                %v555 = vld [vmem:[%s471 + $0x124] sm:$0xf]
                %556 = vst [vmem:[%s472 + $0xa4] sm:$0xf] %v555
                %v557 = vld [vmem:[%s471 + $0x128] sm:$0xf]
                %558 = vst [vmem:[%s472 + $0xa8] sm:$0xf] %v557
                %v559 = vld [vmem:[%s471 + $0x12c] sm:$0xf]
                %560 = vst [vmem:[%s472 + $0xac] sm:$0xf] %v559
                %v561 = vld [vmem:[%s471 + $0x130] sm:$0xf]
                %562 = vst [vmem:[%s472 + $0xb0] sm:$0xf] %v561
                %v563 = vld [vmem:[%s471 + $0x134] sm:$0xf]
                %564 = vst [vmem:[%s472 + $0xb4] sm:$0xf] %v563
                %v565 = vld [vmem:[%s471 + $0x138] sm:$0xf]
                %566 = vst [vmem:[%s472 + $0xb8] sm:$0xf] %v565
                %v567 = vld [vmem:[%s471 + $0x13c] sm:$0xf]
                %568 = vst [vmem:[%s472 + $0xbc] sm:$0xf] %v567
                %v569 = vld [vmem:[%s471 + $0x180] sm:$0xf]
                %570 = vst [vmem:[%s472 + $0xc0] sm:$0xf] %v569
                %v571 = vld [vmem:[%s471 + $0x184] sm:$0xf]
                %572 = vst [vmem:[%s472 + $0xc4] sm:$0xf] %v571
                %v573 = vld [vmem:[%s471 + $0x188] sm:$0xf]
                %574 = vst [vmem:[%s472 + $0xc8] sm:$0xf] %v573
                %v575 = vld [vmem:[%s471 + $0x18c] sm:$0xf]
                %576 = vst [vmem:[%s472 + $0xcc] sm:$0xf] %v575
                %v577 = vld [vmem:[%s471 + $0x190] sm:$0xf]
                %578 = vst [vmem:[%s472 + $0xd0] sm:$0xf] %v577
                %v579 = vld [vmem:[%s471 + $0x194] sm:$0xf]
                %580 = vst [vmem:[%s472 + $0xd4] sm:$0xf] %v579
                %v581 = vld [vmem:[%s471 + $0x198] sm:$0xf]
                %582 = vst [vmem:[%s472 + $0xd8] sm:$0xf] %v581
                %v583 = vld [vmem:[%s471 + $0x19c] sm:$0xf]
                %584 = vst [vmem:[%s472 + $0xdc] sm:$0xf] %v583
                %v585 = vld [vmem:[%s471 + $0x1a0] sm:$0xf]
                %586 = vst [vmem:[%s472 + $0xe0] sm:$0xf] %v585
                %v587 = vld [vmem:[%s471 + $0x1a4] sm:$0xf]
                %588 = vst [vmem:[%s472 + $0xe4] sm:$0xf] %v587
                %v589 = vld [vmem:[%s471 + $0x1a8] sm:$0xf]
                %590 = vst [vmem:[%s472 + $0xe8] sm:$0xf] %v589
                %v591 = vld [vmem:[%s471 + $0x1ac] sm:$0xf]
                %592 = vst [vmem:[%s472 + $0xec] sm:$0xf] %v591
                %v593 = vld [vmem:[%s471 + $0x1b0] sm:$0xf]
                %594 = vst [vmem:[%s472 + $0xf0] sm:$0xf] %v593
                %v595 = vld [vmem:[%s471 + $0x1b4] sm:$0xf]
                %596 = vst [vmem:[%s472 + $0xf4] sm:$0xf] %v595
                %v597 = vld [vmem:[%s471 + $0x1b8] sm:$0xf]
                %598 = vst [vmem:[%s472 + $0xf8] sm:$0xf] %v597
                %v599 = vld [vmem:[%s471 + $0x1bc] sm:$0xf]
                %600 = vst [vmem:[%s472 + $0xfc] sm:$0xf] %v599
              $region85: #{transformer_block.1} parent=79 // loop_footer
                %s470 = sadd.s32 1, %s466
              $region86: #{transformer_block.1} parent=79 // loop_footer_branch
                %465 = sbr.rel target = $region82
              $region87: #{transformer_block.1} parent=79 // loop_exit
                _
            $region80: #{transformer_block.1} parent=71 // pred_fallthru
              _
          $region72: #{transformer_block.1} parent=67 // pred_fallthru
            _
          %748 = vnop
        $region68: #{transformer_block.1} parent=55 // pred_fallthru
          _
        // Predicated region
        $region106: #{transformer_block.1} parent=55 // pred_check
          %p749 = pneg %p137
        $region107: #{transformer_block.1} parent=55 // pred_check_branch
          %751 = sbr.rel (%p749) target = $region109
        $region108: #{transformer_block.1} parent=55 // pred_region
          %s752 = smul.u32 16, %s31
          %p753 = scmp.lt.s32.totalorder %s30, 1
          %s754 = scalar_select %p753, %s30, 1
          %p755 = scmp.lt.s32.totalorder %s752, 31
          %s756 = scalar_select %p755, %s752, 31
          %s757 = smul.addr %s754, 32
          %s758 = sadd.s32 %s756, %s757
          %s759 = smul.addr %s758, 8
          %s760 = scalar_lea.vmem %s3, %s759
          %s761 = smul.u32 16, %s31
        $region109: #{transformer_block.1} parent=55 // pred_fallthru
          _
      $region56: #{transformer_block.1} parent=5 // pred_fallthru
        _
      %p762 = scmp.le.s32.totalorder 1, %s23
      %p763 = scmp.lt.s32.totalorder %s23, 5
      %p764 = pnand %p762, %p763
      %p765 = pneg %p764
      // Predicated region
      $region110: #{transformer_block.1} parent=5 // pred_check
        _
      $region111: #{transformer_block.1} parent=5 // pred_check_branch
        %767 = sbr.rel (%p764) target = $region113
      $region112: #{transformer_block.1} parent=5 // pred_region
        %s768 = ssub.s32 %s23, 1
        %s769 = sand.u32 %s102, 1
        %s770 = sand.u32 %s102, 1
        %s771 = smul.addr %s770, 256
        %s772 = scalar_lea.vmem [#allocation2], %s771
        // Predicated region
        $region114: #{transformer_block.1} parent=112 // pred_check
          %p773 = pneg %p115
        $region115: #{transformer_block.1} parent=112 // pred_check_branch
          %775 = sbr.rel (%p773) target = $region117
        $region116: #{transformer_block.1} parent=112 // pred_region
          _
        $region117: #{transformer_block.1} parent=112 // pred_fallthru
          _
        %p776 = scmp.lt.s32.totalorder %s32, 1
        %s777 = scalar_select %p776, %s32, 1
        %s778 = smul.addr %s777, 128
        %s779 = smul.addr %s778, 4
        %s780 = scalar_lea.vmem %s0, %s779
        %p781 = pneg %p61
        %p782 = pneg %p58
        %p783 = scmp.lt.s32.totalorder %s32, 1
        %s784 = scalar_select %p783, %s32, 1
        %s785 = smul.addr %s784, 128
        %s786 = smul.addr %s785, 4
        %s787 = scalar_lea.vmem %s1, %s786
        %p788 = pneg %p87
        %p789 = pneg %p84
        %s790 = sand.u32 %s102, 1
        %s791 = sand.u32 %s102, 1
        %s792 = smul.addr %s791, 256
        %s793 = scalar_lea.vmem [#allocation2], %s792
        %p794 = pneg %p115
        %p795 = pneg %p112
        %s796 = smul.u32 16, %s33
        %p797 = scmp.lt.s32.totalorder %s32, 1
        %s798 = scalar_select %p797, %s32, 1
        %p799 = scmp.lt.s32.totalorder %s796, 31
        %s800 = scalar_select %p799, %s796, 31
        %s801 = smul.addr %s798, 32
        %s802 = sadd.s32 %s800, %s801
        %s803 = smul.addr %s802, 8
        %s804 = scalar_lea.vmem %s3, %s803
        %p805 = pneg %p143
        %p806 = pneg %p140
        %p807 = pneg %p164
        %p808 = pneg %p161
        %p809 = pneg %p185
        %p810 = pneg %p182
        %p811 = pneg %p206
        %p812 = pneg %p203
        %p813 = pneg %p227
        %p814 = pneg %p224
        %p815 = pneg %p248
        %p816 = pneg %p245
        %p817 = pneg %p269
        %p818 = pneg %p266
        %p819 = pneg %p290
        %p820 = pneg %p287
        %p821 = pneg %p311
        %p822 = pneg %p308
        %p823 = pneg %p332
        %p824 = pneg %p329
        %p825 = pneg %p353
        %p826 = pneg %p350
        %p827 = pneg %p381
        %p828 = pneg %p378
        %s829 = sand.u32 %s368, 1
        %s830 = scalar_lea.sflag [#allocation4], %s829
        %s831 = sand.u32 %s368, 1
        %s832 = smul.addr %s831, 128
        %s833 = scalar_lea.vmem [#allocation3], %s832
        %p834 = scmp.lt.s32.totalorder %s32, 1
        %s835 = scalar_select %p834, %s32, 1
        %s836 = smul.addr %s835, 128
        %s837 = smul.addr %s836, 4
        %s838 = scalar_lea.vmem %s0, %s837
        %p839 = scmp.lt.s32.totalorder %s32, 1
        %s840 = scalar_select %p839, %s32, 1
        %s841 = smul.addr %s840, 128
        %s842 = smul.addr %s841, 4
        %s843 = scalar_lea.vmem %s1, %s842
        %s844 = smul.u32 16, %s33
        %s845 = smul.u32 16, %s33
        %p846 = scmp.lt.s32.totalorder %s32, 1
        %s847 = scalar_select %p846, %s32, 1
        %p848 = scmp.lt.s32.totalorder %s845, 31
        %s849 = scalar_select %p848, %s845, 31
        %s850 = smul.addr %s847, 32
        %s851 = sadd.s32 %s849, %s850
        %s852 = smul.addr %s851, 8
        %s853 = scalar_lea.vmem %s3, %s852
        %s854 = smul.u32 16, %s33
        %s855 = smul.u32 16, %s33
        %v857 = vld [vmem:[%s772] sm:$0xf]
        %v858 = vld [vmem:[%s772 + $0x4] sm:$0xf]
        %v859 = vld [vmem:[%s772 + $0x8] sm:$0xf]
        %v860 = vld [vmem:[%s772 + $0xc] sm:$0xf]
        %v861 = vld [vmem:[%s772 + $0x10] sm:$0xf]
        %v862 = vld [vmem:[%s772 + $0x14] sm:$0xf]
        %v863 = vld [vmem:[%s772 + $0x18] sm:$0xf]
        %v864 = vld [vmem:[%s772 + $0x1c] sm:$0xf]
        %v865 = vld [vmem:[%s772 + $0x20] sm:$0xf]
        %v866 = vld [vmem:[%s772 + $0x24] sm:$0xf]
        %v867 = vld [vmem:[%s772 + $0x28] sm:$0xf]
        %v868 = vld [vmem:[%s772 + $0x2c] sm:$0xf]
        %v869 = vld [vmem:[%s772 + $0x30] sm:$0xf]
        %v870 = vld [vmem:[%s772 + $0x34] sm:$0xf]
        %v871 = vld [vmem:[%s772 + $0x38] sm:$0xf]
        %v872 = vld [vmem:[%s772 + $0x3c] sm:$0xf]
        %v873 = vld [vmem:[%s772 + $0x40] sm:$0xf]
        %v874 = vld [vmem:[%s772 + $0x44] sm:$0xf]
        %v875 = vld [vmem:[%s772 + $0x48] sm:$0xf]
        %v876 = vld [vmem:[%s772 + $0x4c] sm:$0xf]
        %v877 = vld [vmem:[%s772 + $0x50] sm:$0xf]
        %v878 = vld [vmem:[%s772 + $0x54] sm:$0xf]
        %v879 = vld [vmem:[%s772 + $0x58] sm:$0xf]
        %v880 = vld [vmem:[%s772 + $0x5c] sm:$0xf]
        %v881 = vld [vmem:[%s772 + $0x60] sm:$0xf]
        %v882 = vld [vmem:[%s772 + $0x64] sm:$0xf]
        %v883 = vld [vmem:[%s772 + $0x68] sm:$0xf]
        %v884 = vld [vmem:[%s772 + $0x6c] sm:$0xf]
        %v885 = vld [vmem:[%s772 + $0x70] sm:$0xf]
        %v886 = vld [vmem:[%s772 + $0x74] sm:$0xf]
        %v887 = vld [vmem:[%s772 + $0x78] sm:$0xf]
        %v888 = vld [vmem:[%s772 + $0x7c] sm:$0xf]
        %v889 = vld [vmem:[%s772 + $0x80] sm:$0xf]
        %v890 = vld [vmem:[%s772 + $0x84] sm:$0xf]
        %v891 = vld [vmem:[%s772 + $0x88] sm:$0xf]
        %v892 = vld [vmem:[%s772 + $0x8c] sm:$0xf]
        %v893 = vld [vmem:[%s772 + $0x90] sm:$0xf]
        %v894 = vld [vmem:[%s772 + $0x94] sm:$0xf]
        %v895 = vld [vmem:[%s772 + $0x98] sm:$0xf]
        %v896 = vld [vmem:[%s772 + $0x9c] sm:$0xf]
        %v897 = vld [vmem:[%s772 + $0xa0] sm:$0xf]
        %v898 = vld [vmem:[%s772 + $0xa4] sm:$0xf]
        %v899 = vld [vmem:[%s772 + $0xa8] sm:$0xf]
        %v900 = vld [vmem:[%s772 + $0xac] sm:$0xf]
        %v901 = vld [vmem:[%s772 + $0xb0] sm:$0xf]
        %v902 = vld [vmem:[%s772 + $0xb4] sm:$0xf]
        %v903 = vld [vmem:[%s772 + $0xb8] sm:$0xf]
        %v904 = vld [vmem:[%s772 + $0xbc] sm:$0xf]
        %v905 = vld [vmem:[%s772 + $0xc0] sm:$0xf]
        %v906 = vld [vmem:[%s772 + $0xc4] sm:$0xf]
        %v907 = vld [vmem:[%s772 + $0xc8] sm:$0xf]
        %v908 = vld [vmem:[%s772 + $0xcc] sm:$0xf]
        %v909 = vld [vmem:[%s772 + $0xd0] sm:$0xf]
        %v910 = vld [vmem:[%s772 + $0xd4] sm:$0xf]
        %v911 = vld [vmem:[%s772 + $0xd8] sm:$0xf]
        %v912 = vld [vmem:[%s772 + $0xdc] sm:$0xf]
        %v913 = vld [vmem:[%s772 + $0xe0] sm:$0xf]
        %v914 = vld [vmem:[%s772 + $0xe4] sm:$0xf]
        %v915 = vld [vmem:[%s772 + $0xe8] sm:$0xf]
        %v916 = vld [vmem:[%s772 + $0xec] sm:$0xf]
        %v917 = vld [vmem:[%s772 + $0xf0] sm:$0xf]
        %v918 = vld [vmem:[%s772 + $0xf4] sm:$0xf]
        %v919 = vld [vmem:[%s772 + $0xf8] sm:$0xf]
        %v920 = vld [vmem:[%s772 + $0xfc] sm:$0xf]
        %v921 = vld [vmem:[%s843] sm:$0xf]
        %v922 = vld [vmem:[%s843 + $0x4] sm:$0xf]
        %v923 = vld [vmem:[%s843 + $0x8] sm:$0xf]
        %v924 = vld [vmem:[%s843 + $0xc] sm:$0xf]
        %v925 = vld [vmem:[%s843 + $0x10] sm:$0xf]
        %v926 = vld [vmem:[%s843 + $0x14] sm:$0xf]
        %v927 = vld [vmem:[%s843 + $0x18] sm:$0xf]
        %v928 = vld [vmem:[%s843 + $0x1c] sm:$0xf]
        %v929 = vld [vmem:[%s843 + $0x20] sm:$0xf]
        %v930 = vld [vmem:[%s843 + $0x24] sm:$0xf]
        %v931 = vld [vmem:[%s843 + $0x28] sm:$0xf]
        %v932 = vld [vmem:[%s843 + $0x2c] sm:$0xf]
        %v933 = vld [vmem:[%s843 + $0x30] sm:$0xf]
        %v934 = vld [vmem:[%s843 + $0x34] sm:$0xf]
        %v935 = vld [vmem:[%s843 + $0x38] sm:$0xf]
        %v936 = vld [vmem:[%s843 + $0x3c] sm:$0xf]
        %v937 = vld [vmem:[%s843 + $0x40] sm:$0xf]
        %v938 = vld [vmem:[%s843 + $0x44] sm:$0xf]
        %v939 = vld [vmem:[%s843 + $0x48] sm:$0xf]
        %v940 = vld [vmem:[%s843 + $0x4c] sm:$0xf]
        %v941 = vld [vmem:[%s843 + $0x50] sm:$0xf]
        %v942 = vld [vmem:[%s843 + $0x54] sm:$0xf]
        %v943 = vld [vmem:[%s843 + $0x58] sm:$0xf]
        %v944 = vld [vmem:[%s843 + $0x5c] sm:$0xf]
        %v945 = vld [vmem:[%s843 + $0x60] sm:$0xf]
        %v946 = vld [vmem:[%s843 + $0x64] sm:$0xf]
        %v947 = vld [vmem:[%s843 + $0x68] sm:$0xf]
        %v948 = vld [vmem:[%s843 + $0x6c] sm:$0xf]
        %v949 = vld [vmem:[%s843 + $0x70] sm:$0xf]
        %v950 = vld [vmem:[%s843 + $0x74] sm:$0xf]
        %v951 = vld [vmem:[%s843 + $0x78] sm:$0xf]
        %v952 = vld [vmem:[%s843 + $0x7c] sm:$0xf]
        %v953 = vld [vmem:[%s843 + $0x80] sm:$0xf]
        %v954 = vld [vmem:[%s843 + $0x84] sm:$0xf]
        %v955 = vld [vmem:[%s843 + $0x88] sm:$0xf]
        %v956 = vld [vmem:[%s843 + $0x8c] sm:$0xf]
        %v957 = vld [vmem:[%s843 + $0x90] sm:$0xf]
        %v958 = vld [vmem:[%s843 + $0x94] sm:$0xf]
        %v959 = vld [vmem:[%s843 + $0x98] sm:$0xf]
        %v960 = vld [vmem:[%s843 + $0x9c] sm:$0xf]
        %v961 = vld [vmem:[%s843 + $0xa0] sm:$0xf]
        %v962 = vld [vmem:[%s843 + $0xa4] sm:$0xf]
        %v963 = vld [vmem:[%s843 + $0xa8] sm:$0xf]
        %v964 = vld [vmem:[%s843 + $0xac] sm:$0xf]
        %v965 = vld [vmem:[%s843 + $0xb0] sm:$0xf]
        %v966 = vld [vmem:[%s843 + $0xb4] sm:$0xf]
        %v967 = vld [vmem:[%s843 + $0xb8] sm:$0xf]
        %v968 = vld [vmem:[%s843 + $0xbc] sm:$0xf]
        %v969 = vld [vmem:[%s843 + $0xc0] sm:$0xf]
        %v970 = vld [vmem:[%s843 + $0xc4] sm:$0xf]
        %v971 = vld [vmem:[%s843 + $0xc8] sm:$0xf]
        %v972 = vld [vmem:[%s843 + $0xcc] sm:$0xf]
        %v973 = vld [vmem:[%s843 + $0xd0] sm:$0xf]
        %v974 = vld [vmem:[%s843 + $0xd4] sm:$0xf]
        %v975 = vld [vmem:[%s843 + $0xd8] sm:$0xf]
        %v976 = vld [vmem:[%s843 + $0xdc] sm:$0xf]
        %v977 = vld [vmem:[%s843 + $0xe0] sm:$0xf]
        %v978 = vld [vmem:[%s843 + $0xe4] sm:$0xf]
        %v979 = vld [vmem:[%s843 + $0xe8] sm:$0xf]
        %v980 = vld [vmem:[%s843 + $0xec] sm:$0xf]
        %v981 = vld [vmem:[%s843 + $0xf0] sm:$0xf]
        %v982 = vld [vmem:[%s843 + $0xf4] sm:$0xf]
        %v983 = vld [vmem:[%s843 + $0xf8] sm:$0xf]
        %v984 = vld [vmem:[%s843 + $0xfc] sm:$0xf]
        %v985 = vld [vmem:[%s843 + $0x100] sm:$0xf]
        %v986 = vld [vmem:[%s843 + $0x104] sm:$0xf]
        %v987 = vld [vmem:[%s843 + $0x108] sm:$0xf]
        %v988 = vld [vmem:[%s843 + $0x10c] sm:$0xf]
        %v989 = vld [vmem:[%s843 + $0x110] sm:$0xf]
        %v990 = vld [vmem:[%s843 + $0x114] sm:$0xf]
        %v991 = vld [vmem:[%s843 + $0x118] sm:$0xf]
        %v992 = vld [vmem:[%s843 + $0x11c] sm:$0xf]
        %v993 = vld [vmem:[%s843 + $0x120] sm:$0xf]
        %v994 = vld [vmem:[%s843 + $0x124] sm:$0xf]
        %v995 = vld [vmem:[%s843 + $0x128] sm:$0xf]
        %v996 = vld [vmem:[%s843 + $0x12c] sm:$0xf]
        %v997 = vld [vmem:[%s843 + $0x130] sm:$0xf]
        %v998 = vld [vmem:[%s843 + $0x134] sm:$0xf]
        %v999 = vld [vmem:[%s843 + $0x138] sm:$0xf]
        %v1000 = vld [vmem:[%s843 + $0x13c] sm:$0xf]
        %v1001 = vld [vmem:[%s843 + $0x140] sm:$0xf]
        %v1002 = vld [vmem:[%s843 + $0x144] sm:$0xf]
        %v1003 = vld [vmem:[%s843 + $0x148] sm:$0xf]
        %v1004 = vld [vmem:[%s843 + $0x14c] sm:$0xf]
        %v1005 = vld [vmem:[%s843 + $0x150] sm:$0xf]
        %v1006 = vld [vmem:[%s843 + $0x154] sm:$0xf]
        %v1007 = vld [vmem:[%s843 + $0x158] sm:$0xf]
        %v1008 = vld [vmem:[%s843 + $0x15c] sm:$0xf]
        %v1009 = vld [vmem:[%s843 + $0x160] sm:$0xf]
        %v1010 = vld [vmem:[%s843 + $0x164] sm:$0xf]
        %v1011 = vld [vmem:[%s843 + $0x168] sm:$0xf]
        %v1012 = vld [vmem:[%s843 + $0x16c] sm:$0xf]
        %v1013 = vld [vmem:[%s843 + $0x170] sm:$0xf]
        %v1014 = vld [vmem:[%s843 + $0x174] sm:$0xf]
        %v1015 = vld [vmem:[%s843 + $0x178] sm:$0xf]
        %v1016 = vld [vmem:[%s843 + $0x17c] sm:$0xf]
        %v1017 = vld [vmem:[%s843 + $0x180] sm:$0xf]
        %v1018 = vld [vmem:[%s843 + $0x184] sm:$0xf]
        %v1019 = vld [vmem:[%s843 + $0x188] sm:$0xf]
        %v1020 = vld [vmem:[%s843 + $0x18c] sm:$0xf]
        %v1021 = vld [vmem:[%s843 + $0x190] sm:$0xf]
        %v1022 = vld [vmem:[%s843 + $0x194] sm:$0xf]
        %v1023 = vld [vmem:[%s843 + $0x198] sm:$0xf]
        %v1024 = vld [vmem:[%s843 + $0x19c] sm:$0xf]
        %v1025 = vld [vmem:[%s843 + $0x1a0] sm:$0xf]
        %v1026 = vld [vmem:[%s843 + $0x1a4] sm:$0xf]
        %v1027 = vld [vmem:[%s843 + $0x1a8] sm:$0xf]
        %v1028 = vld [vmem:[%s843 + $0x1ac] sm:$0xf]
        %v1029 = vld [vmem:[%s843 + $0x1b0] sm:$0xf]
        %v1030 = vld [vmem:[%s843 + $0x1b4] sm:$0xf]
        %v1031 = vld [vmem:[%s843 + $0x1b8] sm:$0xf]
        %v1032 = vld [vmem:[%s843 + $0x1bc] sm:$0xf]
        %v1033 = vld [vmem:[%s843 + $0x1c0] sm:$0xf]
        %v1034 = vld [vmem:[%s843 + $0x1c4] sm:$0xf]
        %v1035 = vld [vmem:[%s843 + $0x1c8] sm:$0xf]
        %v1036 = vld [vmem:[%s843 + $0x1cc] sm:$0xf]
        %v1037 = vld [vmem:[%s843 + $0x1d0] sm:$0xf]
        %v1038 = vld [vmem:[%s843 + $0x1d4] sm:$0xf]
        %v1039 = vld [vmem:[%s843 + $0x1d8] sm:$0xf]
        %v1040 = vld [vmem:[%s843 + $0x1dc] sm:$0xf]
        %v1041 = vld [vmem:[%s843 + $0x1e0] sm:$0xf]
        %v1042 = vld [vmem:[%s843 + $0x1e4] sm:$0xf]
        %v1043 = vld [vmem:[%s843 + $0x1e8] sm:$0xf]
        %v1044 = vld [vmem:[%s843 + $0x1ec] sm:$0xf]
        %v1045 = vld [vmem:[%s843 + $0x1f0] sm:$0xf]
        %v1046 = vld [vmem:[%s843 + $0x1f4] sm:$0xf]
        %v1047 = vld [vmem:[%s843 + $0x1f8] sm:$0xf]
        %v1048 = vld [vmem:[%s843 + $0x1fc] sm:$0xf]
        %v1049 = vld [vmem:[%s838] sm:$0xf]
        %v1050 = vld [vmem:[%s838 + $0x4] sm:$0xf]
        %v1051 = vld [vmem:[%s838 + $0x8] sm:$0xf]
        %v1052 = vld [vmem:[%s838 + $0xc] sm:$0xf]
        %v1053 = vld [vmem:[%s838 + $0x10] sm:$0xf]
        %v1054 = vld [vmem:[%s838 + $0x14] sm:$0xf]
        %v1055 = vld [vmem:[%s838 + $0x18] sm:$0xf]
        %v1056 = vld [vmem:[%s838 + $0x1c] sm:$0xf]
        %v1057 = vld [vmem:[%s838 + $0x20] sm:$0xf]
        %v1058 = vld [vmem:[%s838 + $0x24] sm:$0xf]
        %v1059 = vld [vmem:[%s838 + $0x28] sm:$0xf]
        %v1060 = vld [vmem:[%s838 + $0x2c] sm:$0xf]
        %v1061 = vld [vmem:[%s838 + $0x30] sm:$0xf]
        %v1062 = vld [vmem:[%s838 + $0x34] sm:$0xf]
        %v1063 = vld [vmem:[%s838 + $0x38] sm:$0xf]
        %v1064 = vld [vmem:[%s838 + $0x3c] sm:$0xf]
        %v1065 = vld [vmem:[%s838 + $0x40] sm:$0xf]
        %v1066 = vld [vmem:[%s838 + $0x44] sm:$0xf]
        %v1067 = vld [vmem:[%s838 + $0x48] sm:$0xf]
        %v1068 = vld [vmem:[%s838 + $0x4c] sm:$0xf]
        %v1069 = vld [vmem:[%s838 + $0x50] sm:$0xf]
        %v1070 = vld [vmem:[%s838 + $0x54] sm:$0xf]
        %v1071 = vld [vmem:[%s838 + $0x58] sm:$0xf]
        %v1072 = vld [vmem:[%s838 + $0x5c] sm:$0xf]
        %v1073 = vld [vmem:[%s838 + $0x60] sm:$0xf]
        %v1074 = vld [vmem:[%s838 + $0x64] sm:$0xf]
        %v1075 = vld [vmem:[%s838 + $0x68] sm:$0xf]
        %v1076 = vld [vmem:[%s838 + $0x6c] sm:$0xf]
        %v1077 = vld [vmem:[%s838 + $0x70] sm:$0xf]
        %v1078 = vld [vmem:[%s838 + $0x74] sm:$0xf]
        %v1079 = vld [vmem:[%s838 + $0x78] sm:$0xf]
        %v1080 = vld [vmem:[%s838 + $0x7c] sm:$0xf]
        %v1081 = vld [vmem:[%s838 + $0x80] sm:$0xf]
        %v1082 = vld [vmem:[%s838 + $0x84] sm:$0xf]
        %v1083 = vld [vmem:[%s838 + $0x88] sm:$0xf]
        %v1084 = vld [vmem:[%s838 + $0x8c] sm:$0xf]
        %v1085 = vld [vmem:[%s838 + $0x90] sm:$0xf]
        %v1086 = vld [vmem:[%s838 + $0x94] sm:$0xf]
        %v1087 = vld [vmem:[%s838 + $0x98] sm:$0xf]
        %v1088 = vld [vmem:[%s838 + $0x9c] sm:$0xf]
        %v1089 = vld [vmem:[%s838 + $0xa0] sm:$0xf]
        %v1090 = vld [vmem:[%s838 + $0xa4] sm:$0xf]
        %v1091 = vld [vmem:[%s838 + $0xa8] sm:$0xf]
        %v1092 = vld [vmem:[%s838 + $0xac] sm:$0xf]
        %v1093 = vld [vmem:[%s838 + $0xb0] sm:$0xf]
        %v1094 = vld [vmem:[%s838 + $0xb4] sm:$0xf]
        %v1095 = vld [vmem:[%s838 + $0xb8] sm:$0xf]
        %v1096 = vld [vmem:[%s838 + $0xbc] sm:$0xf]
        %v1097 = vld [vmem:[%s838 + $0xc0] sm:$0xf]
        %v1098 = vld [vmem:[%s838 + $0xc4] sm:$0xf]
        %v1099 = vld [vmem:[%s838 + $0xc8] sm:$0xf]
        %v1100 = vld [vmem:[%s838 + $0xcc] sm:$0xf]
        %v1101 = vld [vmem:[%s838 + $0xd0] sm:$0xf]
        %v1102 = vld [vmem:[%s838 + $0xd4] sm:$0xf]
        %v1103 = vld [vmem:[%s838 + $0xd8] sm:$0xf]
        %v1104 = vld [vmem:[%s838 + $0xdc] sm:$0xf]
        %v1105 = vld [vmem:[%s838 + $0xe0] sm:$0xf]
        %v1106 = vld [vmem:[%s838 + $0xe4] sm:$0xf]
        %v1107 = vld [vmem:[%s838 + $0xe8] sm:$0xf]
        %v1108 = vld [vmem:[%s838 + $0xec] sm:$0xf]
        %v1109 = vld [vmem:[%s838 + $0xf0] sm:$0xf]
        %v1110 = vld [vmem:[%s838 + $0xf4] sm:$0xf]
        %v1111 = vld [vmem:[%s838 + $0xf8] sm:$0xf]
        %v1112 = vld [vmem:[%s838 + $0xfc] sm:$0xf]
        %v1113 = vld [vmem:[%s838 + $0x100] sm:$0xf]
        %v1114 = vld [vmem:[%s838 + $0x104] sm:$0xf]
        %v1115 = vld [vmem:[%s838 + $0x108] sm:$0xf]
        %v1116 = vld [vmem:[%s838 + $0x10c] sm:$0xf]
        %v1117 = vld [vmem:[%s838 + $0x110] sm:$0xf]
        %v1118 = vld [vmem:[%s838 + $0x114] sm:$0xf]
        %v1119 = vld [vmem:[%s838 + $0x118] sm:$0xf]
        %v1120 = vld [vmem:[%s838 + $0x11c] sm:$0xf]
        %v1121 = vld [vmem:[%s838 + $0x120] sm:$0xf]
        %v1122 = vld [vmem:[%s838 + $0x124] sm:$0xf]
        %v1123 = vld [vmem:[%s838 + $0x128] sm:$0xf]
        %v1124 = vld [vmem:[%s838 + $0x12c] sm:$0xf]
        %v1125 = vld [vmem:[%s838 + $0x130] sm:$0xf]
        %v1126 = vld [vmem:[%s838 + $0x134] sm:$0xf]
        %v1127 = vld [vmem:[%s838 + $0x138] sm:$0xf]
        %v1128 = vld [vmem:[%s838 + $0x13c] sm:$0xf]
        %v1129 = vld [vmem:[%s838 + $0x140] sm:$0xf]
        %v1130 = vld [vmem:[%s838 + $0x144] sm:$0xf]
        %v1131 = vld [vmem:[%s838 + $0x148] sm:$0xf]
        %v1132 = vld [vmem:[%s838 + $0x14c] sm:$0xf]
        %v1133 = vld [vmem:[%s838 + $0x150] sm:$0xf]
        %v1134 = vld [vmem:[%s838 + $0x154] sm:$0xf]
        %v1135 = vld [vmem:[%s838 + $0x158] sm:$0xf]
        %v1136 = vld [vmem:[%s838 + $0x15c] sm:$0xf]
        %v1137 = vld [vmem:[%s838 + $0x160] sm:$0xf]
        %v1138 = vld [vmem:[%s838 + $0x164] sm:$0xf]
        %v1139 = vld [vmem:[%s838 + $0x168] sm:$0xf]
        %v1140 = vld [vmem:[%s838 + $0x16c] sm:$0xf]
        %v1141 = vld [vmem:[%s838 + $0x170] sm:$0xf]
        %v1142 = vld [vmem:[%s838 + $0x174] sm:$0xf]
        %v1143 = vld [vmem:[%s838 + $0x178] sm:$0xf]
        %v1144 = vld [vmem:[%s838 + $0x17c] sm:$0xf]
        %v1145 = vld [vmem:[%s838 + $0x180] sm:$0xf]
        %v1146 = vld [vmem:[%s838 + $0x184] sm:$0xf]
        %v1147 = vld [vmem:[%s838 + $0x188] sm:$0xf]
        %v1148 = vld [vmem:[%s838 + $0x18c] sm:$0xf]
        %v1149 = vld [vmem:[%s838 + $0x190] sm:$0xf]
        %v1150 = vld [vmem:[%s838 + $0x194] sm:$0xf]
        %v1151 = vld [vmem:[%s838 + $0x198] sm:$0xf]
        %v1152 = vld [vmem:[%s838 + $0x19c] sm:$0xf]
        %v1153 = vld [vmem:[%s838 + $0x1a0] sm:$0xf]
        %v1154 = vld [vmem:[%s838 + $0x1a4] sm:$0xf]
        %v1155 = vld [vmem:[%s838 + $0x1a8] sm:$0xf]
        %v1156 = vld [vmem:[%s838 + $0x1ac] sm:$0xf]
        %v1157 = vld [vmem:[%s838 + $0x1b0] sm:$0xf]
        %v1158 = vld [vmem:[%s838 + $0x1b4] sm:$0xf]
        %v1159 = vld [vmem:[%s838 + $0x1b8] sm:$0xf]
        %v1160 = vld [vmem:[%s838 + $0x1bc] sm:$0xf]
        %v1161 = vld [vmem:[%s838 + $0x1c0] sm:$0xf]
        %v1162 = vld [vmem:[%s838 + $0x1c4] sm:$0xf]
        %v1163 = vld [vmem:[%s838 + $0x1c8] sm:$0xf]
        %v1164 = vld [vmem:[%s838 + $0x1cc] sm:$0xf]
        %v1165 = vld [vmem:[%s838 + $0x1d0] sm:$0xf]
        %v1166 = vld [vmem:[%s838 + $0x1d4] sm:$0xf]
        %v1167 = vld [vmem:[%s838 + $0x1d8] sm:$0xf]
        %v1168 = vld [vmem:[%s838 + $0x1dc] sm:$0xf]
        %v1169 = vld [vmem:[%s838 + $0x1e0] sm:$0xf]
        %v1170 = vld [vmem:[%s838 + $0x1e4] sm:$0xf]
        %v1171 = vld [vmem:[%s838 + $0x1e8] sm:$0xf]
        %v1172 = vld [vmem:[%s838 + $0x1ec] sm:$0xf]
        %v1173 = vld [vmem:[%s838 + $0x1f0] sm:$0xf]
        %v1174 = vld [vmem:[%s838 + $0x1f4] sm:$0xf]
        %v1175 = vld [vmem:[%s838 + $0x1f8] sm:$0xf]
        %v1176 = vld [vmem:[%s838 + $0x1fc] sm:$0xf]
        %v1193 = vunpack.c.l.b16 %v857
        %v1194 = vunpack.c.l.b16 %v858
        %v1195 = vunpack.c.l.b16 %v859
        %v1196 = vunpack.c.l.b16 %v860
        %v1197 = vunpack.c.l.b16 %v861
        %v1198 = vunpack.c.l.b16 %v862
        %v1199 = vunpack.c.l.b16 %v863
        %v1200 = vunpack.c.l.b16 %v864
        %v1201 = vunpack.c.l.b16 %v865
        %v1202 = vunpack.c.l.b16 %v866
        %v1203 = vunpack.c.l.b16 %v867
        %v1204 = vunpack.c.l.b16 %v868
        %v1205 = vunpack.c.l.b16 %v869
        %v1206 = vunpack.c.l.b16 %v870
        %v1207 = vunpack.c.l.b16 %v871
        %v1208 = vunpack.c.l.b16 %v872
        %v1209 = vpack.c.b16 %v1194, %v1193
        %v1210 = vpack.c.b16 %v1196, %v1195
        %v1211 = vpack.c.b16 %v1198, %v1197
        %v1212 = vpack.c.b16 %v1200, %v1199
        %v1213 = vpack.c.b16 %v1202, %v1201
        %v1214 = vpack.c.b16 %v1204, %v1203
        %v1215 = vpack.c.b16 %v1206, %v1205
        %v1216 = vpack.c.b16 %v1208, %v1207
        %v1249 = vunpack.c.l.b16 %v921
        %v1250 = vunpack.c.l.b16 %v922
        %v1251 = vunpack.c.l.b16 %v923
        %v1252 = vunpack.c.l.b16 %v924
        %v1253 = vunpack.c.l.b16 %v925
        %v1254 = vunpack.c.l.b16 %v926
        %v1255 = vunpack.c.l.b16 %v927
        %v1256 = vunpack.c.l.b16 %v928
        %v1257 = vunpack.c.l.b16 %v929
        %v1258 = vunpack.c.l.b16 %v930
        %v1259 = vunpack.c.l.b16 %v931
        %v1260 = vunpack.c.l.b16 %v932
        %v1261 = vunpack.c.l.b16 %v933
        %v1262 = vunpack.c.l.b16 %v934
        %v1263 = vunpack.c.l.b16 %v935
        %v1264 = vunpack.c.l.b16 %v936
        %v1265 = vunpack.c.l.b16 %v937
        %v1266 = vunpack.c.l.b16 %v938
        %v1267 = vunpack.c.l.b16 %v939
        %v1268 = vunpack.c.l.b16 %v940
        %v1269 = vunpack.c.l.b16 %v941
        %v1270 = vunpack.c.l.b16 %v942
        %v1271 = vunpack.c.l.b16 %v943
        %v1272 = vunpack.c.l.b16 %v944
        %v1273 = vunpack.c.l.b16 %v945
        %v1274 = vunpack.c.l.b16 %v946
        %v1275 = vunpack.c.l.b16 %v947
        %v1276 = vunpack.c.l.b16 %v948
        %v1277 = vunpack.c.l.b16 %v949
        %v1278 = vunpack.c.l.b16 %v950
        %v1279 = vunpack.c.l.b16 %v951
        %v1280 = vunpack.c.l.b16 %v952
        %v1281 = vpack.c.b16 %v1250, %v1249
        %v1282 = vpack.c.b16 %v1252, %v1251
        %v1283 = vpack.c.b16 %v1254, %v1253
        %v1284 = vpack.c.b16 %v1256, %v1255
        %v1285 = vpack.c.b16 %v1258, %v1257
        %v1286 = vpack.c.b16 %v1260, %v1259
        %v1287 = vpack.c.b16 %v1262, %v1261
        %v1288 = vpack.c.b16 %v1264, %v1263
        %v1289 = vpack.c.b16 %v1266, %v1265
        %v1290 = vpack.c.b16 %v1268, %v1267
        %v1291 = vpack.c.b16 %v1270, %v1269
        %v1292 = vpack.c.b16 %v1272, %v1271
        %v1293 = vpack.c.b16 %v1274, %v1273
        %v1294 = vpack.c.b16 %v1276, %v1275
        %v1295 = vpack.c.b16 %v1278, %v1277
        %v1296 = vpack.c.b16 %v1280, %v1279
        %vm1297 = vcmask 261120
        %v1299 = vsel %vm1297, %v1209, 0
        %v1302 = vsel %vm1297, %v1210, 0
        %v1305 = vsel %vm1297, %v1211, 0
        %v1308 = vsel %vm1297, %v1212, 0
        %v1311 = vsel %vm1297, %v1213, 0
        %v1314 = vsel %vm1297, %v1214, 0
        %v1317 = vsel %vm1297, %v1215, 0
        %v1320 = vsel %vm1297, %v1216, 0
        %v1323 = vsel %vm1297, %v1281, 0
        %v1326 = vsel %vm1297, %v1282, 0
        %v1329 = vsel %vm1297, %v1283, 0
        %v1332 = vsel %vm1297, %v1284, 0
        %v1335 = vsel %vm1297, %v1285, 0
        %v1338 = vsel %vm1297, %v1286, 0
        %v1341 = vsel %vm1297, %v1287, 0
        %v1344 = vsel %vm1297, %v1288, 0
        %v1347 = vsel %vm1297, %v1289, 0
        %v1350 = vsel %vm1297, %v1290, 0
        %v1353 = vsel %vm1297, %v1291, 0
        %v1356 = vsel %vm1297, %v1292, 0
        %v1359 = vsel %vm1297, %v1293, 0
        %v1362 = vsel %vm1297, %v1294, 0
        %v1365 = vsel %vm1297, %v1295, 0
        %v1368 = vsel %vm1297, %v1296, 0
        %1370 = vmatprep.subr.bf16.mxu0 0
        %1371 = vmatpush1.bf16.xpose.msra.mxu0 %v1323
        %1372 = vmatprep.subr.bf16.mxu0 0
        %1373 = vmatpush1.bf16.xpose.msra.mxu0 %v1326
        %1374 = vmatprep.subr.bf16.mxu0 0
        %1375 = vmatpush1.bf16.xpose.msra.mxu0 %v1329
        %1376 = vmatprep.subr.bf16.mxu0 0
        %1377 = vmatpush1.bf16.xpose.msra.mxu0 %v1332
        %1378 = vmatprep.subr.bf16.mxu0 0
        %1379 = vmatpush1.bf16.xpose.msra.mxu0 %v1335
        %1380 = vmatprep.subr.bf16.mxu0 0
        %1381 = vmatpush1.bf16.xpose.msra.mxu0 %v1338
        %1382 = vmatprep.subr.bf16.mxu0 0
        %1383 = vmatpush1.bf16.xpose.msra.mxu0 %v1341
        %1384 = vmatprep.subr.bf16.mxu0 0
        %1385 = vmatpush1.bf16.xpose.msra.mxu0 %v1344
        %1386 = vmatprep.subr.bf16.mxu0 0
        %1387 = vmatpush1.bf16.xpose.msra.mxu0 %v1347
        %1388 = vmatprep.subr.bf16.mxu0 0
        %1389 = vmatpush1.bf16.xpose.msra.mxu0 %v1350
        %1390 = vmatprep.subr.bf16.mxu0 0
        %1391 = vmatpush1.bf16.xpose.msra.mxu0 %v1353
        %1392 = vmatprep.subr.bf16.mxu0 0
        %1393 = vmatpush1.bf16.xpose.msra.mxu0 %v1356
        %1394 = vmatprep.subr.bf16.mxu0 0
        %1395 = vmatpush1.bf16.xpose.msra.mxu0 %v1359
        %1396 = vmatprep.subr.bf16.mxu0 0
        %1397 = vmatpush1.bf16.xpose.msra.mxu0 %v1362
        %1398 = vmatprep.subr.bf16.mxu0 0
        %1399 = vmatpush1.bf16.xpose.msra.mxu0 %v1365
        %1400 = vmatprep.subr.bf16.mxu0 0
        %1401 = vmatpush1.bf16.xpose.msra.mxu0 %v1368
        %1402 = vmatprep.mubr.bf16.mxu0 0
        %1403 = vmatmul.mubr.bf16.gmra.mrb[0].mxu0 %v1299
        %v1404 = vpop.f32.mrb[0].mxu0
        %v1405 = vadd.f32 0.0, %v1404
        %v1406 = vpop.f32.mrb[0].mxu0
        %v1407 = vadd.f32 0.0, %v1406
        %v1408 = vpop.f32.mrb[0].mxu0
        %v1409 = vadd.f32 0.0, %v1408
        %v1410 = vpop.f32.mrb[0].mxu0
        %v1411 = vadd.f32 0.0, %v1410
        %1412 = vmatprep.mubr.bf16.mxu0 0
        %1413 = vmatmul.mubr.bf16.gmra.mrb[0].mxu0 %v1302
        %v1414 = vpop.f32.mrb[0].mxu0
        %v1415 = vadd.f32 0.0, %v1414
        %v1416 = vpop.f32.mrb[0].mxu0
        %v1417 = vadd.f32 0.0, %v1416
        %v1418 = vpop.f32.mrb[0].mxu0
        %v1419 = vadd.f32 0.0, %v1418
        %v1420 = vpop.f32.mrb[0].mxu0
        %v1421 = vadd.f32 0.0, %v1420
        %1422 = vmatprep.mubr.bf16.mxu0 0
        %1423 = vmatmul.mubr.bf16.gmra.mrb[0].mxu0 %v1305
        %v1424 = vpop.f32.mrb[0].mxu0
        %v1425 = vadd.f32 0.0, %v1424
        %v1426 = vpop.f32.mrb[0].mxu0
        %v1427 = vadd.f32 0.0, %v1426
        %v1428 = vpop.f32.mrb[0].mxu0
        %v1429 = vadd.f32 0.0, %v1428
        %v1430 = vpop.f32.mrb[0].mxu0
        %v1431 = vadd.f32 0.0, %v1430
        %1432 = vmatprep.mubr.bf16.mxu0 0
        %1433 = vmatmul.mubr.bf16.gmra.mrb[0].mxu0 %v1308
        %v1434 = vpop.f32.mrb[0].mxu0
        %v1435 = vadd.f32 0.0, %v1434
        %v1436 = vpop.f32.mrb[0].mxu0
        %v1437 = vadd.f32 0.0, %v1436
        %v1438 = vpop.f32.mrb[0].mxu0
        %v1439 = vadd.f32 0.0, %v1438
        %v1440 = vpop.f32.mrb[0].mxu0
        %v1441 = vadd.f32 0.0, %v1440
        %1442 = vmatprep.mubr.bf16.mxu0 0
        %1443 = vmatmul.mubr.bf16.gmra.mrb[0].mxu0 %v1311
        %v1444 = vpop.f32.mrb[0].mxu0
        %v1445 = vadd.f32 0.0, %v1444
        %v1446 = vpop.f32.mrb[0].mxu0
        %v1447 = vadd.f32 0.0, %v1446
        %v1448 = vpop.f32.mrb[0].mxu0
        %v1449 = vadd.f32 0.0, %v1448
        %v1450 = vpop.f32.mrb[0].mxu0
        %v1451 = vadd.f32 0.0, %v1450
        %1452 = vmatprep.mubr.bf16.mxu0 0
        %1453 = vmatmul.mubr.bf16.gmra.mrb[0].mxu0 %v1314
        %v1454 = vpop.f32.mrb[0].mxu0
        %v1455 = vadd.f32 0.0, %v1454
        %v1456 = vpop.f32.mrb[0].mxu0
        %v1457 = vadd.f32 0.0, %v1456
        %v1458 = vpop.f32.mrb[0].mxu0
        %v1459 = vadd.f32 0.0, %v1458
        %v1460 = vpop.f32.mrb[0].mxu0
        %v1461 = vadd.f32 0.0, %v1460
        %1462 = vmatprep.mubr.bf16.mxu0 0
        %1463 = vmatmul.mubr.bf16.gmra.mrb[0].mxu0 %v1317
        %v1464 = vpop.f32.mrb[0].mxu0
        %v1465 = vadd.f32 0.0, %v1464
        %v1466 = vpop.f32.mrb[0].mxu0
        %v1467 = vadd.f32 0.0, %v1466
        %v1468 = vpop.f32.mrb[0].mxu0
        %v1469 = vadd.f32 0.0, %v1468
        %v1470 = vpop.f32.mrb[0].mxu0
        %v1471 = vadd.f32 0.0, %v1470
        %1472 = vmatprep.mubr.bf16.mxu0 0
        %1473 = vmatmul.mubr.bf16.gmra.mrb[0].mxu0 %v1320
        %v1474 = vpop.f32.mrb[0].mxu0
        %v1475 = vadd.f32 0.0, %v1474
        %v1476 = vpop.f32.mrb[0].mxu0
        %v1477 = vadd.f32 0.0, %v1476
        %v1478 = vpop.f32.mrb[0].mxu0
        %v1479 = vadd.f32 0.0, %v1478
        %v1480 = vpop.f32.mrb[0].mxu0
        %v1481 = vadd.f32 0.0, %v1480
        %1482 = vdwg.mxu0
        %v1499 = vunpack.c.l.b16 %v873
        %v1500 = vunpack.c.l.b16 %v874
        %v1501 = vunpack.c.l.b16 %v875
        %v1502 = vunpack.c.l.b16 %v876
        %v1503 = vunpack.c.l.b16 %v877
        %v1504 = vunpack.c.l.b16 %v878
        %v1505 = vunpack.c.l.b16 %v879
        %v1506 = vunpack.c.l.b16 %v880
        %v1507 = vunpack.c.l.b16 %v881
        %v1508 = vunpack.c.l.b16 %v882
        %v1509 = vunpack.c.l.b16 %v883
        %v1510 = vunpack.c.l.b16 %v884
        %v1511 = vunpack.c.l.b16 %v885
        %v1512 = vunpack.c.l.b16 %v886
        %v1513 = vunpack.c.l.b16 %v887
        %v1514 = vunpack.c.l.b16 %v888
        %v1515 = vpack.c.b16 %v1500, %v1499
        %v1516 = vpack.c.b16 %v1502, %v1501
        %v1517 = vpack.c.b16 %v1504, %v1503
        %v1518 = vpack.c.b16 %v1506, %v1505
        %v1519 = vpack.c.b16 %v1508, %v1507
        %v1520 = vpack.c.b16 %v1510, %v1509
        %v1521 = vpack.c.b16 %v1512, %v1511
        %v1522 = vpack.c.b16 %v1514, %v1513
        %v1555 = vunpack.c.l.b16 %v953
        %v1556 = vunpack.c.l.b16 %v954
        %v1557 = vunpack.c.l.b16 %v955
        %v1558 = vunpack.c.l.b16 %v956
        %v1559 = vunpack.c.l.b16 %v957
        %v1560 = vunpack.c.l.b16 %v958
        %v1561 = vunpack.c.l.b16 %v959
        %v1562 = vunpack.c.l.b16 %v960
        %v1563 = vunpack.c.l.b16 %v961
        %v1564 = vunpack.c.l.b16 %v962
        %v1565 = vunpack.c.l.b16 %v963
        %v1566 = vunpack.c.l.b16 %v964
        %v1567 = vunpack.c.l.b16 %v965
        %v1568 = vunpack.c.l.b16 %v966
        %v1569 = vunpack.c.l.b16 %v967
        %v1570 = vunpack.c.l.b16 %v968
        %v1571 = vunpack.c.l.b16 %v969
        %v1572 = vunpack.c.l.b16 %v970
        %v1573 = vunpack.c.l.b16 %v971
        %v1574 = vunpack.c.l.b16 %v972
        %v1575 = vunpack.c.l.b16 %v973
        %v1576 = vunpack.c.l.b16 %v974
        %v1577 = vunpack.c.l.b16 %v975
        %v1578 = vunpack.c.l.b16 %v976
        %v1579 = vunpack.c.l.b16 %v977
        %v1580 = vunpack.c.l.b16 %v978
        %v1581 = vunpack.c.l.b16 %v979
        %v1582 = vunpack.c.l.b16 %v980
        %v1583 = vunpack.c.l.b16 %v981
        %v1584 = vunpack.c.l.b16 %v982
        %v1585 = vunpack.c.l.b16 %v983
        %v1586 = vunpack.c.l.b16 %v984
        %v1587 = vpack.c.b16 %v1556, %v1555
        %v1588 = vpack.c.b16 %v1558, %v1557
        %v1589 = vpack.c.b16 %v1560, %v1559
        %v1590 = vpack.c.b16 %v1562, %v1561
        %v1591 = vpack.c.b16 %v1564, %v1563
        %v1592 = vpack.c.b16 %v1566, %v1565
        %v1593 = vpack.c.b16 %v1568, %v1567
        %v1594 = vpack.c.b16 %v1570, %v1569
        %v1595 = vpack.c.b16 %v1572, %v1571
        %v1596 = vpack.c.b16 %v1574, %v1573
        %v1597 = vpack.c.b16 %v1576, %v1575
        %v1598 = vpack.c.b16 %v1578, %v1577
        %v1599 = vpack.c.b16 %v1580, %v1579
        %v1600 = vpack.c.b16 %v1582, %v1581
        %v1601 = vpack.c.b16 %v1584, %v1583
        %v1602 = vpack.c.b16 %v1586, %v1585
        %v1604 = vsel %vm1297, %v1515, 0
        %v1607 = vsel %vm1297, %v1516, 0
        %v1610 = vsel %vm1297, %v1517, 0
        %v1613 = vsel %vm1297, %v1518, 0
        %v1616 = vsel %vm1297, %v1519, 0
        %v1619 = vsel %vm1297, %v1520, 0
        %v1622 = vsel %vm1297, %v1521, 0
        %v1625 = vsel %vm1297, %v1522, 0
        %v1628 = vsel %vm1297, %v1587, 0
        %v1631 = vsel %vm1297, %v1588, 0
        %v1634 = vsel %vm1297, %v1589, 0
        %v1637 = vsel %vm1297, %v1590, 0
        %v1640 = vsel %vm1297, %v1591, 0
        %v1643 = vsel %vm1297, %v1592, 0
        %v1646 = vsel %vm1297, %v1593, 0
        %v1649 = vsel %vm1297, %v1594, 0
        %v1652 = vsel %vm1297, %v1595, 0
        %v1655 = vsel %vm1297, %v1596, 0
        %v1658 = vsel %vm1297, %v1597, 0
        %v1661 = vsel %vm1297, %v1598, 0
        %v1664 = vsel %vm1297, %v1599, 0
        %v1667 = vsel %vm1297, %v1600, 0
        %v1670 = vsel %vm1297, %v1601, 0
        %v1673 = vsel %vm1297, %v1602, 0
        %1675 = vmatprep.subr.bf16.mxu0 0
        %1676 = vmatpush1.bf16.xpose.msra.mxu0 %v1628
        %1677 = vmatprep.subr.bf16.mxu0 0
        %1678 = vmatpush1.bf16.xpose.msra.mxu0 %v1631
        %1679 = vmatprep.subr.bf16.mxu0 0
        %1680 = vmatpush1.bf16.xpose.msra.mxu0 %v1634
        %1681 = vmatprep.subr.bf16.mxu0 0
        %1682 = vmatpush1.bf16.xpose.msra.mxu0 %v1637
        %1683 = vmatprep.subr.bf16.mxu0 0
        %1684 = vmatpush1.bf16.xpose.msra.mxu0 %v1640
        %1685 = vmatprep.subr.bf16.mxu0 0
        %1686 = vmatpush1.bf16.xpose.msra.mxu0 %v1643
        %1687 = vmatprep.subr.bf16.mxu0 0
        %1688 = vmatpush1.bf16.xpose.msra.mxu0 %v1646
        %1689 = vmatprep.subr.bf16.mxu0 0
        %1690 = vmatpush1.bf16.xpose.msra.mxu0 %v1649
        %1691 = vmatprep.subr.bf16.mxu0 0
        %1692 = vmatpush1.bf16.xpose.msra.mxu0 %v1652
        %1693 = vmatprep.subr.bf16.mxu0 0
        %1694 = vmatpush1.bf16.xpose.msra.mxu0 %v1655
        %1695 = vmatprep.subr.bf16.mxu0 0
        %1696 = vmatpush1.bf16.xpose.msra.mxu0 %v1658
        %1697 = vmatprep.subr.bf16.mxu0 0
        %1698 = vmatpush1.bf16.xpose.msra.mxu0 %v1661
        %1699 = vmatprep.subr.bf16.mxu0 0
        %1700 = vmatpush1.bf16.xpose.msra.mxu0 %v1664
        %1701 = vmatprep.subr.bf16.mxu0 0
        %1702 = vmatpush1.bf16.xpose.msra.mxu0 %v1667
        %1703 = vmatprep.subr.bf16.mxu0 0
        %1704 = vmatpush1.bf16.xpose.msra.mxu0 %v1670
        %1705 = vmatprep.subr.bf16.mxu0 0
        %1706 = vmatpush1.bf16.xpose.msra.mxu0 %v1673
        %1707 = vmatprep.mubr.bf16.mxu0 0
        %1708 = vmatmul.mubr.bf16.gmra.mrb[0].mxu0 %v1604
        %v1709 = vpop.f32.mrb[0].mxu0
        %v1710 = vadd.f32 0.0, %v1709
        %v1711 = vpop.f32.mrb[0].mxu0
        %v1712 = vadd.f32 0.0, %v1711
        %v1713 = vpop.f32.mrb[0].mxu0
        %v1714 = vadd.f32 0.0, %v1713
        %v1715 = vpop.f32.mrb[0].mxu0
        %v1716 = vadd.f32 0.0, %v1715
        %1717 = vmatprep.mubr.bf16.mxu0 0
        %1718 = vmatmul.mubr.bf16.gmra.mrb[0].mxu0 %v1607
        %v1719 = vpop.f32.mrb[0].mxu0
        %v1720 = vadd.f32 0.0, %v1719
        %v1721 = vpop.f32.mrb[0].mxu0
        %v1722 = vadd.f32 0.0, %v1721
        %v1723 = vpop.f32.mrb[0].mxu0
        %v1724 = vadd.f32 0.0, %v1723
        %v1725 = vpop.f32.mrb[0].mxu0
        %v1726 = vadd.f32 0.0, %v1725
        %1727 = vmatprep.mubr.bf16.mxu0 0
        %1728 = vmatmul.mubr.bf16.gmra.mrb[0].mxu0 %v1610
        %v1729 = vpop.f32.mrb[0].mxu0
        %v1730 = vadd.f32 0.0, %v1729
        %v1731 = vpop.f32.mrb[0].mxu0
        %v1732 = vadd.f32 0.0, %v1731
        %v1733 = vpop.f32.mrb[0].mxu0
        %v1734 = vadd.f32 0.0, %v1733
        %v1735 = vpop.f32.mrb[0].mxu0
        %v1736 = vadd.f32 0.0, %v1735
        %1737 = vmatprep.mubr.bf16.mxu0 0
        %1738 = vmatmul.mubr.bf16.gmra.mrb[0].mxu0 %v1613
        %v1739 = vpop.f32.mrb[0].mxu0
        %v1740 = vadd.f32 0.0, %v1739
        %v1741 = vpop.f32.mrb[0].mxu0
        %v1742 = vadd.f32 0.0, %v1741
        %v1743 = vpop.f32.mrb[0].mxu0
        %v1744 = vadd.f32 0.0, %v1743
        %v1745 = vpop.f32.mrb[0].mxu0
        %v1746 = vadd.f32 0.0, %v1745
        %1747 = vmatprep.mubr.bf16.mxu0 0
        %1748 = vmatmul.mubr.bf16.gmra.mrb[0].mxu0 %v1616
        %v1749 = vpop.f32.mrb[0].mxu0
        %v1750 = vadd.f32 0.0, %v1749
        %v1751 = vpop.f32.mrb[0].mxu0
        %v1752 = vadd.f32 0.0, %v1751
        %v1753 = vpop.f32.mrb[0].mxu0
        %v1754 = vadd.f32 0.0, %v1753
        %v1755 = vpop.f32.mrb[0].mxu0
        %v1756 = vadd.f32 0.0, %v1755
        %1757 = vmatprep.mubr.bf16.mxu0 0
        %1758 = vmatmul.mubr.bf16.gmra.mrb[0].mxu0 %v1619
        %v1759 = vpop.f32.mrb[0].mxu0
        %v1760 = vadd.f32 0.0, %v1759
        %v1761 = vpop.f32.mrb[0].mxu0
        %v1762 = vadd.f32 0.0, %v1761
        %v1763 = vpop.f32.mrb[0].mxu0
        %v1764 = vadd.f32 0.0, %v1763
        %v1765 = vpop.f32.mrb[0].mxu0
        %v1766 = vadd.f32 0.0, %v1765
        %1767 = vmatprep.mubr.bf16.mxu0 0
        %1768 = vmatmul.mubr.bf16.gmra.mrb[0].mxu0 %v1622
        %v1769 = vpop.f32.mrb[0].mxu0
        %v1770 = vadd.f32 0.0, %v1769
        %v1771 = vpop.f32.mrb[0].mxu0
        %v1772 = vadd.f32 0.0, %v1771
        %v1773 = vpop.f32.mrb[0].mxu0
        %v1774 = vadd.f32 0.0, %v1773
        %v1775 = vpop.f32.mrb[0].mxu0
        %v1776 = vadd.f32 0.0, %v1775
        %1777 = vmatprep.mubr.bf16.mxu0 0
        %1778 = vmatmul.mubr.bf16.gmra.mrb[0].mxu0 %v1625
        %v1779 = vpop.f32.mrb[0].mxu0
        %v1780 = vadd.f32 0.0, %v1779
        %v1781 = vpop.f32.mrb[0].mxu0
        %v1782 = vadd.f32 0.0, %v1781
        %v1783 = vpop.f32.mrb[0].mxu0
        %v1784 = vadd.f32 0.0, %v1783
        %v1785 = vpop.f32.mrb[0].mxu0
        %v1786 = vadd.f32 0.0, %v1785
        %1787 = vdwg.mxu0
        %v1804 = vunpack.c.l.b16 %v889
        %v1805 = vunpack.c.l.b16 %v890
        %v1806 = vunpack.c.l.b16 %v891
        %v1807 = vunpack.c.l.b16 %v892
        %v1808 = vunpack.c.l.b16 %v893
        %v1809 = vunpack.c.l.b16 %v894
        %v1810 = vunpack.c.l.b16 %v895
        %v1811 = vunpack.c.l.b16 %v896
        %v1812 = vunpack.c.l.b16 %v897
        %v1813 = vunpack.c.l.b16 %v898
        %v1814 = vunpack.c.l.b16 %v899
        %v1815 = vunpack.c.l.b16 %v900
        %v1816 = vunpack.c.l.b16 %v901
        %v1817 = vunpack.c.l.b16 %v902
        %v1818 = vunpack.c.l.b16 %v903
        %v1819 = vunpack.c.l.b16 %v904
        %v1820 = vpack.c.b16 %v1805, %v1804
        %v1821 = vpack.c.b16 %v1807, %v1806
        %v1822 = vpack.c.b16 %v1809, %v1808
        %v1823 = vpack.c.b16 %v1811, %v1810
        %v1824 = vpack.c.b16 %v1813, %v1812
        %v1825 = vpack.c.b16 %v1815, %v1814
        %v1826 = vpack.c.b16 %v1817, %v1816
        %v1827 = vpack.c.b16 %v1819, %v1818
        %v1860 = vunpack.c.l.b16 %v985
        %v1861 = vunpack.c.l.b16 %v986
        %v1862 = vunpack.c.l.b16 %v987
        %v1863 = vunpack.c.l.b16 %v988
        %v1864 = vunpack.c.l.b16 %v989
        %v1865 = vunpack.c.l.b16 %v990
        %v1866 = vunpack.c.l.b16 %v991
        %v1867 = vunpack.c.l.b16 %v992
        %v1868 = vunpack.c.l.b16 %v993
        %v1869 = vunpack.c.l.b16 %v994
        %v1870 = vunpack.c.l.b16 %v995
        %v1871 = vunpack.c.l.b16 %v996
        %v1872 = vunpack.c.l.b16 %v997
        %v1873 = vunpack.c.l.b16 %v998
        %v1874 = vunpack.c.l.b16 %v999
        %v1875 = vunpack.c.l.b16 %v1000
        %v1876 = vunpack.c.l.b16 %v1001
        %v1877 = vunpack.c.l.b16 %v1002
        %v1878 = vunpack.c.l.b16 %v1003
        %v1879 = vunpack.c.l.b16 %v1004
        %v1880 = vunpack.c.l.b16 %v1005
        %v1881 = vunpack.c.l.b16 %v1006
        %v1882 = vunpack.c.l.b16 %v1007
        %v1883 = vunpack.c.l.b16 %v1008
        %v1884 = vunpack.c.l.b16 %v1009
        %v1885 = vunpack.c.l.b16 %v1010
        %v1886 = vunpack.c.l.b16 %v1011
        %v1887 = vunpack.c.l.b16 %v1012
        %v1888 = vunpack.c.l.b16 %v1013
        %v1889 = vunpack.c.l.b16 %v1014
        %v1890 = vunpack.c.l.b16 %v1015
        %v1891 = vunpack.c.l.b16 %v1016
        %v1892 = vpack.c.b16 %v1861, %v1860
        %v1893 = vpack.c.b16 %v1863, %v1862
        %v1894 = vpack.c.b16 %v1865, %v1864
        %v1895 = vpack.c.b16 %v1867, %v1866
        %v1896 = vpack.c.b16 %v1869, %v1868
        %v1897 = vpack.c.b16 %v1871, %v1870
        %v1898 = vpack.c.b16 %v1873, %v1872
        %v1899 = vpack.c.b16 %v1875, %v1874
        %v1900 = vpack.c.b16 %v1877, %v1876
        %v1901 = vpack.c.b16 %v1879, %v1878
        %v1902 = vpack.c.b16 %v1881, %v1880
        %v1903 = vpack.c.b16 %v1883, %v1882
        %v1904 = vpack.c.b16 %v1885, %v1884
        %v1905 = vpack.c.b16 %v1887, %v1886
        %v1906 = vpack.c.b16 %v1889, %v1888
        %v1907 = vpack.c.b16 %v1891, %v1890
        %v1909 = vsel %vm1297, %v1820, 0
        %v1912 = vsel %vm1297, %v1821, 0
        %v1915 = vsel %vm1297, %v1822, 0
        %v1918 = vsel %vm1297, %v1823, 0
        %v1921 = vsel %vm1297, %v1824, 0
        %v1924 = vsel %vm1297, %v1825, 0
        %v1927 = vsel %vm1297, %v1826, 0
        %v1930 = vsel %vm1297, %v1827, 0
        %v1933 = vsel %vm1297, %v1892, 0
        %v1936 = vsel %vm1297, %v1893, 0
        %v1939 = vsel %vm1297, %v1894, 0
        %v1942 = vsel %vm1297, %v1895, 0
        %v1945 = vsel %vm1297, %v1896, 0
        %v1948 = vsel %vm1297, %v1897, 0
        %v1951 = vsel %vm1297, %v1898, 0
        %v1954 = vsel %vm1297, %v1899, 0
        %v1957 = vsel %vm1297, %v1900, 0
        %v1960 = vsel %vm1297, %v1901, 0
        %v1963 = vsel %vm1297, %v1902, 0
        %v1966 = vsel %vm1297, %v1903, 0
        %v1969 = vsel %vm1297, %v1904, 0
        %v1972 = vsel %vm1297, %v1905, 0
        %v1975 = vsel %vm1297, %v1906, 0
        %v1978 = vsel %vm1297, %v1907, 0
        %1980 = vmatprep.subr.bf16.mxu0 0
        %1981 = vmatpush1.bf16.xpose.msra.mxu0 %v1933
        %1982 = vmatprep.subr.bf16.mxu0 0
        %1983 = vmatpush1.bf16.xpose.msra.mxu0 %v1936
        %1984 = vmatprep.subr.bf16.mxu0 0
        %1985 = vmatpush1.bf16.xpose.msra.mxu0 %v1939
        %1986 = vmatprep.subr.bf16.mxu0 0
        %1987 = vmatpush1.bf16.xpose.msra.mxu0 %v1942
        %1988 = vmatprep.subr.bf16.mxu0 0
        %1989 = vmatpush1.bf16.xpose.msra.mxu0 %v1945
        %1990 = vmatprep.subr.bf16.mxu0 0
        %1991 = vmatpush1.bf16.xpose.msra.mxu0 %v1948
        %1992 = vmatprep.subr.bf16.mxu0 0
        %1993 = vmatpush1.bf16.xpose.msra.mxu0 %v1951
        %1994 = vmatprep.subr.bf16.mxu0 0
        %1995 = vmatpush1.bf16.xpose.msra.mxu0 %v1954
        %1996 = vmatprep.subr.bf16.mxu0 0
        %1997 = vmatpush1.bf16.xpose.msra.mxu0 %v1957
        %1998 = vmatprep.subr.bf16.mxu0 0
        %1999 = vmatpush1.bf16.xpose.msra.mxu0 %v1960
        %2000 = vmatprep.subr.bf16.mxu0 0
        %2001 = vmatpush1.bf16.xpose.msra.mxu0 %v1963
        %2002 = vmatprep.subr.bf16.mxu0 0
        %2003 = vmatpush1.bf16.xpose.msra.mxu0 %v1966
        %2004 = vmatprep.subr.bf16.mxu0 0
        %2005 = vmatpush1.bf16.xpose.msra.mxu0 %v1969
        %2006 = vmatprep.subr.bf16.mxu0 0
        %2007 = vmatpush1.bf16.xpose.msra.mxu0 %v1972
        %2008 = vmatprep.subr.bf16.mxu0 0
        %2009 = vmatpush1.bf16.xpose.msra.mxu0 %v1975
        %2010 = vmatprep.subr.bf16.mxu0 0
        %2011 = vmatpush1.bf16.xpose.msra.mxu0 %v1978
        %2012 = vmatprep.mubr.bf16.mxu0 0
        %2013 = vmatmul.mubr.bf16.gmra.mrb[0].mxu0 %v1909
        %v2014 = vpop.f32.mrb[0].mxu0
        %v2015 = vadd.f32 0.0, %v2014
        %v2016 = vpop.f32.mrb[0].mxu0
        %v2017 = vadd.f32 0.0, %v2016
        %v2018 = vpop.f32.mrb[0].mxu0
        %v2019 = vadd.f32 0.0, %v2018
        %v2020 = vpop.f32.mrb[0].mxu0
        %v2021 = vadd.f32 0.0, %v2020
        %2022 = vmatprep.mubr.bf16.mxu0 0
        %2023 = vmatmul.mubr.bf16.gmra.mrb[0].mxu0 %v1912
        %v2024 = vpop.f32.mrb[0].mxu0
        %v2025 = vadd.f32 0.0, %v2024
        %v2026 = vpop.f32.mrb[0].mxu0
        %v2027 = vadd.f32 0.0, %v2026
        %v2028 = vpop.f32.mrb[0].mxu0
        %v2029 = vadd.f32 0.0, %v2028
        %v2030 = vpop.f32.mrb[0].mxu0
        %v2031 = vadd.f32 0.0, %v2030
        %2032 = vmatprep.mubr.bf16.mxu0 0
        %2033 = vmatmul.mubr.bf16.gmra.mrb[0].mxu0 %v1915
        %v2034 = vpop.f32.mrb[0].mxu0
        %v2035 = vadd.f32 0.0, %v2034
        %v2036 = vpop.f32.mrb[0].mxu0
        %v2037 = vadd.f32 0.0, %v2036
        %v2038 = vpop.f32.mrb[0].mxu0
        %v2039 = vadd.f32 0.0, %v2038
        %v2040 = vpop.f32.mrb[0].mxu0
        %v2041 = vadd.f32 0.0, %v2040
        %2042 = vmatprep.mubr.bf16.mxu0 0
        %2043 = vmatmul.mubr.bf16.gmra.mrb[0].mxu0 %v1918
        %v2044 = vpop.f32.mrb[0].mxu0
        %v2045 = vadd.f32 0.0, %v2044
        %v2046 = vpop.f32.mrb[0].mxu0
        %v2047 = vadd.f32 0.0, %v2046
        %v2048 = vpop.f32.mrb[0].mxu0
        %v2049 = vadd.f32 0.0, %v2048
        %v2050 = vpop.f32.mrb[0].mxu0
        %v2051 = vadd.f32 0.0, %v2050
        %2052 = vmatprep.mubr.bf16.mxu0 0
        %2053 = vmatmul.mubr.bf16.gmra.mrb[0].mxu0 %v1921
        %v2054 = vpop.f32.mrb[0].mxu0
        %v2055 = vadd.f32 0.0, %v2054
        %v2056 = vpop.f32.mrb[0].mxu0
        %v2057 = vadd.f32 0.0, %v2056
        %v2058 = vpop.f32.mrb[0].mxu0
        %v2059 = vadd.f32 0.0, %v2058
        %v2060 = vpop.f32.mrb[0].mxu0
        %v2061 = vadd.f32 0.0, %v2060
        %2062 = vmatprep.mubr.bf16.mxu0 0
        %2063 = vmatmul.mubr.bf16.gmra.mrb[0].mxu0 %v1924
        %v2064 = vpop.f32.mrb[0].mxu0
        %v2065 = vadd.f32 0.0, %v2064
        %v2066 = vpop.f32.mrb[0].mxu0
        %v2067 = vadd.f32 0.0, %v2066
        %v2068 = vpop.f32.mrb[0].mxu0
        %v2069 = vadd.f32 0.0, %v2068
        %v2070 = vpop.f32.mrb[0].mxu0
        %v2071 = vadd.f32 0.0, %v2070
        %2072 = vmatprep.mubr.bf16.mxu0 0
        %2073 = vmatmul.mubr.bf16.gmra.mrb[0].mxu0 %v1927
        %v2074 = vpop.f32.mrb[0].mxu0
        %v2075 = vadd.f32 0.0, %v2074
        %v2076 = vpop.f32.mrb[0].mxu0
        %v2077 = vadd.f32 0.0, %v2076
        %v2078 = vpop.f32.mrb[0].mxu0
        %v2079 = vadd.f32 0.0, %v2078
        %v2080 = vpop.f32.mrb[0].mxu0
        %v2081 = vadd.f32 0.0, %v2080
        %2082 = vmatprep.mubr.bf16.mxu0 0
        %2083 = vmatmul.mubr.bf16.gmra.mrb[0].mxu0 %v1930
        %v2084 = vpop.f32.mrb[0].mxu0
        %v2085 = vadd.f32 0.0, %v2084
        %v2086 = vpop.f32.mrb[0].mxu0
        %v2087 = vadd.f32 0.0, %v2086
        %v2088 = vpop.f32.mrb[0].mxu0
        %v2089 = vadd.f32 0.0, %v2088
        %v2090 = vpop.f32.mrb[0].mxu0
        %v2091 = vadd.f32 0.0, %v2090
        %2092 = vdwg.mxu0
        %v2109 = vunpack.c.l.b16 %v905
        %v2110 = vunpack.c.l.b16 %v906
        %v2111 = vunpack.c.l.b16 %v907
        %v2112 = vunpack.c.l.b16 %v908
        %v2113 = vunpack.c.l.b16 %v909
        %v2114 = vunpack.c.l.b16 %v910
        %v2115 = vunpack.c.l.b16 %v911
        %v2116 = vunpack.c.l.b16 %v912
        %v2117 = vunpack.c.l.b16 %v913
        %v2118 = vunpack.c.l.b16 %v914
        %v2119 = vunpack.c.l.b16 %v915
        %v2120 = vunpack.c.l.b16 %v916
        %v2121 = vunpack.c.l.b16 %v917
        %v2122 = vunpack.c.l.b16 %v918
        %v2123 = vunpack.c.l.b16 %v919
        %v2124 = vunpack.c.l.b16 %v920
        %v2125 = vpack.c.b16 %v2110, %v2109
        %v2126 = vpack.c.b16 %v2112, %v2111
        %v2127 = vpack.c.b16 %v2114, %v2113
        %v2128 = vpack.c.b16 %v2116, %v2115
        %v2129 = vpack.c.b16 %v2118, %v2117
        %v2130 = vpack.c.b16 %v2120, %v2119
        %v2131 = vpack.c.b16 %v2122, %v2121
        %v2132 = vpack.c.b16 %v2124, %v2123
        %v2165 = vunpack.c.l.b16 %v1017
        %v2166 = vunpack.c.l.b16 %v1018
        %v2167 = vunpack.c.l.b16 %v1019
        %v2168 = vunpack.c.l.b16 %v1020
        %v2169 = vunpack.c.l.b16 %v1021
        %v2170 = vunpack.c.l.b16 %v1022
        %v2171 = vunpack.c.l.b16 %v1023
        %v2172 = vunpack.c.l.b16 %v1024
        %v2173 = vunpack.c.l.b16 %v1025
        %v2174 = vunpack.c.l.b16 %v1026
        %v2175 = vunpack.c.l.b16 %v1027
        %v2176 = vunpack.c.l.b16 %v1028
        %v2177 = vunpack.c.l.b16 %v1029
        %v2178 = vunpack.c.l.b16 %v1030
        %v2179 = vunpack.c.l.b16 %v1031
        %v2180 = vunpack.c.l.b16 %v1032
        %v2181 = vunpack.c.l.b16 %v1033
        %v2182 = vunpack.c.l.b16 %v1034
        %v2183 = vunpack.c.l.b16 %v1035
        %v2184 = vunpack.c.l.b16 %v1036
        %v2185 = vunpack.c.l.b16 %v1037
        %v2186 = vunpack.c.l.b16 %v1038
        %v2187 = vunpack.c.l.b16 %v1039
        %v2188 = vunpack.c.l.b16 %v1040
        %v2189 = vunpack.c.l.b16 %v1041
        %v2190 = vunpack.c.l.b16 %v1042
        %v2191 = vunpack.c.l.b16 %v1043
        %v2192 = vunpack.c.l.b16 %v1044
        %v2193 = vunpack.c.l.b16 %v1045
        %v2194 = vunpack.c.l.b16 %v1046
        %v2195 = vunpack.c.l.b16 %v1047
        %v2196 = vunpack.c.l.b16 %v1048
        %v2197 = vpack.c.b16 %v2166, %v2165
        %v2198 = vpack.c.b16 %v2168, %v2167
        %v2199 = vpack.c.b16 %v2170, %v2169
        %v2200 = vpack.c.b16 %v2172, %v2171
        %v2201 = vpack.c.b16 %v2174, %v2173
        %v2202 = vpack.c.b16 %v2176, %v2175
        %v2203 = vpack.c.b16 %v2178, %v2177
        %v2204 = vpack.c.b16 %v2180, %v2179
        %v2205 = vpack.c.b16 %v2182, %v2181
        %v2206 = vpack.c.b16 %v2184, %v2183
        %v2207 = vpack.c.b16 %v2186, %v2185
        %v2208 = vpack.c.b16 %v2188, %v2187
        %v2209 = vpack.c.b16 %v2190, %v2189
        %v2210 = vpack.c.b16 %v2192, %v2191
        %v2211 = vpack.c.b16 %v2194, %v2193
        %v2212 = vpack.c.b16 %v2196, %v2195
        %v2214 = vsel %vm1297, %v2125, 0
        %v2217 = vsel %vm1297, %v2126, 0
        %v2220 = vsel %vm1297, %v2127, 0
        %v2223 = vsel %vm1297, %v2128, 0
        %v2226 = vsel %vm1297, %v2129, 0
        %v2229 = vsel %vm1297, %v2130, 0
        %v2232 = vsel %vm1297, %v2131, 0
        %v2235 = vsel %vm1297, %v2132, 0
        %v2238 = vsel %vm1297, %v2197, 0
        %v2241 = vsel %vm1297, %v2198, 0
        %v2244 = vsel %vm1297, %v2199, 0
        %v2247 = vsel %vm1297, %v2200, 0
        %v2250 = vsel %vm1297, %v2201, 0
        %v2253 = vsel %vm1297, %v2202, 0
        %v2256 = vsel %vm1297, %v2203, 0
        %v2259 = vsel %vm1297, %v2204, 0
        %v2262 = vsel %vm1297, %v2205, 0
        %v2265 = vsel %vm1297, %v2206, 0
        %v2268 = vsel %vm1297, %v2207, 0
        %v2271 = vsel %vm1297, %v2208, 0
        %v2274 = vsel %vm1297, %v2209, 0
        %v2277 = vsel %vm1297, %v2210, 0
        %v2280 = vsel %vm1297, %v2211, 0
        %v2283 = vsel %vm1297, %v2212, 0
        %2285 = vmatprep.subr.bf16.mxu0 0
        %2286 = vmatpush1.bf16.xpose.msra.mxu0 %v2238
        %2287 = vmatprep.subr.bf16.mxu0 0
        %2288 = vmatpush1.bf16.xpose.msra.mxu0 %v2241
        %2289 = vmatprep.subr.bf16.mxu0 0
        %2290 = vmatpush1.bf16.xpose.msra.mxu0 %v2244
        %2291 = vmatprep.subr.bf16.mxu0 0
        %2292 = vmatpush1.bf16.xpose.msra.mxu0 %v2247
        %2293 = vmatprep.subr.bf16.mxu0 0
        %2294 = vmatpush1.bf16.xpose.msra.mxu0 %v2250
        %2295 = vmatprep.subr.bf16.mxu0 0
        %2296 = vmatpush1.bf16.xpose.msra.mxu0 %v2253
        %2297 = vmatprep.subr.bf16.mxu0 0
        %2298 = vmatpush1.bf16.xpose.msra.mxu0 %v2256
        %2299 = vmatprep.subr.bf16.mxu0 0
        %2300 = vmatpush1.bf16.xpose.msra.mxu0 %v2259
        %2301 = vmatprep.subr.bf16.mxu0 0
        %2302 = vmatpush1.bf16.xpose.msra.mxu0 %v2262
        %2303 = vmatprep.subr.bf16.mxu0 0
        %2304 = vmatpush1.bf16.xpose.msra.mxu0 %v2265
        %2305 = vmatprep.subr.bf16.mxu0 0
        %2306 = vmatpush1.bf16.xpose.msra.mxu0 %v2268
        %2307 = vmatprep.subr.bf16.mxu0 0
        %2308 = vmatpush1.bf16.xpose.msra.mxu0 %v2271
        %2309 = vmatprep.subr.bf16.mxu0 0
        %2310 = vmatpush1.bf16.xpose.msra.mxu0 %v2274
        %2311 = vmatprep.subr.bf16.mxu0 0
        %2312 = vmatpush1.bf16.xpose.msra.mxu0 %v2277
        %2313 = vmatprep.subr.bf16.mxu0 0
        %2314 = vmatpush1.bf16.xpose.msra.mxu0 %v2280
        %2315 = vmatprep.subr.bf16.mxu0 0
        %2316 = vmatpush1.bf16.xpose.msra.mxu0 %v2283
        %2317 = vmatprep.mubr.bf16.mxu0 0
        %2318 = vmatmul.mubr.bf16.gmra.mrb[0].mxu0 %v2214
        %v2319 = vpop.f32.mrb[0].mxu0
        %v2320 = vadd.f32 0.0, %v2319
        %v2321 = vpop.f32.mrb[0].mxu0
        %v2322 = vadd.f32 0.0, %v2321
        %v2323 = vpop.f32.mrb[0].mxu0
        %v2324 = vadd.f32 0.0, %v2323
        %v2325 = vpop.f32.mrb[0].mxu0
        %v2326 = vadd.f32 0.0, %v2325
        %2327 = vmatprep.mubr.bf16.mxu0 0
        %2328 = vmatmul.mubr.bf16.gmra.mrb[0].mxu0 %v2217
        %v2329 = vpop.f32.mrb[0].mxu0
        %v2330 = vadd.f32 0.0, %v2329
        %v2331 = vpop.f32.mrb[0].mxu0
        %v2332 = vadd.f32 0.0, %v2331
        %v2333 = vpop.f32.mrb[0].mxu0
        %v2334 = vadd.f32 0.0, %v2333
        %v2335 = vpop.f32.mrb[0].mxu0
        %v2336 = vadd.f32 0.0, %v2335
        %2337 = vmatprep.mubr.bf16.mxu0 0
        %2338 = vmatmul.mubr.bf16.gmra.mrb[0].mxu0 %v2220
        %v2339 = vpop.f32.mrb[0].mxu0
        %v2340 = vadd.f32 0.0, %v2339
        %v2341 = vpop.f32.mrb[0].mxu0
        %v2342 = vadd.f32 0.0, %v2341
        %v2343 = vpop.f32.mrb[0].mxu0
        %v2344 = vadd.f32 0.0, %v2343
        %v2345 = vpop.f32.mrb[0].mxu0
        %v2346 = vadd.f32 0.0, %v2345
        %2347 = vmatprep.mubr.bf16.mxu0 0
        %2348 = vmatmul.mubr.bf16.gmra.mrb[0].mxu0 %v2223
        %v2349 = vpop.f32.mrb[0].mxu0
        %v2350 = vadd.f32 0.0, %v2349
        %v2351 = vpop.f32.mrb[0].mxu0
        %v2352 = vadd.f32 0.0, %v2351
        %v2353 = vpop.f32.mrb[0].mxu0
        %v2354 = vadd.f32 0.0, %v2353
        %v2355 = vpop.f32.mrb[0].mxu0
        %v2356 = vadd.f32 0.0, %v2355
        %2357 = vmatprep.mubr.bf16.mxu0 0
        %2358 = vmatmul.mubr.bf16.gmra.mrb[0].mxu0 %v2226
        %v2359 = vpop.f32.mrb[0].mxu0
        %v2360 = vadd.f32 0.0, %v2359
        %v2361 = vpop.f32.mrb[0].mxu0
        %v2362 = vadd.f32 0.0, %v2361
        %v2363 = vpop.f32.mrb[0].mxu0
        %v2364 = vadd.f32 0.0, %v2363
        %v2365 = vpop.f32.mrb[0].mxu0
        %v2366 = vadd.f32 0.0, %v2365
        %2367 = vmatprep.mubr.bf16.mxu0 0
        %2368 = vmatmul.mubr.bf16.gmra.mrb[0].mxu0 %v2229
        %v2369 = vpop.f32.mrb[0].mxu0
        %v2370 = vadd.f32 0.0, %v2369
        %v2371 = vpop.f32.mrb[0].mxu0
        %v2372 = vadd.f32 0.0, %v2371
        %v2373 = vpop.f32.mrb[0].mxu0
        %v2374 = vadd.f32 0.0, %v2373
        %v2375 = vpop.f32.mrb[0].mxu0
        %v2376 = vadd.f32 0.0, %v2375
        %2377 = vmatprep.mubr.bf16.mxu0 0
        %2378 = vmatmul.mubr.bf16.gmra.mrb[0].mxu0 %v2232
        %v2379 = vpop.f32.mrb[0].mxu0
        %v2380 = vadd.f32 0.0, %v2379
        %v2381 = vpop.f32.mrb[0].mxu0
        %v2382 = vadd.f32 0.0, %v2381
        %v2383 = vpop.f32.mrb[0].mxu0
        %v2384 = vadd.f32 0.0, %v2383
        %v2385 = vpop.f32.mrb[0].mxu0
        %v2386 = vadd.f32 0.0, %v2385
        %2387 = vmatprep.mubr.bf16.mxu0 0
        %2388 = vmatmul.mubr.bf16.gmra.mrb[0].mxu0 %v2235
        %v2389 = vpop.f32.mrb[0].mxu0
        %v2390 = vadd.f32 0.0, %v2389
        %v2391 = vpop.f32.mrb[0].mxu0
        %v2392 = vadd.f32 0.0, %v2391
        %v2393 = vpop.f32.mrb[0].mxu0
        %v2394 = vadd.f32 0.0, %v2393
        %v2395 = vpop.f32.mrb[0].mxu0
        %v2396 = vadd.f32 0.0, %v2395
        %2397 = vdwg.mxu0
        %v2398 = vmax.f32 %v1405, %v1407
        %2399 = vmax.xlane.f32.xlu0 %v2398
        %v2400 = vpop.xlane.xlu0 %2399
        %v2401 = vmax.f32 %v1409, %v1411
        %2402 = vmax.xlane.f32.xlu0 %v2401
        %v2403 = vpop.xlane.xlu0 %2402
        %v2404 = vmax.f32 %v1415, %v1417
        %2405 = vmax.xlane.f32.xlu0 %v2404
        %v2406 = vpop.xlane.xlu0 %2405
        %v2407 = vmax.f32 %v1419, %v1421
        %2408 = vmax.xlane.f32.xlu0 %v2407
        %v2409 = vpop.xlane.xlu0 %2408
        %v2410 = vmax.f32 %v1425, %v1427
        %2411 = vmax.xlane.f32.xlu0 %v2410
        %v2412 = vpop.xlane.xlu0 %2411
        %v2413 = vmax.f32 %v1429, %v1431
        %2414 = vmax.xlane.f32.xlu0 %v2413
        %v2415 = vpop.xlane.xlu0 %2414
        %v2416 = vmax.f32 %v1435, %v1437
        %2417 = vmax.xlane.f32.xlu0 %v2416
        %v2418 = vpop.xlane.xlu0 %2417
        %v2419 = vmax.f32 %v1439, %v1441
        %2420 = vmax.xlane.f32.xlu0 %v2419
        %v2421 = vpop.xlane.xlu0 %2420
        %v2422 = vmax.f32 %v1445, %v1447
        %2423 = vmax.xlane.f32.xlu0 %v2422
        %v2424 = vpop.xlane.xlu0 %2423
        %v2425 = vmax.f32 %v1449, %v1451
        %2426 = vmax.xlane.f32.xlu0 %v2425
        %v2427 = vpop.xlane.xlu0 %2426
        %v2428 = vmax.f32 %v1455, %v1457
        %2429 = vmax.xlane.f32.xlu0 %v2428
        %v2430 = vpop.xlane.xlu0 %2429
        %v2431 = vmax.f32 %v1459, %v1461
        %2432 = vmax.xlane.f32.xlu0 %v2431
        %v2433 = vpop.xlane.xlu0 %2432
        %v2434 = vmax.f32 %v1465, %v1467
        %2435 = vmax.xlane.f32.xlu0 %v2434
        %v2436 = vpop.xlane.xlu0 %2435
        %v2437 = vmax.f32 %v1469, %v1471
        %2438 = vmax.xlane.f32.xlu0 %v2437
        %v2439 = vpop.xlane.xlu0 %2438
        %v2440 = vmax.f32 %v1475, %v1477
        %2441 = vmax.xlane.f32.xlu0 %v2440
        %v2442 = vpop.xlane.xlu0 %2441
        %v2443 = vmax.f32 %v1479, %v1481
        %2444 = vmax.xlane.f32.xlu0 %v2443
        %v2445 = vpop.xlane.xlu0 %2444
        %v2446 = vmax.f32 %v1710, %v1712
        %2447 = vmax.xlane.f32.xlu0 %v2446
        %v2448 = vpop.xlane.xlu0 %2447
        %v2449 = vmax.f32 %v1714, %v1716
        %2450 = vmax.xlane.f32.xlu0 %v2449
        %v2451 = vpop.xlane.xlu0 %2450
        %v2452 = vmax.f32 %v1720, %v1722
        %2453 = vmax.xlane.f32.xlu0 %v2452
        %v2454 = vpop.xlane.xlu0 %2453
        %v2455 = vmax.f32 %v1724, %v1726
        %2456 = vmax.xlane.f32.xlu0 %v2455
        %v2457 = vpop.xlane.xlu0 %2456
        %v2458 = vmax.f32 %v1730, %v1732
        %2459 = vmax.xlane.f32.xlu0 %v2458
        %v2460 = vpop.xlane.xlu0 %2459
        %v2461 = vmax.f32 %v1734, %v1736
        %2462 = vmax.xlane.f32.xlu0 %v2461
        %v2463 = vpop.xlane.xlu0 %2462
        %v2464 = vmax.f32 %v1740, %v1742
        %2465 = vmax.xlane.f32.xlu0 %v2464
        %v2466 = vpop.xlane.xlu0 %2465
        %v2467 = vmax.f32 %v1744, %v1746
        %2468 = vmax.xlane.f32.xlu0 %v2467
        %v2469 = vpop.xlane.xlu0 %2468
        %v2470 = vmax.f32 %v1750, %v1752
        %2471 = vmax.xlane.f32.xlu0 %v2470
        %v2472 = vpop.xlane.xlu0 %2471
        %v2473 = vmax.f32 %v1754, %v1756
        %2474 = vmax.xlane.f32.xlu0 %v2473
        %v2475 = vpop.xlane.xlu0 %2474
        %v2476 = vmax.f32 %v1760, %v1762
        %2477 = vmax.xlane.f32.xlu0 %v2476
        %v2478 = vpop.xlane.xlu0 %2477
        %v2479 = vmax.f32 %v1764, %v1766
        %2480 = vmax.xlane.f32.xlu0 %v2479
        %v2481 = vpop.xlane.xlu0 %2480
        %v2482 = vmax.f32 %v1770, %v1772
        %2483 = vmax.xlane.f32.xlu0 %v2482
        %v2484 = vpop.xlane.xlu0 %2483
        %v2485 = vmax.f32 %v1774, %v1776
        %2486 = vmax.xlane.f32.xlu0 %v2485
        %v2487 = vpop.xlane.xlu0 %2486
        %v2488 = vmax.f32 %v1780, %v1782
        %2489 = vmax.xlane.f32.xlu0 %v2488
        %v2490 = vpop.xlane.xlu0 %2489
        %v2491 = vmax.f32 %v1784, %v1786
        %2492 = vmax.xlane.f32.xlu0 %v2491
        %v2493 = vpop.xlane.xlu0 %2492
        %v2494 = vmax.f32 %v2015, %v2017
        %2495 = vmax.xlane.f32.xlu0 %v2494
        %v2496 = vpop.xlane.xlu0 %2495
        %v2497 = vmax.f32 %v2019, %v2021
        %2498 = vmax.xlane.f32.xlu0 %v2497
        %v2499 = vpop.xlane.xlu0 %2498
        %v2500 = vmax.f32 %v2025, %v2027
        %2501 = vmax.xlane.f32.xlu0 %v2500
        %v2502 = vpop.xlane.xlu0 %2501
        %v2503 = vmax.f32 %v2029, %v2031
        %2504 = vmax.xlane.f32.xlu0 %v2503
        %v2505 = vpop.xlane.xlu0 %2504
        %v2506 = vmax.f32 %v2035, %v2037
        %2507 = vmax.xlane.f32.xlu0 %v2506
        %v2508 = vpop.xlane.xlu0 %2507
        %v2509 = vmax.f32 %v2039, %v2041
        %2510 = vmax.xlane.f32.xlu0 %v2509
        %v2511 = vpop.xlane.xlu0 %2510
        %v2512 = vmax.f32 %v2045, %v2047
        %2513 = vmax.xlane.f32.xlu0 %v2512
        %v2514 = vpop.xlane.xlu0 %2513
        %v2515 = vmax.f32 %v2049, %v2051
        %2516 = vmax.xlane.f32.xlu0 %v2515
        %v2517 = vpop.xlane.xlu0 %2516
        %v2518 = vmax.f32 %v2055, %v2057
        %2519 = vmax.xlane.f32.xlu0 %v2518
        %v2520 = vpop.xlane.xlu0 %2519
        %v2521 = vmax.f32 %v2059, %v2061
        %2522 = vmax.xlane.f32.xlu0 %v2521
        %v2523 = vpop.xlane.xlu0 %2522
        %v2524 = vmax.f32 %v2065, %v2067
        %2525 = vmax.xlane.f32.xlu0 %v2524
        %v2526 = vpop.xlane.xlu0 %2525
        %v2527 = vmax.f32 %v2069, %v2071
        %2528 = vmax.xlane.f32.xlu0 %v2527
        %v2529 = vpop.xlane.xlu0 %2528
        %v2530 = vmax.f32 %v2075, %v2077
        %2531 = vmax.xlane.f32.xlu0 %v2530
        %v2532 = vpop.xlane.xlu0 %2531
        %v2533 = vmax.f32 %v2079, %v2081
        %2534 = vmax.xlane.f32.xlu0 %v2533
        %v2535 = vpop.xlane.xlu0 %2534
        %v2536 = vmax.f32 %v2085, %v2087
        %2537 = vmax.xlane.f32.xlu0 %v2536
        %v2538 = vpop.xlane.xlu0 %2537
        %v2539 = vmax.f32 %v2089, %v2091
        %2540 = vmax.xlane.f32.xlu0 %v2539
        %v2541 = vpop.xlane.xlu0 %2540
        %v2542 = vmax.f32 %v2320, %v2322
        %2543 = vmax.xlane.f32.xlu0 %v2542
        %v2544 = vpop.xlane.xlu0 %2543
        %v2545 = vmax.f32 %v2324, %v2326
        %2546 = vmax.xlane.f32.xlu0 %v2545
        %v2547 = vpop.xlane.xlu0 %2546
        %v2548 = vmax.f32 %v2330, %v2332
        %2549 = vmax.xlane.f32.xlu0 %v2548
        %v2550 = vpop.xlane.xlu0 %2549
        %v2551 = vmax.f32 %v2334, %v2336
        %2552 = vmax.xlane.f32.xlu0 %v2551
        %v2553 = vpop.xlane.xlu0 %2552
        %v2554 = vmax.f32 %v2340, %v2342
        %2555 = vmax.xlane.f32.xlu0 %v2554
        %v2556 = vpop.xlane.xlu0 %2555
        %v2557 = vmax.f32 %v2344, %v2346
        %2558 = vmax.xlane.f32.xlu0 %v2557
        %v2559 = vpop.xlane.xlu0 %2558
        %v2560 = vmax.f32 %v2350, %v2352
        %2561 = vmax.xlane.f32.xlu0 %v2560
        %v2562 = vpop.xlane.xlu0 %2561
        %v2563 = vmax.f32 %v2354, %v2356
        %2564 = vmax.xlane.f32.xlu0 %v2563
        %v2565 = vpop.xlane.xlu0 %2564
        %v2566 = vmax.f32 %v2360, %v2362
        %2567 = vmax.xlane.f32.xlu0 %v2566
        %v2568 = vpop.xlane.xlu0 %2567
        %v2569 = vmax.f32 %v2364, %v2366
        %2570 = vmax.xlane.f32.xlu0 %v2569
        %v2571 = vpop.xlane.xlu0 %2570
        %v2572 = vmax.f32 %v2370, %v2372
        %2573 = vmax.xlane.f32.xlu0 %v2572
        %v2574 = vpop.xlane.xlu0 %2573
        %v2575 = vmax.f32 %v2374, %v2376
        %2576 = vmax.xlane.f32.xlu0 %v2575
        %v2577 = vpop.xlane.xlu0 %2576
        %v2578 = vmax.f32 %v2380, %v2382
        %2579 = vmax.xlane.f32.xlu0 %v2578
        %v2580 = vpop.xlane.xlu0 %2579
        %v2581 = vmax.f32 %v2384, %v2386
        %2582 = vmax.xlane.f32.xlu0 %v2581
        %v2583 = vpop.xlane.xlu0 %2582
        %v2584 = vmax.f32 %v2390, %v2392
        %2585 = vmax.xlane.f32.xlu0 %v2584
        %v2586 = vpop.xlane.xlu0 %2585
        %v2587 = vmax.f32 %v2394, %v2396
        %2588 = vmax.xlane.f32.xlu0 %v2587
        %v2589 = vpop.xlane.xlu0 %2588
        %v2590 = vsub.f32 %v1405, %v2400
        %v2591 = vsub.f32 %v1407, %v2400
        %v2592 = vsub.f32 %v1409, %v2403
        %v2593 = vsub.f32 %v1411, %v2403
        %v2594 = vsub.f32 %v1415, %v2406
        %v2595 = vsub.f32 %v1417, %v2406
        %v2596 = vsub.f32 %v1419, %v2409
        %v2597 = vsub.f32 %v1421, %v2409
        %v2598 = vsub.f32 %v1425, %v2412
        %v2599 = vsub.f32 %v1427, %v2412
        %v2600 = vsub.f32 %v1429, %v2415
        %v2601 = vsub.f32 %v1431, %v2415
        %v2602 = vsub.f32 %v1435, %v2418
        %v2603 = vsub.f32 %v1437, %v2418
        %v2604 = vsub.f32 %v1439, %v2421
        %v2605 = vsub.f32 %v1441, %v2421
        %v2606 = vsub.f32 %v1445, %v2424
        %v2607 = vsub.f32 %v1447, %v2424
        %v2608 = vsub.f32 %v1449, %v2427
        %v2609 = vsub.f32 %v1451, %v2427
        %v2610 = vsub.f32 %v1455, %v2430
        %v2611 = vsub.f32 %v1457, %v2430
        %v2612 = vsub.f32 %v1459, %v2433
        %v2613 = vsub.f32 %v1461, %v2433
        %v2614 = vsub.f32 %v1465, %v2436
        %v2615 = vsub.f32 %v1467, %v2436
        %v2616 = vsub.f32 %v1469, %v2439
        %v2617 = vsub.f32 %v1471, %v2439
        %v2618 = vsub.f32 %v1475, %v2442
        %v2619 = vsub.f32 %v1477, %v2442
        %v2620 = vsub.f32 %v1479, %v2445
        %v2621 = vsub.f32 %v1481, %v2445
        %v2622 = vsub.f32 %v1710, %v2448
        %v2623 = vsub.f32 %v1712, %v2448
        %v2624 = vsub.f32 %v1714, %v2451
        %v2625 = vsub.f32 %v1716, %v2451
        %v2626 = vsub.f32 %v1720, %v2454
        %v2627 = vsub.f32 %v1722, %v2454
        %v2628 = vsub.f32 %v1724, %v2457
        %v2629 = vsub.f32 %v1726, %v2457
        %v2630 = vsub.f32 %v1730, %v2460
        %v2631 = vsub.f32 %v1732, %v2460
        %v2632 = vsub.f32 %v1734, %v2463
        %v2633 = vsub.f32 %v1736, %v2463
        %v2634 = vsub.f32 %v1740, %v2466
        %v2635 = vsub.f32 %v1742, %v2466
        %v2636 = vsub.f32 %v1744, %v2469
        %v2637 = vsub.f32 %v1746, %v2469
        %v2638 = vsub.f32 %v1750, %v2472
        %v2639 = vsub.f32 %v1752, %v2472
        %v2640 = vsub.f32 %v1754, %v2475
        %v2641 = vsub.f32 %v1756, %v2475
        %v2642 = vsub.f32 %v1760, %v2478
        %v2643 = vsub.f32 %v1762, %v2478
        %v2644 = vsub.f32 %v1764, %v2481
        %v2645 = vsub.f32 %v1766, %v2481
        %v2646 = vsub.f32 %v1770, %v2484
        %v2647 = vsub.f32 %v1772, %v2484
        %v2648 = vsub.f32 %v1774, %v2487
        %v2649 = vsub.f32 %v1776, %v2487
        %v2650 = vsub.f32 %v1780, %v2490
        %v2651 = vsub.f32 %v1782, %v2490
        %v2652 = vsub.f32 %v1784, %v2493
        %v2653 = vsub.f32 %v1786, %v2493
        %v2654 = vsub.f32 %v2015, %v2496
        %v2655 = vsub.f32 %v2017, %v2496
        %v2656 = vsub.f32 %v2019, %v2499
        %v2657 = vsub.f32 %v2021, %v2499
        %v2658 = vsub.f32 %v2025, %v2502
        %v2659 = vsub.f32 %v2027, %v2502
        %v2660 = vsub.f32 %v2029, %v2505
        %v2661 = vsub.f32 %v2031, %v2505
        %v2662 = vsub.f32 %v2035, %v2508
        %v2663 = vsub.f32 %v2037, %v2508
        %v2664 = vsub.f32 %v2039, %v2511
        %v2665 = vsub.f32 %v2041, %v2511
        %v2666 = vsub.f32 %v2045, %v2514
        %v2667 = vsub.f32 %v2047, %v2514
        %v2668 = vsub.f32 %v2049, %v2517
        %v2669 = vsub.f32 %v2051, %v2517
        %v2670 = vsub.f32 %v2055, %v2520
        %v2671 = vsub.f32 %v2057, %v2520
        %v2672 = vsub.f32 %v2059, %v2523
        %v2673 = vsub.f32 %v2061, %v2523
        %v2674 = vsub.f32 %v2065, %v2526
        %v2675 = vsub.f32 %v2067, %v2526
        %v2676 = vsub.f32 %v2069, %v2529
        %v2677 = vsub.f32 %v2071, %v2529
        %v2678 = vsub.f32 %v2075, %v2532
        %v2679 = vsub.f32 %v2077, %v2532
        %v2680 = vsub.f32 %v2079, %v2535
        %v2681 = vsub.f32 %v2081, %v2535
        %v2682 = vsub.f32 %v2085, %v2538
        %v2683 = vsub.f32 %v2087, %v2538
        %v2684 = vsub.f32 %v2089, %v2541
        %v2685 = vsub.f32 %v2091, %v2541
        %v2686 = vsub.f32 %v2320, %v2544
        %v2687 = vsub.f32 %v2322, %v2544
        %v2688 = vsub.f32 %v2324, %v2547
        %v2689 = vsub.f32 %v2326, %v2547
        %v2690 = vsub.f32 %v2330, %v2550
        %v2691 = vsub.f32 %v2332, %v2550
        %v2692 = vsub.f32 %v2334, %v2553
        %v2693 = vsub.f32 %v2336, %v2553
        %v2694 = vsub.f32 %v2340, %v2556
        %v2695 = vsub.f32 %v2342, %v2556
        %v2696 = vsub.f32 %v2344, %v2559
        %v2697 = vsub.f32 %v2346, %v2559
        %v2698 = vsub.f32 %v2350, %v2562
        %v2699 = vsub.f32 %v2352, %v2562
        %v2700 = vsub.f32 %v2354, %v2565
        %v2701 = vsub.f32 %v2356, %v2565
        %v2702 = vsub.f32 %v2360, %v2568
        %v2703 = vsub.f32 %v2362, %v2568
        %v2704 = vsub.f32 %v2364, %v2571
        %v2705 = vsub.f32 %v2366, %v2571
        %v2706 = vsub.f32 %v2370, %v2574
        %v2707 = vsub.f32 %v2372, %v2574
        %v2708 = vsub.f32 %v2374, %v2577
        %v2709 = vsub.f32 %v2376, %v2577
        %v2710 = vsub.f32 %v2380, %v2580
        %v2711 = vsub.f32 %v2382, %v2580
        %v2712 = vsub.f32 %v2384, %v2583
        %v2713 = vsub.f32 %v2386, %v2583
        %v2714 = vsub.f32 %v2390, %v2586
        %v2715 = vsub.f32 %v2392, %v2586
        %v2716 = vsub.f32 %v2394, %v2589
        %v2717 = vsub.f32 %v2396, %v2589
        %v2718 = vmul.f32 %v2590, 1.442695
        %v2719 = vpow.pop %v2718
        %v2720 = vmul.f32 %v2591, 1.442695
        %v2721 = vpow.pop %v2720
        %v2722 = vmul.f32 %v2592, 1.442695
        %v2723 = vpow.pop %v2722
        %v2724 = vmul.f32 %v2593, 1.442695
        %v2725 = vpow.pop %v2724
        %v2726 = vmul.f32 %v2594, 1.442695
        %v2727 = vpow.pop %v2726
        %v2728 = vmul.f32 %v2595, 1.442695
        %v2729 = vpow.pop %v2728
        %v2730 = vmul.f32 %v2596, 1.442695
        %v2731 = vpow.pop %v2730
        %v2732 = vmul.f32 %v2597, 1.442695
        %v2733 = vpow.pop %v2732
        %v2734 = vmul.f32 %v2598, 1.442695
        %v2735 = vpow.pop %v2734
        %v2736 = vmul.f32 %v2599, 1.442695
        %v2737 = vpow.pop %v2736
        %v2738 = vmul.f32 %v2600, 1.442695
        %v2739 = vpow.pop %v2738
        %v2740 = vmul.f32 %v2601, 1.442695
        %v2741 = vpow.pop %v2740
        %v2742 = vmul.f32 %v2602, 1.442695
        %v2743 = vpow.pop %v2742
        %v2744 = vmul.f32 %v2603, 1.442695
        %v2745 = vpow.pop %v2744
        %v2746 = vmul.f32 %v2604, 1.442695
        %v2747 = vpow.pop %v2746
        %v2748 = vmul.f32 %v2605, 1.442695
        %v2749 = vpow.pop %v2748
        %v2750 = vmul.f32 %v2606, 1.442695
        %v2751 = vpow.pop %v2750
        %v2752 = vmul.f32 %v2607, 1.442695
        %v2753 = vpow.pop %v2752
        %v2754 = vmul.f32 %v2608, 1.442695
        %v2755 = vpow.pop %v2754
        %v2756 = vmul.f32 %v2609, 1.442695
        %v2757 = vpow.pop %v2756
        %v2758 = vmul.f32 %v2610, 1.442695
        %v2759 = vpow.pop %v2758
        %v2760 = vmul.f32 %v2611, 1.442695
        %v2761 = vpow.pop %v2760
        %v2762 = vmul.f32 %v2612, 1.442695
        %v2763 = vpow.pop %v2762
        %v2764 = vmul.f32 %v2613, 1.442695
        %v2765 = vpow.pop %v2764
        %v2766 = vmul.f32 %v2614, 1.442695
        %v2767 = vpow.pop %v2766
        %v2768 = vmul.f32 %v2615, 1.442695
        %v2769 = vpow.pop %v2768
        %v2770 = vmul.f32 %v2616, 1.442695
        %v2771 = vpow.pop %v2770
        %v2772 = vmul.f32 %v2617, 1.442695
        %v2773 = vpow.pop %v2772
        %v2774 = vmul.f32 %v2618, 1.442695
        %v2775 = vpow.pop %v2774
        %v2776 = vmul.f32 %v2619, 1.442695
        %v2777 = vpow.pop %v2776
        %v2778 = vmul.f32 %v2620, 1.442695
        %v2779 = vpow.pop %v2778
        %v2780 = vmul.f32 %v2621, 1.442695
        %v2781 = vpow.pop %v2780
        %v2782 = vmul.f32 %v2622, 1.442695
        %v2783 = vpow.pop %v2782
        %v2784 = vmul.f32 %v2623, 1.442695
        %v2785 = vpow.pop %v2784
        %v2786 = vmul.f32 %v2624, 1.442695
        %v2787 = vpow.pop %v2786
        %v2788 = vmul.f32 %v2625, 1.442695
        %v2789 = vpow.pop %v2788
        %v2790 = vmul.f32 %v2626, 1.442695
        %v2791 = vpow.pop %v2790
        %v2792 = vmul.f32 %v2627, 1.442695
        %v2793 = vpow.pop %v2792
        %v2794 = vmul.f32 %v2628, 1.442695
        %v2795 = vpow.pop %v2794
        %v2796 = vmul.f32 %v2629, 1.442695
        %v2797 = vpow.pop %v2796
        %v2798 = vmul.f32 %v2630, 1.442695
        %v2799 = vpow.pop %v2798
        %v2800 = vmul.f32 %v2631, 1.442695
        %v2801 = vpow.pop %v2800
        %v2802 = vmul.f32 %v2632, 1.442695
        %v2803 = vpow.pop %v2802
        %v2804 = vmul.f32 %v2633, 1.442695
        %v2805 = vpow.pop %v2804
        %v2806 = vmul.f32 %v2634, 1.442695
        %v2807 = vpow.pop %v2806
        %v2808 = vmul.f32 %v2635, 1.442695
        %v2809 = vpow.pop %v2808
        %v2810 = vmul.f32 %v2636, 1.442695
        %v2811 = vpow.pop %v2810
        %v2812 = vmul.f32 %v2637, 1.442695
        %v2813 = vpow.pop %v2812
        %v2814 = vmul.f32 %v2638, 1.442695
        %v2815 = vpow.pop %v2814
        %v2816 = vmul.f32 %v2639, 1.442695
        %v2817 = vpow.pop %v2816
        %v2818 = vmul.f32 %v2640, 1.442695
        %v2819 = vpow.pop %v2818
        %v2820 = vmul.f32 %v2641, 1.442695
        %v2821 = vpow.pop %v2820
        %v2822 = vmul.f32 %v2642, 1.442695
        %v2823 = vpow.pop %v2822
        %v2824 = vmul.f32 %v2643, 1.442695
        %v2825 = vpow.pop %v2824
        %v2826 = vmul.f32 %v2644, 1.442695
        %v2827 = vpow.pop %v2826
        %v2828 = vmul.f32 %v2645, 1.442695
        %v2829 = vpow.pop %v2828
        %v2830 = vmul.f32 %v2646, 1.442695
        %v2831 = vpow.pop %v2830
        %v2832 = vmul.f32 %v2647, 1.442695
        %v2833 = vpow.pop %v2832
        %v2834 = vmul.f32 %v2648, 1.442695
        %v2835 = vpow.pop %v2834
        %v2836 = vmul.f32 %v2649, 1.442695
        %v2837 = vpow.pop %v2836
        %v2838 = vmul.f32 %v2650, 1.442695
        %v2839 = vpow.pop %v2838
        %v2840 = vmul.f32 %v2651, 1.442695
        %v2841 = vpow.pop %v2840
        %v2842 = vmul.f32 %v2652, 1.442695
        %v2843 = vpow.pop %v2842
        %v2844 = vmul.f32 %v2653, 1.442695
        %v2845 = vpow.pop %v2844
        %v2846 = vmul.f32 %v2654, 1.442695
        %v2847 = vpow.pop %v2846
        %v2848 = vmul.f32 %v2655, 1.442695
        %v2849 = vpow.pop %v2848
        %v2850 = vmul.f32 %v2656, 1.442695
        %v2851 = vpow.pop %v2850
        %v2852 = vmul.f32 %v2657, 1.442695
        %v2853 = vpow.pop %v2852
        %v2854 = vmul.f32 %v2658, 1.442695
        %v2855 = vpow.pop %v2854
        %v2856 = vmul.f32 %v2659, 1.442695
        %v2857 = vpow.pop %v2856
        %v2858 = vmul.f32 %v2660, 1.442695
        %v2859 = vpow.pop %v2858
        %v2860 = vmul.f32 %v2661, 1.442695
        %v2861 = vpow.pop %v2860
        %v2862 = vmul.f32 %v2662, 1.442695
        %v2863 = vpow.pop %v2862
        %v2864 = vmul.f32 %v2663, 1.442695
        %v2865 = vpow.pop %v2864
        %v2866 = vmul.f32 %v2664, 1.442695
        %v2867 = vpow.pop %v2866
        %v2868 = vmul.f32 %v2665, 1.442695
        %v2869 = vpow.pop %v2868
        %v2870 = vmul.f32 %v2666, 1.442695
        %v2871 = vpow.pop %v2870
        %v2872 = vmul.f32 %v2667, 1.442695
        %v2873 = vpow.pop %v2872
        %v2874 = vmul.f32 %v2668, 1.442695
        %v2875 = vpow.pop %v2874
        %v2876 = vmul.f32 %v2669, 1.442695
        %v2877 = vpow.pop %v2876
        %v2878 = vmul.f32 %v2670, 1.442695
        %v2879 = vpow.pop %v2878
        %v2880 = vmul.f32 %v2671, 1.442695
        %v2881 = vpow.pop %v2880
        %v2882 = vmul.f32 %v2672, 1.442695
        %v2883 = vpow.pop %v2882
        %v2884 = vmul.f32 %v2673, 1.442695
        %v2885 = vpow.pop %v2884
        %v2886 = vmul.f32 %v2674, 1.442695
        %v2887 = vpow.pop %v2886
        %v2888 = vmul.f32 %v2675, 1.442695
        %v2889 = vpow.pop %v2888
        %v2890 = vmul.f32 %v2676, 1.442695
        %v2891 = vpow.pop %v2890
        %v2892 = vmul.f32 %v2677, 1.442695
        %v2893 = vpow.pop %v2892
        %v2894 = vmul.f32 %v2678, 1.442695
        %v2895 = vpow.pop %v2894
        %v2896 = vmul.f32 %v2679, 1.442695
        %v2897 = vpow.pop %v2896
        %v2898 = vmul.f32 %v2680, 1.442695
        %v2899 = vpow.pop %v2898
        %v2900 = vmul.f32 %v2681, 1.442695
        %v2901 = vpow.pop %v2900
        %v2902 = vmul.f32 %v2682, 1.442695
        %v2903 = vpow.pop %v2902
        %v2904 = vmul.f32 %v2683, 1.442695
        %v2905 = vpow.pop %v2904
        %v2906 = vmul.f32 %v2684, 1.442695
        %v2907 = vpow.pop %v2906
        %v2908 = vmul.f32 %v2685, 1.442695
        %v2909 = vpow.pop %v2908
        %v2910 = vmul.f32 %v2686, 1.442695
        %v2911 = vpow.pop %v2910
        %v2912 = vmul.f32 %v2687, 1.442695
        %v2913 = vpow.pop %v2912
        %v2914 = vmul.f32 %v2688, 1.442695
        %v2915 = vpow.pop %v2914
        %v2916 = vmul.f32 %v2689, 1.442695
        %v2917 = vpow.pop %v2916
        %v2918 = vmul.f32 %v2690, 1.442695
        %v2919 = vpow.pop %v2918
        %v2920 = vmul.f32 %v2691, 1.442695
        %v2921 = vpow.pop %v2920
        %v2922 = vmul.f32 %v2692, 1.442695
        %v2923 = vpow.pop %v2922
        %v2924 = vmul.f32 %v2693, 1.442695
        %v2925 = vpow.pop %v2924
        %v2926 = vmul.f32 %v2694, 1.442695
        %v2927 = vpow.pop %v2926
        %v2928 = vmul.f32 %v2695, 1.442695
        %v2929 = vpow.pop %v2928
        %v2930 = vmul.f32 %v2696, 1.442695
        %v2931 = vpow.pop %v2930
        %v2932 = vmul.f32 %v2697, 1.442695
        %v2933 = vpow.pop %v2932
        %v2934 = vmul.f32 %v2698, 1.442695
        %v2935 = vpow.pop %v2934
        %v2936 = vmul.f32 %v2699, 1.442695
        %v2937 = vpow.pop %v2936
        %v2938 = vmul.f32 %v2700, 1.442695
        %v2939 = vpow.pop %v2938
        %v2940 = vmul.f32 %v2701, 1.442695
        %v2941 = vpow.pop %v2940
        %v2942 = vmul.f32 %v2702, 1.442695
        %v2943 = vpow.pop %v2942
        %v2944 = vmul.f32 %v2703, 1.442695
        %v2945 = vpow.pop %v2944
        %v2946 = vmul.f32 %v2704, 1.442695
        %v2947 = vpow.pop %v2946
        %v2948 = vmul.f32 %v2705, 1.442695
        %v2949 = vpow.pop %v2948
        %v2950 = vmul.f32 %v2706, 1.442695
        %v2951 = vpow.pop %v2950
        %v2952 = vmul.f32 %v2707, 1.442695
        %v2953 = vpow.pop %v2952
        %v2954 = vmul.f32 %v2708, 1.442695
        %v2955 = vpow.pop %v2954
        %v2956 = vmul.f32 %v2709, 1.442695
        %v2957 = vpow.pop %v2956
        %v2958 = vmul.f32 %v2710, 1.442695
        %v2959 = vpow.pop %v2958
        %v2960 = vmul.f32 %v2711, 1.442695
        %v2961 = vpow.pop %v2960
        %v2962 = vmul.f32 %v2712, 1.442695
        %v2963 = vpow.pop %v2962
        %v2964 = vmul.f32 %v2713, 1.442695
        %v2965 = vpow.pop %v2964
        %v2966 = vmul.f32 %v2714, 1.442695
        %v2967 = vpow.pop %v2966
        %v2968 = vmul.f32 %v2715, 1.442695
        %v2969 = vpow.pop %v2968
        %v2970 = vmul.f32 %v2716, 1.442695
        %v2971 = vpow.pop %v2970
        %v2972 = vmul.f32 %v2717, 1.442695
        %v2973 = vpow.pop %v2972
        %v2974 = vpack.c.bf16 %v2723, %v2719
        %v2975 = vpack.c.bf16 %v2725, %v2721
        %v2976 = vpack.c.bf16 %v2731, %v2727
        %v2977 = vpack.c.bf16 %v2733, %v2729
        %v2978 = vpack.c.bf16 %v2739, %v2735
        %v2979 = vpack.c.bf16 %v2741, %v2737
        %v2980 = vpack.c.bf16 %v2747, %v2743
        %v2981 = vpack.c.bf16 %v2749, %v2745
        %v2982 = vpack.c.bf16 %v2755, %v2751
        %v2983 = vpack.c.bf16 %v2757, %v2753
        %v2984 = vpack.c.bf16 %v2763, %v2759
        %v2985 = vpack.c.bf16 %v2765, %v2761
        %v2986 = vpack.c.bf16 %v2771, %v2767
        %v2987 = vpack.c.bf16 %v2773, %v2769
        %v2988 = vpack.c.bf16 %v2779, %v2775
        %v2989 = vpack.c.bf16 %v2781, %v2777
        %v2990 = vpack.c.bf16 %v2787, %v2783
        %v2991 = vpack.c.bf16 %v2789, %v2785
        %v2992 = vpack.c.bf16 %v2795, %v2791
        %v2993 = vpack.c.bf16 %v2797, %v2793
        %v2994 = vpack.c.bf16 %v2803, %v2799
        %v2995 = vpack.c.bf16 %v2805, %v2801
        %v2996 = vpack.c.bf16 %v2811, %v2807
        %v2997 = vpack.c.bf16 %v2813, %v2809
        %v2998 = vpack.c.bf16 %v2819, %v2815
        %v2999 = vpack.c.bf16 %v2821, %v2817
        %v3000 = vpack.c.bf16 %v2827, %v2823
        %v3001 = vpack.c.bf16 %v2829, %v2825
        %v3002 = vpack.c.bf16 %v2835, %v2831
        %v3003 = vpack.c.bf16 %v2837, %v2833
        %v3004 = vpack.c.bf16 %v2843, %v2839
        %v3005 = vpack.c.bf16 %v2845, %v2841
        %v3006 = vpack.c.bf16 %v2851, %v2847
        %v3007 = vpack.c.bf16 %v2853, %v2849
        %v3008 = vpack.c.bf16 %v2859, %v2855
        %v3009 = vpack.c.bf16 %v2861, %v2857
        %v3010 = vpack.c.bf16 %v2867, %v2863
        %v3011 = vpack.c.bf16 %v2869, %v2865
        %v3012 = vpack.c.bf16 %v2875, %v2871
        %v3013 = vpack.c.bf16 %v2877, %v2873
        %v3014 = vpack.c.bf16 %v2883, %v2879
        %v3015 = vpack.c.bf16 %v2885, %v2881
        %v3016 = vpack.c.bf16 %v2891, %v2887
        %v3017 = vpack.c.bf16 %v2893, %v2889
        %v3018 = vpack.c.bf16 %v2899, %v2895
        %v3019 = vpack.c.bf16 %v2901, %v2897
        %v3020 = vpack.c.bf16 %v2907, %v2903
        %v3021 = vpack.c.bf16 %v2909, %v2905
        %v3022 = vpack.c.bf16 %v2915, %v2911
        %v3023 = vpack.c.bf16 %v2917, %v2913
        %v3024 = vpack.c.bf16 %v2923, %v2919
        %v3025 = vpack.c.bf16 %v2925, %v2921
        %v3026 = vpack.c.bf16 %v2931, %v2927
        %v3027 = vpack.c.bf16 %v2933, %v2929
        %v3028 = vpack.c.bf16 %v2939, %v2935
        %v3029 = vpack.c.bf16 %v2941, %v2937
        %v3030 = vpack.c.bf16 %v2947, %v2943
        %v3031 = vpack.c.bf16 %v2949, %v2945
        %v3032 = vpack.c.bf16 %v2955, %v2951
        %v3033 = vpack.c.bf16 %v2957, %v2953
        %v3034 = vpack.c.bf16 %v2963, %v2959
        %v3035 = vpack.c.bf16 %v2965, %v2961
        %v3036 = vpack.c.bf16 %v2971, %v2967
        %v3037 = vpack.c.bf16 %v2973, %v2969
        %v3038 = vunpack.c.l.bf16 %v2974
        %v3039 = vunpack.c.l.bf16 %v2975
        %v3040 = vunpack.c.h.bf16 %v2974
        %v3041 = vunpack.c.h.bf16 %v2975
        %v3042 = vunpack.c.l.bf16 %v2976
        %v3043 = vunpack.c.l.bf16 %v2977
        %v3044 = vunpack.c.h.bf16 %v2976
        %v3045 = vunpack.c.h.bf16 %v2977
        %v3046 = vunpack.c.l.bf16 %v2978
        %v3047 = vunpack.c.l.bf16 %v2979
        %v3048 = vunpack.c.h.bf16 %v2978
        %v3049 = vunpack.c.h.bf16 %v2979
        %v3050 = vunpack.c.l.bf16 %v2980
        %v3051 = vunpack.c.l.bf16 %v2981
        %v3052 = vunpack.c.h.bf16 %v2980
        %v3053 = vunpack.c.h.bf16 %v2981
        %v3054 = vunpack.c.l.bf16 %v2982
        %v3055 = vunpack.c.l.bf16 %v2983
        %v3056 = vunpack.c.h.bf16 %v2982
        %v3057 = vunpack.c.h.bf16 %v2983
        %v3058 = vunpack.c.l.bf16 %v2984
        %v3059 = vunpack.c.l.bf16 %v2985
        %v3060 = vunpack.c.h.bf16 %v2984
        %v3061 = vunpack.c.h.bf16 %v2985
        %v3062 = vunpack.c.l.bf16 %v2986
        %v3063 = vunpack.c.l.bf16 %v2987
        %v3064 = vunpack.c.h.bf16 %v2986
        %v3065 = vunpack.c.h.bf16 %v2987
        %v3066 = vunpack.c.l.bf16 %v2988
        %v3067 = vunpack.c.l.bf16 %v2989
        %v3068 = vunpack.c.h.bf16 %v2988
        %v3069 = vunpack.c.h.bf16 %v2989
        %v3070 = vunpack.c.l.bf16 %v2990
        %v3071 = vunpack.c.l.bf16 %v2991
        %v3072 = vunpack.c.h.bf16 %v2990
        %v3073 = vunpack.c.h.bf16 %v2991
        %v3074 = vunpack.c.l.bf16 %v2992
        %v3075 = vunpack.c.l.bf16 %v2993
        %v3076 = vunpack.c.h.bf16 %v2992
        %v3077 = vunpack.c.h.bf16 %v2993
        %v3078 = vunpack.c.l.bf16 %v2994
        %v3079 = vunpack.c.l.bf16 %v2995
        %v3080 = vunpack.c.h.bf16 %v2994
        %v3081 = vunpack.c.h.bf16 %v2995
        %v3082 = vunpack.c.l.bf16 %v2996
        %v3083 = vunpack.c.l.bf16 %v2997
        %v3084 = vunpack.c.h.bf16 %v2996
        %v3085 = vunpack.c.h.bf16 %v2997
        %v3086 = vunpack.c.l.bf16 %v2998
        %v3087 = vunpack.c.l.bf16 %v2999
        %v3088 = vunpack.c.h.bf16 %v2998
        %v3089 = vunpack.c.h.bf16 %v2999
        %v3090 = vunpack.c.l.bf16 %v3000
        %v3091 = vunpack.c.l.bf16 %v3001
        %v3092 = vunpack.c.h.bf16 %v3000
        %v3093 = vunpack.c.h.bf16 %v3001
        %v3094 = vunpack.c.l.bf16 %v3002
        %v3095 = vunpack.c.l.bf16 %v3003
        %v3096 = vunpack.c.h.bf16 %v3002
        %v3097 = vunpack.c.h.bf16 %v3003
        %v3098 = vunpack.c.l.bf16 %v3004
        %v3099 = vunpack.c.l.bf16 %v3005
        %v3100 = vunpack.c.h.bf16 %v3004
        %v3101 = vunpack.c.h.bf16 %v3005
        %v3102 = vunpack.c.l.bf16 %v3006
        %v3103 = vunpack.c.l.bf16 %v3007
        %v3104 = vunpack.c.h.bf16 %v3006
        %v3105 = vunpack.c.h.bf16 %v3007
        %v3106 = vunpack.c.l.bf16 %v3008
        %v3107 = vunpack.c.l.bf16 %v3009
        %v3108 = vunpack.c.h.bf16 %v3008
        %v3109 = vunpack.c.h.bf16 %v3009
        %v3110 = vunpack.c.l.bf16 %v3010
        %v3111 = vunpack.c.l.bf16 %v3011
        %v3112 = vunpack.c.h.bf16 %v3010
        %v3113 = vunpack.c.h.bf16 %v3011
        %v3114 = vunpack.c.l.bf16 %v3012
        %v3115 = vunpack.c.l.bf16 %v3013
        %v3116 = vunpack.c.h.bf16 %v3012
        %v3117 = vunpack.c.h.bf16 %v3013
        %v3118 = vunpack.c.l.bf16 %v3014
        %v3119 = vunpack.c.l.bf16 %v3015
        %v3120 = vunpack.c.h.bf16 %v3014
        %v3121 = vunpack.c.h.bf16 %v3015
        %v3122 = vunpack.c.l.bf16 %v3016
        %v3123 = vunpack.c.l.bf16 %v3017
        %v3124 = vunpack.c.h.bf16 %v3016
        %v3125 = vunpack.c.h.bf16 %v3017
        %v3126 = vunpack.c.l.bf16 %v3018
        %v3127 = vunpack.c.l.bf16 %v3019
        %v3128 = vunpack.c.h.bf16 %v3018
        %v3129 = vunpack.c.h.bf16 %v3019
        %v3130 = vunpack.c.l.bf16 %v3020
        %v3131 = vunpack.c.l.bf16 %v3021
        %v3132 = vunpack.c.h.bf16 %v3020
        %v3133 = vunpack.c.h.bf16 %v3021
        %v3134 = vunpack.c.l.bf16 %v3022
        %v3135 = vunpack.c.l.bf16 %v3023
        %v3136 = vunpack.c.h.bf16 %v3022
        %v3137 = vunpack.c.h.bf16 %v3023
        %v3138 = vunpack.c.l.bf16 %v3024
        %v3139 = vunpack.c.l.bf16 %v3025
        %v3140 = vunpack.c.h.bf16 %v3024
        %v3141 = vunpack.c.h.bf16 %v3025
        %v3142 = vunpack.c.l.bf16 %v3026
        %v3143 = vunpack.c.l.bf16 %v3027
        %v3144 = vunpack.c.h.bf16 %v3026
        %v3145 = vunpack.c.h.bf16 %v3027
        %v3146 = vunpack.c.l.bf16 %v3028
        %v3147 = vunpack.c.l.bf16 %v3029
        %v3148 = vunpack.c.h.bf16 %v3028
        %v3149 = vunpack.c.h.bf16 %v3029
        %v3150 = vunpack.c.l.bf16 %v3030
        %v3151 = vunpack.c.l.bf16 %v3031
        %v3152 = vunpack.c.h.bf16 %v3030
        %v3153 = vunpack.c.h.bf16 %v3031
        %v3154 = vunpack.c.l.bf16 %v3032
        %v3155 = vunpack.c.l.bf16 %v3033
        %v3156 = vunpack.c.h.bf16 %v3032
        %v3157 = vunpack.c.h.bf16 %v3033
        %v3158 = vunpack.c.l.bf16 %v3034
        %v3159 = vunpack.c.l.bf16 %v3035
        %v3160 = vunpack.c.h.bf16 %v3034
        %v3161 = vunpack.c.h.bf16 %v3035
        %v3162 = vunpack.c.l.bf16 %v3036
        %v3163 = vunpack.c.l.bf16 %v3037
        %v3164 = vunpack.c.h.bf16 %v3036
        %v3165 = vunpack.c.h.bf16 %v3037
        %v3166 = vadd.f32 %v3038, %v3039
        %3167 = vadd.xlane.f32.xlu0 %v3166
        %v3168 = vpop.xlane.xlu0 %3167
        %v3169 = vadd.f32 %v3040, %v3041
        %3170 = vadd.xlane.f32.xlu0 %v3169
        %v3171 = vpop.xlane.xlu0 %3170
        %v3172 = vadd.f32 %v3042, %v3043
        %3173 = vadd.xlane.f32.xlu0 %v3172
        %v3174 = vpop.xlane.xlu0 %3173
        %v3175 = vadd.f32 %v3044, %v3045
        %3176 = vadd.xlane.f32.xlu0 %v3175
        %v3177 = vpop.xlane.xlu0 %3176
        %v3178 = vadd.f32 %v3046, %v3047
        %3179 = vadd.xlane.f32.xlu0 %v3178
        %v3180 = vpop.xlane.xlu0 %3179
        %v3181 = vadd.f32 %v3048, %v3049
        %3182 = vadd.xlane.f32.xlu0 %v3181
        %v3183 = vpop.xlane.xlu0 %3182
        %v3184 = vadd.f32 %v3050, %v3051
        %3185 = vadd.xlane.f32.xlu0 %v3184
        %v3186 = vpop.xlane.xlu0 %3185
        %v3187 = vadd.f32 %v3052, %v3053
        %3188 = vadd.xlane.f32.xlu0 %v3187
        %v3189 = vpop.xlane.xlu0 %3188
        %v3190 = vadd.f32 %v3054, %v3055
        %3191 = vadd.xlane.f32.xlu0 %v3190
        %v3192 = vpop.xlane.xlu0 %3191
        %v3193 = vadd.f32 %v3056, %v3057
        %3194 = vadd.xlane.f32.xlu0 %v3193
        %v3195 = vpop.xlane.xlu0 %3194
        %v3196 = vadd.f32 %v3058, %v3059
        %3197 = vadd.xlane.f32.xlu0 %v3196
        %v3198 = vpop.xlane.xlu0 %3197
        %v3199 = vadd.f32 %v3060, %v3061
        %3200 = vadd.xlane.f32.xlu0 %v3199
        %v3201 = vpop.xlane.xlu0 %3200
        %v3202 = vadd.f32 %v3062, %v3063
        %3203 = vadd.xlane.f32.xlu0 %v3202
        %v3204 = vpop.xlane.xlu0 %3203
        %v3205 = vadd.f32 %v3064, %v3065
        %3206 = vadd.xlane.f32.xlu0 %v3205
        %v3207 = vpop.xlane.xlu0 %3206
        %v3208 = vadd.f32 %v3066, %v3067
        %3209 = vadd.xlane.f32.xlu0 %v3208
        %v3210 = vpop.xlane.xlu0 %3209
        %v3211 = vadd.f32 %v3068, %v3069
        %3212 = vadd.xlane.f32.xlu0 %v3211
        %v3213 = vpop.xlane.xlu0 %3212
        %v3214 = vadd.f32 %v3070, %v3071
        %3215 = vadd.xlane.f32.xlu0 %v3214
        %v3216 = vpop.xlane.xlu0 %3215
        %v3217 = vadd.f32 %v3072, %v3073
        %3218 = vadd.xlane.f32.xlu0 %v3217
        %v3219 = vpop.xlane.xlu0 %3218
        %v3220 = vadd.f32 %v3074, %v3075
        %3221 = vadd.xlane.f32.xlu0 %v3220
        %v3222 = vpop.xlane.xlu0 %3221
        %v3223 = vadd.f32 %v3076, %v3077
        %3224 = vadd.xlane.f32.xlu0 %v3223
        %v3225 = vpop.xlane.xlu0 %3224
        %v3226 = vadd.f32 %v3078, %v3079
        %3227 = vadd.xlane.f32.xlu0 %v3226
        %v3228 = vpop.xlane.xlu0 %3227
        %v3229 = vadd.f32 %v3080, %v3081
        %3230 = vadd.xlane.f32.xlu0 %v3229
        %v3231 = vpop.xlane.xlu0 %3230
        %v3232 = vadd.f32 %v3082, %v3083
        %3233 = vadd.xlane.f32.xlu0 %v3232
        %v3234 = vpop.xlane.xlu0 %3233
        %v3235 = vadd.f32 %v3084, %v3085
        %3236 = vadd.xlane.f32.xlu0 %v3235
        %v3237 = vpop.xlane.xlu0 %3236
        %v3238 = vadd.f32 %v3086, %v3087
        %3239 = vadd.xlane.f32.xlu0 %v3238
        %v3240 = vpop.xlane.xlu0 %3239
        %v3241 = vadd.f32 %v3088, %v3089
        %3242 = vadd.xlane.f32.xlu0 %v3241
        %v3243 = vpop.xlane.xlu0 %3242
        %v3244 = vadd.f32 %v3090, %v3091
        %3245 = vadd.xlane.f32.xlu0 %v3244
        %v3246 = vpop.xlane.xlu0 %3245
        %v3247 = vadd.f32 %v3092, %v3093
        %3248 = vadd.xlane.f32.xlu0 %v3247
        %v3249 = vpop.xlane.xlu0 %3248
        %v3250 = vadd.f32 %v3094, %v3095
        %3251 = vadd.xlane.f32.xlu0 %v3250
        %v3252 = vpop.xlane.xlu0 %3251
        %v3253 = vadd.f32 %v3096, %v3097
        %3254 = vadd.xlane.f32.xlu0 %v3253
        %v3255 = vpop.xlane.xlu0 %3254
        %v3256 = vadd.f32 %v3098, %v3099
        %3257 = vadd.xlane.f32.xlu0 %v3256
        %v3258 = vpop.xlane.xlu0 %3257
        %v3259 = vadd.f32 %v3100, %v3101
        %3260 = vadd.xlane.f32.xlu0 %v3259
        %v3261 = vpop.xlane.xlu0 %3260
        %v3262 = vadd.f32 %v3102, %v3103
        %3263 = vadd.xlane.f32.xlu0 %v3262
        %v3264 = vpop.xlane.xlu0 %3263
        %v3265 = vadd.f32 %v3104, %v3105
        %3266 = vadd.xlane.f32.xlu0 %v3265
        %v3267 = vpop.xlane.xlu0 %3266
        %v3268 = vadd.f32 %v3106, %v3107
        %3269 = vadd.xlane.f32.xlu0 %v3268
        %v3270 = vpop.xlane.xlu0 %3269
        %v3271 = vadd.f32 %v3108, %v3109
        %3272 = vadd.xlane.f32.xlu0 %v3271
        %v3273 = vpop.xlane.xlu0 %3272
        %v3274 = vadd.f32 %v3110, %v3111
        %3275 = vadd.xlane.f32.xlu0 %v3274
        %v3276 = vpop.xlane.xlu0 %3275
        %v3277 = vadd.f32 %v3112, %v3113
        %3278 = vadd.xlane.f32.xlu0 %v3277
        %v3279 = vpop.xlane.xlu0 %3278
        %v3280 = vadd.f32 %v3114, %v3115
        %3281 = vadd.xlane.f32.xlu0 %v3280
        %v3282 = vpop.xlane.xlu0 %3281
        %v3283 = vadd.f32 %v3116, %v3117
        %3284 = vadd.xlane.f32.xlu0 %v3283
        %v3285 = vpop.xlane.xlu0 %3284
        %v3286 = vadd.f32 %v3118, %v3119
        %3287 = vadd.xlane.f32.xlu0 %v3286
        %v3288 = vpop.xlane.xlu0 %3287
        %v3289 = vadd.f32 %v3120, %v3121
        %3290 = vadd.xlane.f32.xlu0 %v3289
        %v3291 = vpop.xlane.xlu0 %3290
        %v3292 = vadd.f32 %v3122, %v3123
        %3293 = vadd.xlane.f32.xlu0 %v3292
        %v3294 = vpop.xlane.xlu0 %3293
        %v3295 = vadd.f32 %v3124, %v3125
        %3296 = vadd.xlane.f32.xlu0 %v3295
        %v3297 = vpop.xlane.xlu0 %3296
        %v3298 = vadd.f32 %v3126, %v3127
        %3299 = vadd.xlane.f32.xlu0 %v3298
        %v3300 = vpop.xlane.xlu0 %3299
        %v3301 = vadd.f32 %v3128, %v3129
        %3302 = vadd.xlane.f32.xlu0 %v3301
        %v3303 = vpop.xlane.xlu0 %3302
        %v3304 = vadd.f32 %v3130, %v3131
        %3305 = vadd.xlane.f32.xlu0 %v3304
        %v3306 = vpop.xlane.xlu0 %3305
        %v3307 = vadd.f32 %v3132, %v3133
        %3308 = vadd.xlane.f32.xlu0 %v3307
        %v3309 = vpop.xlane.xlu0 %3308
        %v3310 = vadd.f32 %v3134, %v3135
        %3311 = vadd.xlane.f32.xlu0 %v3310
        %v3312 = vpop.xlane.xlu0 %3311
        %v3313 = vadd.f32 %v3136, %v3137
        %3314 = vadd.xlane.f32.xlu0 %v3313
        %v3315 = vpop.xlane.xlu0 %3314
        %v3316 = vadd.f32 %v3138, %v3139
        %3317 = vadd.xlane.f32.xlu0 %v3316
        %v3318 = vpop.xlane.xlu0 %3317
        %v3319 = vadd.f32 %v3140, %v3141
        %3320 = vadd.xlane.f32.xlu0 %v3319
        %v3321 = vpop.xlane.xlu0 %3320
        %v3322 = vadd.f32 %v3142, %v3143
        %3323 = vadd.xlane.f32.xlu0 %v3322
        %v3324 = vpop.xlane.xlu0 %3323
        %v3325 = vadd.f32 %v3144, %v3145
        %3326 = vadd.xlane.f32.xlu0 %v3325
        %v3327 = vpop.xlane.xlu0 %3326
        %v3328 = vadd.f32 %v3146, %v3147
        %3329 = vadd.xlane.f32.xlu0 %v3328
        %v3330 = vpop.xlane.xlu0 %3329
        %v3331 = vadd.f32 %v3148, %v3149
        %3332 = vadd.xlane.f32.xlu0 %v3331
        %v3333 = vpop.xlane.xlu0 %3332
        %v3334 = vadd.f32 %v3150, %v3151
        %3335 = vadd.xlane.f32.xlu0 %v3334
        %v3336 = vpop.xlane.xlu0 %3335
        %v3337 = vadd.f32 %v3152, %v3153
        %3338 = vadd.xlane.f32.xlu0 %v3337
        %v3339 = vpop.xlane.xlu0 %3338
        %v3340 = vadd.f32 %v3154, %v3155
        %3341 = vadd.xlane.f32.xlu0 %v3340
        %v3342 = vpop.xlane.xlu0 %3341
        %v3343 = vadd.f32 %v3156, %v3157
        %3344 = vadd.xlane.f32.xlu0 %v3343
        %v3345 = vpop.xlane.xlu0 %3344
        %v3346 = vadd.f32 %v3158, %v3159
        %3347 = vadd.xlane.f32.xlu0 %v3346
        %v3348 = vpop.xlane.xlu0 %3347
        %v3349 = vadd.f32 %v3160, %v3161
        %3350 = vadd.xlane.f32.xlu0 %v3349
        %v3351 = vpop.xlane.xlu0 %3350
        %v3352 = vadd.f32 %v3162, %v3163
        %3353 = vadd.xlane.f32.xlu0 %v3352
        %v3354 = vpop.xlane.xlu0 %3353
        %v3355 = vadd.f32 %v3164, %v3165
        %3356 = vadd.xlane.f32.xlu0 %v3355
        %v3357 = vpop.xlane.xlu0 %3356
        %v3390 = vunpack.c.l.b16 %v1049
        %v3391 = vunpack.c.l.b16 %v1050
        %v3392 = vunpack.c.l.b16 %v1051
        %v3393 = vunpack.c.l.b16 %v1052
        %v3394 = vunpack.c.l.b16 %v1053
        %v3395 = vunpack.c.l.b16 %v1054
        %v3396 = vunpack.c.l.b16 %v1055
        %v3397 = vunpack.c.l.b16 %v1056
        %v3398 = vunpack.c.l.b16 %v1057
        %v3399 = vunpack.c.l.b16 %v1058
        %v3400 = vunpack.c.l.b16 %v1059
        %v3401 = vunpack.c.l.b16 %v1060
        %v3402 = vunpack.c.l.b16 %v1061
        %v3403 = vunpack.c.l.b16 %v1062
        %v3404 = vunpack.c.l.b16 %v1063
        %v3405 = vunpack.c.l.b16 %v1064
        %v3406 = vunpack.c.l.b16 %v1065
        %v3407 = vunpack.c.l.b16 %v1066
        %v3408 = vunpack.c.l.b16 %v1067
        %v3409 = vunpack.c.l.b16 %v1068
        %v3410 = vunpack.c.l.b16 %v1069
        %v3411 = vunpack.c.l.b16 %v1070
        %v3412 = vunpack.c.l.b16 %v1071
        %v3413 = vunpack.c.l.b16 %v1072
        %v3414 = vunpack.c.l.b16 %v1073
        %v3415 = vunpack.c.l.b16 %v1074
        %v3416 = vunpack.c.l.b16 %v1075
        %v3417 = vunpack.c.l.b16 %v1076
        %v3418 = vunpack.c.l.b16 %v1077
        %v3419 = vunpack.c.l.b16 %v1078
        %v3420 = vunpack.c.l.b16 %v1079
        %v3421 = vunpack.c.l.b16 %v1080
        %v3422 = vpack.c.b16 %v3391, %v3390
        %v3423 = vpack.c.b16 %v3393, %v3392
        %v3424 = vpack.c.b16 %v3395, %v3394
        %v3425 = vpack.c.b16 %v3397, %v3396
        %v3426 = vpack.c.b16 %v3399, %v3398
        %v3427 = vpack.c.b16 %v3401, %v3400
        %v3428 = vpack.c.b16 %v3403, %v3402
        %v3429 = vpack.c.b16 %v3405, %v3404
        %v3430 = vpack.c.b16 %v3407, %v3406
        %v3431 = vpack.c.b16 %v3409, %v3408
        %v3432 = vpack.c.b16 %v3411, %v3410
        %v3433 = vpack.c.b16 %v3413, %v3412
        %v3434 = vpack.c.b16 %v3415, %v3414
        %v3435 = vpack.c.b16 %v3417, %v3416
        %v3436 = vpack.c.b16 %v3419, %v3418
        %v3437 = vpack.c.b16 %v3421, %v3420
        %3454 = vmatprep.subr.bf16.mxu0 0
        %3455 = vmatpush1.bf16.msra.mxu0 %v3422
        %3456 = vmatprep.subr.bf16.mxu0 0
        %3457 = vmatpush1.bf16.msra.mxu0 %v3423
        %3458 = vmatprep.subr.bf16.mxu0 0
        %3459 = vmatpush1.bf16.msra.mxu0 %v3424
        %3460 = vmatprep.subr.bf16.mxu0 0
        %3461 = vmatpush1.bf16.msra.mxu0 %v3425
        %3462 = vmatprep.subr.bf16.mxu0 0
        %3463 = vmatpush1.bf16.msra.mxu0 %v3426
        %3464 = vmatprep.subr.bf16.mxu0 0
        %3465 = vmatpush1.bf16.msra.mxu0 %v3427
        %3466 = vmatprep.subr.bf16.mxu0 0
        %3467 = vmatpush1.bf16.msra.mxu0 %v3428
        %3468 = vmatprep.subr.bf16.mxu0 0
        %3469 = vmatpush1.bf16.msra.mxu0 %v3429
        %3470 = vmatprep.subr.bf16.mxu0 0
        %3471 = vmatpush1.bf16.msra.mxu0 %v3430
        %3472 = vmatprep.subr.bf16.mxu0 0
        %3473 = vmatpush1.bf16.msra.mxu0 %v3431
        %3474 = vmatprep.subr.bf16.mxu0 0
        %3475 = vmatpush1.bf16.msra.mxu0 %v3432
        %3476 = vmatprep.subr.bf16.mxu0 0
        %3477 = vmatpush1.bf16.msra.mxu0 %v3433
        %3478 = vmatprep.subr.bf16.mxu0 0
        %3479 = vmatpush1.bf16.msra.mxu0 %v3434
        %3480 = vmatprep.subr.bf16.mxu0 0
        %3481 = vmatpush1.bf16.msra.mxu0 %v3435
        %3482 = vmatprep.subr.bf16.mxu0 0
        %3483 = vmatpush1.bf16.msra.mxu0 %v3436
        %3484 = vmatprep.subr.bf16.mxu0 0
        %3485 = vmatpush1.bf16.msra.mxu0 %v3437
        %3486 = vmatprep.mubr.bf16.mxu0 %v2975
        %3487 = vmatmul.mubr.bf16.gmra.mrb[0].mxu0 %v2974
        %v3488 = vpop.f32.mrb[0].mxu0
        %v3489 = vadd.f32 0.0, %v3488
        %v3490 = vpop.f32.mrb[0].mxu0
        %v3491 = vpop.f32.mrb[0].mxu0
        %v3492 = vadd.f32 0.0, %v3491
        %v3493 = vpop.f32.mrb[0].mxu0
        %3494 = vmatprep.mubr.bf16.mxu0 %v2977
        %3495 = vmatmul.mubr.bf16.gmra.mrb[0].mxu0 %v2976
        %v3496 = vpop.f32.mrb[0].mxu0
        %v3497 = vadd.f32 0.0, %v3496
        %v3498 = vpop.f32.mrb[0].mxu0
        %v3499 = vpop.f32.mrb[0].mxu0
        %v3500 = vadd.f32 0.0, %v3499
        %v3501 = vpop.f32.mrb[0].mxu0
        %3502 = vmatprep.mubr.bf16.mxu0 %v2979
        %3503 = vmatmul.mubr.bf16.gmra.mrb[0].mxu0 %v2978
        %v3504 = vpop.f32.mrb[0].mxu0
        %v3505 = vadd.f32 0.0, %v3504
        %v3506 = vpop.f32.mrb[0].mxu0
        %v3507 = vpop.f32.mrb[0].mxu0
        %v3508 = vadd.f32 0.0, %v3507
        %v3509 = vpop.f32.mrb[0].mxu0
        %3510 = vmatprep.mubr.bf16.mxu0 %v2981
        %3511 = vmatmul.mubr.bf16.gmra.mrb[0].mxu0 %v2980
        %v3512 = vpop.f32.mrb[0].mxu0
        %v3513 = vadd.f32 0.0, %v3512
        %v3514 = vpop.f32.mrb[0].mxu0
        %v3515 = vpop.f32.mrb[0].mxu0
        %v3516 = vadd.f32 0.0, %v3515
        %v3517 = vpop.f32.mrb[0].mxu0
        %3518 = vmatprep.mubr.bf16.mxu0 %v2983
        %3519 = vmatmul.mubr.bf16.gmra.mrb[0].mxu0 %v2982
        %v3520 = vpop.f32.mrb[0].mxu0
        %v3521 = vadd.f32 0.0, %v3520
        %v3522 = vpop.f32.mrb[0].mxu0
        %v3523 = vpop.f32.mrb[0].mxu0
        %v3524 = vadd.f32 0.0, %v3523
        %v3525 = vpop.f32.mrb[0].mxu0
        %3526 = vmatprep.mubr.bf16.mxu0 %v2985
        %3527 = vmatmul.mubr.bf16.gmra.mrb[0].mxu0 %v2984
        %v3528 = vpop.f32.mrb[0].mxu0
        %v3529 = vadd.f32 0.0, %v3528
        %v3530 = vpop.f32.mrb[0].mxu0
        %v3531 = vpop.f32.mrb[0].mxu0
        %v3532 = vadd.f32 0.0, %v3531
        %v3533 = vpop.f32.mrb[0].mxu0
        %3534 = vmatprep.mubr.bf16.mxu0 %v2987
        %3535 = vmatmul.mubr.bf16.gmra.mrb[0].mxu0 %v2986
        %v3536 = vpop.f32.mrb[0].mxu0
        %v3537 = vadd.f32 0.0, %v3536
        %v3538 = vpop.f32.mrb[0].mxu0
        %v3539 = vpop.f32.mrb[0].mxu0
        %v3540 = vadd.f32 0.0, %v3539
        %v3541 = vpop.f32.mrb[0].mxu0
        %3542 = vmatprep.mubr.bf16.mxu0 %v2989
        %3543 = vmatmul.mubr.bf16.gmra.mrb[0].mxu0 %v2988
        %v3544 = vpop.f32.mrb[0].mxu0
        %v3545 = vadd.f32 0.0, %v3544
        %v3546 = vpop.f32.mrb[0].mxu0
        %v3547 = vpop.f32.mrb[0].mxu0
        %v3548 = vadd.f32 0.0, %v3547
        %v3549 = vpop.f32.mrb[0].mxu0
        %3550 = vdwg.mxu0
        %v3583 = vunpack.c.l.b16 %v1081
        %v3584 = vunpack.c.l.b16 %v1082
        %v3585 = vunpack.c.l.b16 %v1083
        %v3586 = vunpack.c.l.b16 %v1084
        %v3587 = vunpack.c.l.b16 %v1085
        %v3588 = vunpack.c.l.b16 %v1086
        %v3589 = vunpack.c.l.b16 %v1087
        %v3590 = vunpack.c.l.b16 %v1088
        %v3591 = vunpack.c.l.b16 %v1089
        %v3592 = vunpack.c.l.b16 %v1090
        %v3593 = vunpack.c.l.b16 %v1091
        %v3594 = vunpack.c.l.b16 %v1092
        %v3595 = vunpack.c.l.b16 %v1093
        %v3596 = vunpack.c.l.b16 %v1094
        %v3597 = vunpack.c.l.b16 %v1095
        %v3598 = vunpack.c.l.b16 %v1096
        %v3599 = vunpack.c.l.b16 %v1097
        %v3600 = vunpack.c.l.b16 %v1098
        %v3601 = vunpack.c.l.b16 %v1099
        %v3602 = vunpack.c.l.b16 %v1100
        %v3603 = vunpack.c.l.b16 %v1101
        %v3604 = vunpack.c.l.b16 %v1102
        %v3605 = vunpack.c.l.b16 %v1103
        %v3606 = vunpack.c.l.b16 %v1104
        %v3607 = vunpack.c.l.b16 %v1105
        %v3608 = vunpack.c.l.b16 %v1106
        %v3609 = vunpack.c.l.b16 %v1107
        %v3610 = vunpack.c.l.b16 %v1108
        %v3611 = vunpack.c.l.b16 %v1109
        %v3612 = vunpack.c.l.b16 %v1110
        %v3613 = vunpack.c.l.b16 %v1111
        %v3614 = vunpack.c.l.b16 %v1112
        %v3615 = vpack.c.b16 %v3584, %v3583
        %v3616 = vpack.c.b16 %v3586, %v3585
        %v3617 = vpack.c.b16 %v3588, %v3587
        %v3618 = vpack.c.b16 %v3590, %v3589
        %v3619 = vpack.c.b16 %v3592, %v3591
        %v3620 = vpack.c.b16 %v3594, %v3593
        %v3621 = vpack.c.b16 %v3596, %v3595
        %v3622 = vpack.c.b16 %v3598, %v3597
        %v3623 = vpack.c.b16 %v3600, %v3599
        %v3624 = vpack.c.b16 %v3602, %v3601
        %v3625 = vpack.c.b16 %v3604, %v3603
        %v3626 = vpack.c.b16 %v3606, %v3605
        %v3627 = vpack.c.b16 %v3608, %v3607
        %v3628 = vpack.c.b16 %v3610, %v3609
        %v3629 = vpack.c.b16 %v3612, %v3611
        %v3630 = vpack.c.b16 %v3614, %v3613
        %3647 = vmatprep.subr.bf16.mxu0 0
        %3648 = vmatpush1.bf16.msra.mxu0 %v3615
        %3649 = vmatprep.subr.bf16.mxu0 0
        %3650 = vmatpush1.bf16.msra.mxu0 %v3616
        %3651 = vmatprep.subr.bf16.mxu0 0
        %3652 = vmatpush1.bf16.msra.mxu0 %v3617
        %3653 = vmatprep.subr.bf16.mxu0 0
        %3654 = vmatpush1.bf16.msra.mxu0 %v3618
        %3655 = vmatprep.subr.bf16.mxu0 0
        %3656 = vmatpush1.bf16.msra.mxu0 %v3619
        %3657 = vmatprep.subr.bf16.mxu0 0
        %3658 = vmatpush1.bf16.msra.mxu0 %v3620
        %3659 = vmatprep.subr.bf16.mxu0 0
        %3660 = vmatpush1.bf16.msra.mxu0 %v3621
        %3661 = vmatprep.subr.bf16.mxu0 0
        %3662 = vmatpush1.bf16.msra.mxu0 %v3622
        %3663 = vmatprep.subr.bf16.mxu0 0
        %3664 = vmatpush1.bf16.msra.mxu0 %v3623
        %3665 = vmatprep.subr.bf16.mxu0 0
        %3666 = vmatpush1.bf16.msra.mxu0 %v3624
        %3667 = vmatprep.subr.bf16.mxu0 0
        %3668 = vmatpush1.bf16.msra.mxu0 %v3625
        %3669 = vmatprep.subr.bf16.mxu0 0
        %3670 = vmatpush1.bf16.msra.mxu0 %v3626
        %3671 = vmatprep.subr.bf16.mxu0 0
        %3672 = vmatpush1.bf16.msra.mxu0 %v3627
        %3673 = vmatprep.subr.bf16.mxu0 0
        %3674 = vmatpush1.bf16.msra.mxu0 %v3628
        %3675 = vmatprep.subr.bf16.mxu0 0
        %3676 = vmatpush1.bf16.msra.mxu0 %v3629
        %3677 = vmatprep.subr.bf16.mxu0 0
        %3678 = vmatpush1.bf16.msra.mxu0 %v3630
        %3679 = vmatprep.mubr.bf16.mxu0 %v2991
        %3680 = vmatmul.mubr.bf16.gmra.mrb[0].mxu0 %v2990
        %v3681 = vpop.f32.mrb[0].mxu0
        %v3682 = vadd.f32 0.0, %v3681
        %v3683 = vpop.f32.mrb[0].mxu0
        %v3684 = vpop.f32.mrb[0].mxu0
        %v3685 = vadd.f32 0.0, %v3684
        %v3686 = vpop.f32.mrb[0].mxu0
        %3687 = vmatprep.mubr.bf16.mxu0 %v2993
        %3688 = vmatmul.mubr.bf16.gmra.mrb[0].mxu0 %v2992
        %v3689 = vpop.f32.mrb[0].mxu0
        %v3690 = vadd.f32 0.0, %v3689
        %v3691 = vpop.f32.mrb[0].mxu0
        %v3692 = vpop.f32.mrb[0].mxu0
        %v3693 = vadd.f32 0.0, %v3692
        %v3694 = vpop.f32.mrb[0].mxu0
        %3695 = vmatprep.mubr.bf16.mxu0 %v2995
        %3696 = vmatmul.mubr.bf16.gmra.mrb[0].mxu0 %v2994
        %v3697 = vpop.f32.mrb[0].mxu0
        %v3698 = vadd.f32 0.0, %v3697
        %v3699 = vpop.f32.mrb[0].mxu0
        %v3700 = vpop.f32.mrb[0].mxu0
        %v3701 = vadd.f32 0.0, %v3700
        %v3702 = vpop.f32.mrb[0].mxu0
        %3703 = vmatprep.mubr.bf16.mxu0 %v2997
        %3704 = vmatmul.mubr.bf16.gmra.mrb[0].mxu0 %v2996
        %v3705 = vpop.f32.mrb[0].mxu0
        %v3706 = vadd.f32 0.0, %v3705
        %v3707 = vpop.f32.mrb[0].mxu0
        %v3708 = vpop.f32.mrb[0].mxu0
        %v3709 = vadd.f32 0.0, %v3708
        %v3710 = vpop.f32.mrb[0].mxu0
        %3711 = vmatprep.mubr.bf16.mxu0 %v2999
        %3712 = vmatmul.mubr.bf16.gmra.mrb[0].mxu0 %v2998
        %v3713 = vpop.f32.mrb[0].mxu0
        %v3714 = vadd.f32 0.0, %v3713
        %v3715 = vpop.f32.mrb[0].mxu0
        %v3716 = vpop.f32.mrb[0].mxu0
        %v3717 = vadd.f32 0.0, %v3716
        %v3718 = vpop.f32.mrb[0].mxu0
        %3719 = vmatprep.mubr.bf16.mxu0 %v3001
        %3720 = vmatmul.mubr.bf16.gmra.mrb[0].mxu0 %v3000
        %v3721 = vpop.f32.mrb[0].mxu0
        %v3722 = vadd.f32 0.0, %v3721
        %v3723 = vpop.f32.mrb[0].mxu0
        %v3724 = vpop.f32.mrb[0].mxu0
        %v3725 = vadd.f32 0.0, %v3724
        %v3726 = vpop.f32.mrb[0].mxu0
        %3727 = vmatprep.mubr.bf16.mxu0 %v3003
        %3728 = vmatmul.mubr.bf16.gmra.mrb[0].mxu0 %v3002
        %v3729 = vpop.f32.mrb[0].mxu0
        %v3730 = vadd.f32 0.0, %v3729
        %v3731 = vpop.f32.mrb[0].mxu0
        %v3732 = vpop.f32.mrb[0].mxu0
        %v3733 = vadd.f32 0.0, %v3732
        %v3734 = vpop.f32.mrb[0].mxu0
        %3735 = vmatprep.mubr.bf16.mxu0 %v3005
        %3736 = vmatmul.mubr.bf16.gmra.mrb[0].mxu0 %v3004
        %v3737 = vpop.f32.mrb[0].mxu0
        %v3738 = vadd.f32 0.0, %v3737
        %v3739 = vpop.f32.mrb[0].mxu0
        %v3740 = vpop.f32.mrb[0].mxu0
        %v3741 = vadd.f32 0.0, %v3740
        %v3742 = vpop.f32.mrb[0].mxu0
        %3743 = vdwg.mxu0
        %v3776 = vunpack.c.l.b16 %v1113
        %v3777 = vunpack.c.l.b16 %v1114
        %v3778 = vunpack.c.l.b16 %v1115
        %v3779 = vunpack.c.l.b16 %v1116
        %v3780 = vunpack.c.l.b16 %v1117
        %v3781 = vunpack.c.l.b16 %v1118
        %v3782 = vunpack.c.l.b16 %v1119
        %v3783 = vunpack.c.l.b16 %v1120
        %v3784 = vunpack.c.l.b16 %v1121
        %v3785 = vunpack.c.l.b16 %v1122
        %v3786 = vunpack.c.l.b16 %v1123
        %v3787 = vunpack.c.l.b16 %v1124
        %v3788 = vunpack.c.l.b16 %v1125
        %v3789 = vunpack.c.l.b16 %v1126
        %v3790 = vunpack.c.l.b16 %v1127
        %v3791 = vunpack.c.l.b16 %v1128
        %v3792 = vunpack.c.l.b16 %v1129
        %v3793 = vunpack.c.l.b16 %v1130
        %v3794 = vunpack.c.l.b16 %v1131
        %v3795 = vunpack.c.l.b16 %v1132
        %v3796 = vunpack.c.l.b16 %v1133
        %v3797 = vunpack.c.l.b16 %v1134
        %v3798 = vunpack.c.l.b16 %v1135
        %v3799 = vunpack.c.l.b16 %v1136
        %v3800 = vunpack.c.l.b16 %v1137
        %v3801 = vunpack.c.l.b16 %v1138
        %v3802 = vunpack.c.l.b16 %v1139
        %v3803 = vunpack.c.l.b16 %v1140
        %v3804 = vunpack.c.l.b16 %v1141
        %v3805 = vunpack.c.l.b16 %v1142
        %v3806 = vunpack.c.l.b16 %v1143
        %v3807 = vunpack.c.l.b16 %v1144
        %v3808 = vpack.c.b16 %v3777, %v3776
        %v3809 = vpack.c.b16 %v3779, %v3778
        %v3810 = vpack.c.b16 %v3781, %v3780
        %v3811 = vpack.c.b16 %v3783, %v3782
        %v3812 = vpack.c.b16 %v3785, %v3784
        %v3813 = vpack.c.b16 %v3787, %v3786
        %v3814 = vpack.c.b16 %v3789, %v3788
        %v3815 = vpack.c.b16 %v3791, %v3790
        %v3816 = vpack.c.b16 %v3793, %v3792
        %v3817 = vpack.c.b16 %v3795, %v3794
        %v3818 = vpack.c.b16 %v3797, %v3796
        %v3819 = vpack.c.b16 %v3799, %v3798
        %v3820 = vpack.c.b16 %v3801, %v3800
        %v3821 = vpack.c.b16 %v3803, %v3802
        %v3822 = vpack.c.b16 %v3805, %v3804
        %v3823 = vpack.c.b16 %v3807, %v3806
        %3840 = vmatprep.subr.bf16.mxu0 0
        %3841 = vmatpush1.bf16.msra.mxu0 %v3808
        %3842 = vmatprep.subr.bf16.mxu0 0
        %3843 = vmatpush1.bf16.msra.mxu0 %v3809
        %3844 = vmatprep.subr.bf16.mxu0 0
        %3845 = vmatpush1.bf16.msra.mxu0 %v3810
        %3846 = vmatprep.subr.bf16.mxu0 0
        %3847 = vmatpush1.bf16.msra.mxu0 %v3811
        %3848 = vmatprep.subr.bf16.mxu0 0
        %3849 = vmatpush1.bf16.msra.mxu0 %v3812
        %3850 = vmatprep.subr.bf16.mxu0 0
        %3851 = vmatpush1.bf16.msra.mxu0 %v3813
        %3852 = vmatprep.subr.bf16.mxu0 0
        %3853 = vmatpush1.bf16.msra.mxu0 %v3814
        %3854 = vmatprep.subr.bf16.mxu0 0
        %3855 = vmatpush1.bf16.msra.mxu0 %v3815
        %3856 = vmatprep.subr.bf16.mxu0 0
        %3857 = vmatpush1.bf16.msra.mxu0 %v3816
        %3858 = vmatprep.subr.bf16.mxu0 0
        %3859 = vmatpush1.bf16.msra.mxu0 %v3817
        %3860 = vmatprep.subr.bf16.mxu0 0
        %3861 = vmatpush1.bf16.msra.mxu0 %v3818
        %3862 = vmatprep.subr.bf16.mxu0 0
        %3863 = vmatpush1.bf16.msra.mxu0 %v3819
        %3864 = vmatprep.subr.bf16.mxu0 0
        %3865 = vmatpush1.bf16.msra.mxu0 %v3820
        %3866 = vmatprep.subr.bf16.mxu0 0
        %3867 = vmatpush1.bf16.msra.mxu0 %v3821
        %3868 = vmatprep.subr.bf16.mxu0 0
        %3869 = vmatpush1.bf16.msra.mxu0 %v3822
        %3870 = vmatprep.subr.bf16.mxu0 0
        %3871 = vmatpush1.bf16.msra.mxu0 %v3823
        %3872 = vmatprep.mubr.bf16.mxu0 %v3007
        %3873 = vmatmul.mubr.bf16.gmra.mrb[0].mxu0 %v3006
        %v3874 = vpop.f32.mrb[0].mxu0
        %v3875 = vadd.f32 0.0, %v3874
        %v3876 = vpop.f32.mrb[0].mxu0
        %v3877 = vpop.f32.mrb[0].mxu0
        %v3878 = vadd.f32 0.0, %v3877
        %v3879 = vpop.f32.mrb[0].mxu0
        %3880 = vmatprep.mubr.bf16.mxu0 %v3009
        %3881 = vmatmul.mubr.bf16.gmra.mrb[0].mxu0 %v3008
        %v3882 = vpop.f32.mrb[0].mxu0
        %v3883 = vadd.f32 0.0, %v3882
        %v3884 = vpop.f32.mrb[0].mxu0
        %v3885 = vpop.f32.mrb[0].mxu0
        %v3886 = vadd.f32 0.0, %v3885
        %v3887 = vpop.f32.mrb[0].mxu0
        %3888 = vmatprep.mubr.bf16.mxu0 %v3011
        %3889 = vmatmul.mubr.bf16.gmra.mrb[0].mxu0 %v3010
        %v3890 = vpop.f32.mrb[0].mxu0
        %v3891 = vadd.f32 0.0, %v3890
        %v3892 = vpop.f32.mrb[0].mxu0
        %v3893 = vpop.f32.mrb[0].mxu0
        %v3894 = vadd.f32 0.0, %v3893
        %v3895 = vpop.f32.mrb[0].mxu0
        %3896 = vmatprep.mubr.bf16.mxu0 %v3013
        %3897 = vmatmul.mubr.bf16.gmra.mrb[0].mxu0 %v3012
        %v3898 = vpop.f32.mrb[0].mxu0
        %v3899 = vadd.f32 0.0, %v3898
        %v3900 = vpop.f32.mrb[0].mxu0
        %v3901 = vpop.f32.mrb[0].mxu0
        %v3902 = vadd.f32 0.0, %v3901
        %v3903 = vpop.f32.mrb[0].mxu0
        %3904 = vmatprep.mubr.bf16.mxu0 %v3015
        %3905 = vmatmul.mubr.bf16.gmra.mrb[0].mxu0 %v3014
        %v3906 = vpop.f32.mrb[0].mxu0
        %v3907 = vadd.f32 0.0, %v3906
        %v3908 = vpop.f32.mrb[0].mxu0
        %v3909 = vpop.f32.mrb[0].mxu0
        %v3910 = vadd.f32 0.0, %v3909
        %v3911 = vpop.f32.mrb[0].mxu0
        %3912 = vmatprep.mubr.bf16.mxu0 %v3017
        %3913 = vmatmul.mubr.bf16.gmra.mrb[0].mxu0 %v3016
        %v3914 = vpop.f32.mrb[0].mxu0
        %v3915 = vadd.f32 0.0, %v3914
        %v3916 = vpop.f32.mrb[0].mxu0
        %v3917 = vpop.f32.mrb[0].mxu0
        %v3918 = vadd.f32 0.0, %v3917
        %v3919 = vpop.f32.mrb[0].mxu0
        %3920 = vmatprep.mubr.bf16.mxu0 %v3019
        %3921 = vmatmul.mubr.bf16.gmra.mrb[0].mxu0 %v3018
        %v3922 = vpop.f32.mrb[0].mxu0
        %v3923 = vadd.f32 0.0, %v3922
        %v3924 = vpop.f32.mrb[0].mxu0
        %v3925 = vpop.f32.mrb[0].mxu0
        %v3926 = vadd.f32 0.0, %v3925
        %v3927 = vpop.f32.mrb[0].mxu0
        %3928 = vmatprep.mubr.bf16.mxu0 %v3021
        %3929 = vmatmul.mubr.bf16.gmra.mrb[0].mxu0 %v3020
        %v3930 = vpop.f32.mrb[0].mxu0
        %v3931 = vadd.f32 0.0, %v3930
        %v3932 = vpop.f32.mrb[0].mxu0
        %v3933 = vpop.f32.mrb[0].mxu0
        %v3934 = vadd.f32 0.0, %v3933
        %v3935 = vpop.f32.mrb[0].mxu0
        %3936 = vdwg.mxu0
        %v3969 = vunpack.c.l.b16 %v1145
        %v3970 = vunpack.c.l.b16 %v1146
        %v3971 = vunpack.c.l.b16 %v1147
        %v3972 = vunpack.c.l.b16 %v1148
        %v3973 = vunpack.c.l.b16 %v1149
        %v3974 = vunpack.c.l.b16 %v1150
        %v3975 = vunpack.c.l.b16 %v1151
        %v3976 = vunpack.c.l.b16 %v1152
        %v3977 = vunpack.c.l.b16 %v1153
        %v3978 = vunpack.c.l.b16 %v1154
        %v3979 = vunpack.c.l.b16 %v1155
        %v3980 = vunpack.c.l.b16 %v1156
        %v3981 = vunpack.c.l.b16 %v1157
        %v3982 = vunpack.c.l.b16 %v1158
        %v3983 = vunpack.c.l.b16 %v1159
        %v3984 = vunpack.c.l.b16 %v1160
        %v3985 = vunpack.c.l.b16 %v1161
        %v3986 = vunpack.c.l.b16 %v1162
        %v3987 = vunpack.c.l.b16 %v1163
        %v3988 = vunpack.c.l.b16 %v1164
        %v3989 = vunpack.c.l.b16 %v1165
        %v3990 = vunpack.c.l.b16 %v1166
        %v3991 = vunpack.c.l.b16 %v1167
        %v3992 = vunpack.c.l.b16 %v1168
        %v3993 = vunpack.c.l.b16 %v1169
        %v3994 = vunpack.c.l.b16 %v1170
        %v3995 = vunpack.c.l.b16 %v1171
        %v3996 = vunpack.c.l.b16 %v1172
        %v3997 = vunpack.c.l.b16 %v1173
        %v3998 = vunpack.c.l.b16 %v1174
        %v3999 = vunpack.c.l.b16 %v1175
        %v4000 = vunpack.c.l.b16 %v1176
        %v4001 = vpack.c.b16 %v3970, %v3969
        %v4002 = vpack.c.b16 %v3972, %v3971
        %v4003 = vpack.c.b16 %v3974, %v3973
        %v4004 = vpack.c.b16 %v3976, %v3975
        %v4005 = vpack.c.b16 %v3978, %v3977
        %v4006 = vpack.c.b16 %v3980, %v3979
        %v4007 = vpack.c.b16 %v3982, %v3981
        %v4008 = vpack.c.b16 %v3984, %v3983
        %v4009 = vpack.c.b16 %v3986, %v3985
        %v4010 = vpack.c.b16 %v3988, %v3987
        %v4011 = vpack.c.b16 %v3990, %v3989
        %v4012 = vpack.c.b16 %v3992, %v3991
        %v4013 = vpack.c.b16 %v3994, %v3993
        %v4014 = vpack.c.b16 %v3996, %v3995
        %v4015 = vpack.c.b16 %v3998, %v3997
        %v4016 = vpack.c.b16 %v4000, %v3999
        %4033 = vmatprep.subr.bf16.mxu0 0
        %4034 = vmatpush1.bf16.msra.mxu0 %v4001
        %4035 = vmatprep.subr.bf16.mxu0 0
        %4036 = vmatpush1.bf16.msra.mxu0 %v4002
        %4037 = vmatprep.subr.bf16.mxu0 0
        %4038 = vmatpush1.bf16.msra.mxu0 %v4003
        %4039 = vmatprep.subr.bf16.mxu0 0
        %4040 = vmatpush1.bf16.msra.mxu0 %v4004
        %4041 = vmatprep.subr.bf16.mxu0 0
        %4042 = vmatpush1.bf16.msra.mxu0 %v4005
        %4043 = vmatprep.subr.bf16.mxu0 0
        %4044 = vmatpush1.bf16.msra.mxu0 %v4006
        %4045 = vmatprep.subr.bf16.mxu0 0
        %4046 = vmatpush1.bf16.msra.mxu0 %v4007
        %4047 = vmatprep.subr.bf16.mxu0 0
        %4048 = vmatpush1.bf16.msra.mxu0 %v4008
        %4049 = vmatprep.subr.bf16.mxu0 0
        %4050 = vmatpush1.bf16.msra.mxu0 %v4009
        %4051 = vmatprep.subr.bf16.mxu0 0
        %4052 = vmatpush1.bf16.msra.mxu0 %v4010
        %4053 = vmatprep.subr.bf16.mxu0 0
        %4054 = vmatpush1.bf16.msra.mxu0 %v4011
        %4055 = vmatprep.subr.bf16.mxu0 0
        %4056 = vmatpush1.bf16.msra.mxu0 %v4012
        %4057 = vmatprep.subr.bf16.mxu0 0
        %4058 = vmatpush1.bf16.msra.mxu0 %v4013
        %4059 = vmatprep.subr.bf16.mxu0 0
        %4060 = vmatpush1.bf16.msra.mxu0 %v4014
        %4061 = vmatprep.subr.bf16.mxu0 0
        %4062 = vmatpush1.bf16.msra.mxu0 %v4015
        %4063 = vmatprep.subr.bf16.mxu0 0
        %4064 = vmatpush1.bf16.msra.mxu0 %v4016
        %4065 = vmatprep.mubr.bf16.mxu0 %v3023
        %4066 = vmatmul.mubr.bf16.gmra.mrb[0].mxu0 %v3022
        %v4067 = vpop.f32.mrb[0].mxu0
        %v4068 = vadd.f32 0.0, %v4067
        %v4069 = vpop.f32.mrb[0].mxu0
        %v4070 = vpop.f32.mrb[0].mxu0
        %v4071 = vadd.f32 0.0, %v4070
        %v4072 = vpop.f32.mrb[0].mxu0
        %4073 = vmatprep.mubr.bf16.mxu0 %v3025
        %4074 = vmatmul.mubr.bf16.gmra.mrb[0].mxu0 %v3024
        %v4075 = vpop.f32.mrb[0].mxu0
        %v4076 = vadd.f32 0.0, %v4075
        %v4077 = vpop.f32.mrb[0].mxu0
        %v4078 = vpop.f32.mrb[0].mxu0
        %v4079 = vadd.f32 0.0, %v4078
        %v4080 = vpop.f32.mrb[0].mxu0
        %4081 = vmatprep.mubr.bf16.mxu0 %v3027
        %4082 = vmatmul.mubr.bf16.gmra.mrb[0].mxu0 %v3026
        %v4083 = vpop.f32.mrb[0].mxu0
        %v4084 = vadd.f32 0.0, %v4083
        %v4085 = vpop.f32.mrb[0].mxu0
        %v4086 = vpop.f32.mrb[0].mxu0
        %v4087 = vadd.f32 0.0, %v4086
        %v4088 = vpop.f32.mrb[0].mxu0
        %4089 = vmatprep.mubr.bf16.mxu0 %v3029
        %4090 = vmatmul.mubr.bf16.gmra.mrb[0].mxu0 %v3028
        %v4091 = vpop.f32.mrb[0].mxu0
        %v4092 = vadd.f32 0.0, %v4091
        %v4093 = vpop.f32.mrb[0].mxu0
        %v4094 = vpop.f32.mrb[0].mxu0
        %v4095 = vadd.f32 0.0, %v4094
        %v4096 = vpop.f32.mrb[0].mxu0
        %4097 = vmatprep.mubr.bf16.mxu0 %v3031
        %4098 = vmatmul.mubr.bf16.gmra.mrb[0].mxu0 %v3030
        %v4099 = vpop.f32.mrb[0].mxu0
        %v4100 = vadd.f32 0.0, %v4099
        %v4101 = vpop.f32.mrb[0].mxu0
        %v4102 = vpop.f32.mrb[0].mxu0
        %v4103 = vadd.f32 0.0, %v4102
        %v4104 = vpop.f32.mrb[0].mxu0
        %4105 = vmatprep.mubr.bf16.mxu0 %v3033
        %4106 = vmatmul.mubr.bf16.gmra.mrb[0].mxu0 %v3032
        %v4107 = vpop.f32.mrb[0].mxu0
        %v4108 = vadd.f32 0.0, %v4107
        %v4109 = vpop.f32.mrb[0].mxu0
        %v4110 = vpop.f32.mrb[0].mxu0
        %v4111 = vadd.f32 0.0, %v4110
        %v4112 = vpop.f32.mrb[0].mxu0
        %4113 = vmatprep.mubr.bf16.mxu0 %v3035
        %4114 = vmatmul.mubr.bf16.gmra.mrb[0].mxu0 %v3034
        %v4115 = vpop.f32.mrb[0].mxu0
        %v4116 = vadd.f32 0.0, %v4115
        %v4117 = vpop.f32.mrb[0].mxu0
        %v4118 = vpop.f32.mrb[0].mxu0
        %v4119 = vadd.f32 0.0, %v4118
        %v4120 = vpop.f32.mrb[0].mxu0
        %4121 = vmatprep.mubr.bf16.mxu0 %v3037
        %4122 = vmatmul.mubr.bf16.gmra.mrb[0].mxu0 %v3036
        %v4123 = vpop.f32.mrb[0].mxu0
        %v4124 = vadd.f32 0.0, %v4123
        %v4125 = vpop.f32.mrb[0].mxu0
        %v4126 = vpop.f32.mrb[0].mxu0
        %v4127 = vadd.f32 0.0, %v4126
        %v4128 = vpop.f32.mrb[0].mxu0
        %4129 = vdwg.mxu0
        %v4130 = vrcp.pop %v3168
        %v4131 = vrcp.pop %v3171
        %v4132 = vrcp.pop %v3174
        %v4133 = vrcp.pop %v3177
        %v4134 = vrcp.pop %v3180
        %v4135 = vrcp.pop %v3183
        %v4136 = vrcp.pop %v3186
        %v4137 = vrcp.pop %v3189
        %v4138 = vrcp.pop %v3192
        %v4139 = vrcp.pop %v3195
        %v4140 = vrcp.pop %v3198
        %v4141 = vrcp.pop %v3201
        %v4142 = vrcp.pop %v3204
        %v4143 = vrcp.pop %v3207
        %v4144 = vrcp.pop %v3210
        %v4145 = vrcp.pop %v3213
        %v4146 = vrcp.pop %v3216
        %v4147 = vrcp.pop %v3219
        %v4148 = vrcp.pop %v3222
        %v4149 = vrcp.pop %v3225
        %v4150 = vrcp.pop %v3228
        %v4151 = vrcp.pop %v3231
        %v4152 = vrcp.pop %v3234
        %v4153 = vrcp.pop %v3237
        %v4154 = vrcp.pop %v3240
        %v4155 = vrcp.pop %v3243
        %v4156 = vrcp.pop %v3246
        %v4157 = vrcp.pop %v3249
        %v4158 = vrcp.pop %v3252
        %v4159 = vrcp.pop %v3255
        %v4160 = vrcp.pop %v3258
        %v4161 = vrcp.pop %v3261
        %v4162 = vrcp.pop %v3264
        %v4163 = vrcp.pop %v3267
        %v4164 = vrcp.pop %v3270
        %v4165 = vrcp.pop %v3273
        %v4166 = vrcp.pop %v3276
        %v4167 = vrcp.pop %v3279
        %v4168 = vrcp.pop %v3282
        %v4169 = vrcp.pop %v3285
        %v4170 = vrcp.pop %v3288
        %v4171 = vrcp.pop %v3291
        %v4172 = vrcp.pop %v3294
        %v4173 = vrcp.pop %v3297
        %v4174 = vrcp.pop %v3300
        %v4175 = vrcp.pop %v3303
        %v4176 = vrcp.pop %v3306
        %v4177 = vrcp.pop %v3309
        %v4178 = vrcp.pop %v3312
        %v4179 = vrcp.pop %v3315
        %v4180 = vrcp.pop %v3318
        %v4181 = vrcp.pop %v3321
        %v4182 = vrcp.pop %v3324
        %v4183 = vrcp.pop %v3327
        %v4184 = vrcp.pop %v3330
        %v4185 = vrcp.pop %v3333
        %v4186 = vrcp.pop %v3336
        %v4187 = vrcp.pop %v3339
        %v4188 = vrcp.pop %v3342
        %v4189 = vrcp.pop %v3345
        %v4190 = vrcp.pop %v3348
        %v4191 = vrcp.pop %v3351
        %v4192 = vrcp.pop %v3354
        %v4193 = vrcp.pop %v3357
        %v4194 = vmul.f32 %v3489, %v4130
        %v4195 = vmul.f32 %v3492, %v4131
        %v4196 = vmul.f32 %v3497, %v4132
        %v4197 = vmul.f32 %v3500, %v4133
        %v4198 = vmul.f32 %v3505, %v4134
        %v4199 = vmul.f32 %v3508, %v4135
        %v4200 = vmul.f32 %v3513, %v4136
        %v4201 = vmul.f32 %v3516, %v4137
        %v4202 = vmul.f32 %v3521, %v4138
        %v4203 = vmul.f32 %v3524, %v4139
        %v4204 = vmul.f32 %v3529, %v4140
        %v4205 = vmul.f32 %v3532, %v4141
        %v4206 = vmul.f32 %v3537, %v4142
        %v4207 = vmul.f32 %v3540, %v4143
        %v4208 = vmul.f32 %v3545, %v4144
        %v4209 = vmul.f32 %v3548, %v4145
        %v4210 = vmul.f32 %v3682, %v4146
        %v4211 = vmul.f32 %v3685, %v4147
        %v4212 = vmul.f32 %v3690, %v4148
        %v4213 = vmul.f32 %v3693, %v4149
        %v4214 = vmul.f32 %v3698, %v4150
        %v4215 = vmul.f32 %v3701, %v4151
        %v4216 = vmul.f32 %v3706, %v4152
        %v4217 = vmul.f32 %v3709, %v4153
        %v4218 = vmul.f32 %v3714, %v4154
        %v4219 = vmul.f32 %v3717, %v4155
        %v4220 = vmul.f32 %v3722, %v4156
        %v4221 = vmul.f32 %v3725, %v4157
        %v4222 = vmul.f32 %v3730, %v4158
        %v4223 = vmul.f32 %v3733, %v4159
        %v4224 = vmul.f32 %v3738, %v4160
        %v4225 = vmul.f32 %v3741, %v4161
        %v4226 = vmul.f32 %v3875, %v4162
        %v4227 = vmul.f32 %v3878, %v4163
        %v4228 = vmul.f32 %v3883, %v4164
        %v4229 = vmul.f32 %v3886, %v4165
        %v4230 = vmul.f32 %v3891, %v4166
        %v4231 = vmul.f32 %v3894, %v4167
        %v4232 = vmul.f32 %v3899, %v4168
        %v4233 = vmul.f32 %v3902, %v4169
        %v4234 = vmul.f32 %v3907, %v4170
        %v4235 = vmul.f32 %v3910, %v4171
        %v4236 = vmul.f32 %v3915, %v4172
        %v4237 = vmul.f32 %v3918, %v4173
        %v4238 = vmul.f32 %v3923, %v4174
        %v4239 = vmul.f32 %v3926, %v4175
        %v4240 = vmul.f32 %v3931, %v4176
        %v4241 = vmul.f32 %v3934, %v4177
        %v4242 = vmul.f32 %v4068, %v4178
        %v4243 = vmul.f32 %v4071, %v4179
        %v4244 = vmul.f32 %v4076, %v4180
        %v4245 = vmul.f32 %v4079, %v4181
        %v4246 = vmul.f32 %v4084, %v4182
        %v4247 = vmul.f32 %v4087, %v4183
        %v4248 = vmul.f32 %v4092, %v4184
        %v4249 = vmul.f32 %v4095, %v4185
        %v4250 = vmul.f32 %v4100, %v4186
        %v4251 = vmul.f32 %v4103, %v4187
        %v4252 = vmul.f32 %v4108, %v4188
        %v4253 = vmul.f32 %v4111, %v4189
        %v4254 = vmul.f32 %v4116, %v4190
        %v4255 = vmul.f32 %v4119, %v4191
        %v4256 = vmul.f32 %v4124, %v4192
        %v4257 = vmul.f32 %v4127, %v4193
        %v4258 = vpack.c.bf16 %v4195, %v4194
        %v4259 = vpack.c.bf16 %v4197, %v4196
        %v4260 = vpack.c.bf16 %v4199, %v4198
        %v4261 = vpack.c.bf16 %v4201, %v4200
        %v4262 = vpack.c.bf16 %v4203, %v4202
        %v4263 = vpack.c.bf16 %v4205, %v4204
        %v4264 = vpack.c.bf16 %v4207, %v4206
        %v4265 = vpack.c.bf16 %v4209, %v4208
        %v4266 = vpack.c.bf16 %v4211, %v4210
        %v4267 = vpack.c.bf16 %v4213, %v4212
        %v4268 = vpack.c.bf16 %v4215, %v4214
        %v4269 = vpack.c.bf16 %v4217, %v4216
        %v4270 = vpack.c.bf16 %v4219, %v4218
        %v4271 = vpack.c.bf16 %v4221, %v4220
        %v4272 = vpack.c.bf16 %v4223, %v4222
        %v4273 = vpack.c.bf16 %v4225, %v4224
        %v4274 = vpack.c.bf16 %v4227, %v4226
        %v4275 = vpack.c.bf16 %v4229, %v4228
        %v4276 = vpack.c.bf16 %v4231, %v4230
        %v4277 = vpack.c.bf16 %v4233, %v4232
        %v4278 = vpack.c.bf16 %v4235, %v4234
        %v4279 = vpack.c.bf16 %v4237, %v4236
        %v4280 = vpack.c.bf16 %v4239, %v4238
        %v4281 = vpack.c.bf16 %v4241, %v4240
        %v4282 = vpack.c.bf16 %v4243, %v4242
        %v4283 = vpack.c.bf16 %v4245, %v4244
        %v4284 = vpack.c.bf16 %v4247, %v4246
        %v4285 = vpack.c.bf16 %v4249, %v4248
        %v4286 = vpack.c.bf16 %v4251, %v4250
        %v4287 = vpack.c.bf16 %v4253, %v4252
        %v4288 = vpack.c.bf16 %v4255, %v4254
        %v4289 = vpack.c.bf16 %v4257, %v4256
        %v4290 = vld [vmem:[%s4] sm:$0xf]
        %v4291 = vld [vmem:[%s4 + $0x4] sm:$0xf]
        %v4292 = vld [vmem:[%s4 + $0x8] sm:$0xf]
        %v4293 = vld [vmem:[%s4 + $0xc] sm:$0xf]
        %v4294 = vld [vmem:[%s4 + $0x10] sm:$0xf]
        %v4295 = vld [vmem:[%s4 + $0x14] sm:$0xf]
        %v4296 = vld [vmem:[%s4 + $0x18] sm:$0xf]
        %v4297 = vld [vmem:[%s4 + $0x1c] sm:$0xf]
        %v4298 = vld [vmem:[%s4 + $0x20] sm:$0xf]
        %v4299 = vld [vmem:[%s4 + $0x24] sm:$0xf]
        %v4300 = vld [vmem:[%s4 + $0x28] sm:$0xf]
        %v4301 = vld [vmem:[%s4 + $0x2c] sm:$0xf]
        %v4302 = vld [vmem:[%s4 + $0x30] sm:$0xf]
        %v4303 = vld [vmem:[%s4 + $0x34] sm:$0xf]
        %v4304 = vld [vmem:[%s4 + $0x38] sm:$0xf]
        %v4305 = vld [vmem:[%s4 + $0x3c] sm:$0xf]
        %v4310 = vunpack.c.l.b16 %v4290
        %v4311 = vunpack.c.l.b16 %v4291
        %v4312 = vunpack.c.l.b16 %v4292
        %v4313 = vunpack.c.l.b16 %v4293
        %v4314 = vpack.c.b16 %v4311, %v4310
        %v4315 = vpack.c.b16 %v4313, %v4312
        %v4319 = vsel %vm1297, %v4258, 0
        %v4322 = vsel %vm1297, %v4259, 0
        %v4325 = vsel %vm1297, %v4260, 0
        %v4328 = vsel %vm1297, %v4261, 0
        %v4331 = vsel %vm1297, %v4262, 0
        %v4334 = vsel %vm1297, %v4263, 0
        %v4337 = vsel %vm1297, %v4264, 0
        %v4340 = vsel %vm1297, %v4265, 0
        %4342 = vmatprep.subr.bf16.mxu0 0
        %4343 = vmatpush1.bf16.msra.mxu0 %v4314
        %4344 = vmatprep.subr.bf16.mxu0 0
        %4345 = vmatpush1.bf16.msra.mxu0 %v4315
        %4346 = vmatprep.subr.bf16.mxu0 0
        %4347 = vmatpush1.bf16.msra.mxu0 0
        %4348 = vmatprep.subr.bf16.mxu0 0
        %4349 = vmatpush1.bf16.msra.mxu0 0
        %4350 = vmatprep.subr.bf16.mxu0 0
        %4351 = vmatpush1.bf16.msra.mxu0 0
        %4352 = vmatprep.subr.bf16.mxu0 0
        %4353 = vmatpush1.bf16.msra.mxu0 0
        %4354 = vmatprep.subr.bf16.mxu0 0
        %4355 = vmatpush1.bf16.msra.mxu0 0
        %4356 = vmatprep.subr.bf16.mxu0 0
        %4357 = vmatpush1.bf16.msra.mxu0 0
        %4358 = vmatprep.subr.bf16.mxu0 0
        %4359 = vmatpush1.bf16.msra.mxu0 0
        %4360 = vmatprep.subr.bf16.mxu0 0
        %4361 = vmatpush1.bf16.msra.mxu0 0
        %4362 = vmatprep.subr.bf16.mxu0 0
        %4363 = vmatpush1.bf16.msra.mxu0 0
        %4364 = vmatprep.subr.bf16.mxu0 0
        %4365 = vmatpush1.bf16.msra.mxu0 0
        %4366 = vmatprep.subr.bf16.mxu0 0
        %4367 = vmatpush1.bf16.msra.mxu0 0
        %4368 = vmatprep.subr.bf16.mxu0 0
        %4369 = vmatpush1.bf16.msra.mxu0 0
        %4370 = vmatprep.subr.bf16.mxu0 0
        %4371 = vmatpush1.bf16.msra.mxu0 0
        %4372 = vmatprep.subr.bf16.mxu0 0
        %4373 = vmatpush1.bf16.msra.mxu0 0
        %4374 = vmatprep.mubr.bf16.mxu0 0
        %4375 = vmatmul.mubr.bf16.gmra.mrb[0].mxu0 %v4319
        %v4376 = vpop.f32.mrb[0].mxu0
        %v4377 = vadd.f32 0.0, %v4376
        %v4378 = vpop.f32.mrb[0].mxu0
        %v4379 = vpop.f32.mrb[0].mxu0
        %v4380 = vadd.f32 0.0, %v4379
        %v4381 = vpop.f32.mrb[0].mxu0
        %4382 = vmatprep.mubr.bf16.mxu0 0
        %4383 = vmatmul.mubr.bf16.gmra.mrb[0].mxu0 %v4322
        %v4384 = vpop.f32.mrb[0].mxu0
        %v4385 = vadd.f32 0.0, %v4384
        %v4386 = vpop.f32.mrb[0].mxu0
        %v4387 = vpop.f32.mrb[0].mxu0
        %v4388 = vadd.f32 0.0, %v4387
        %v4389 = vpop.f32.mrb[0].mxu0
        %4390 = vmatprep.mubr.bf16.mxu0 0
        %4391 = vmatmul.mubr.bf16.gmra.mrb[0].mxu0 %v4325
        %v4392 = vpop.f32.mrb[0].mxu0
        %v4393 = vadd.f32 0.0, %v4392
        %v4394 = vpop.f32.mrb[0].mxu0
        %v4395 = vpop.f32.mrb[0].mxu0
        %v4396 = vadd.f32 0.0, %v4395
        %v4397 = vpop.f32.mrb[0].mxu0
        %4398 = vmatprep.mubr.bf16.mxu0 0
        %4399 = vmatmul.mubr.bf16.gmra.mrb[0].mxu0 %v4328
        %v4400 = vpop.f32.mrb[0].mxu0
        %v4401 = vadd.f32 0.0, %v4400
        %v4402 = vpop.f32.mrb[0].mxu0
        %v4403 = vpop.f32.mrb[0].mxu0
        %v4404 = vadd.f32 0.0, %v4403
        %v4405 = vpop.f32.mrb[0].mxu0
        %4406 = vmatprep.mubr.bf16.mxu0 0
        %4407 = vmatmul.mubr.bf16.gmra.mrb[0].mxu0 %v4331
        %v4408 = vpop.f32.mrb[0].mxu0
        %v4409 = vadd.f32 0.0, %v4408
        %v4410 = vpop.f32.mrb[0].mxu0
        %v4411 = vpop.f32.mrb[0].mxu0
        %v4412 = vadd.f32 0.0, %v4411
        %v4413 = vpop.f32.mrb[0].mxu0
        %4414 = vmatprep.mubr.bf16.mxu0 0
        %4415 = vmatmul.mubr.bf16.gmra.mrb[0].mxu0 %v4334
        %v4416 = vpop.f32.mrb[0].mxu0
        %v4417 = vadd.f32 0.0, %v4416
        %v4418 = vpop.f32.mrb[0].mxu0
        %v4419 = vpop.f32.mrb[0].mxu0
        %v4420 = vadd.f32 0.0, %v4419
        %v4421 = vpop.f32.mrb[0].mxu0
        %4422 = vmatprep.mubr.bf16.mxu0 0
        %4423 = vmatmul.mubr.bf16.gmra.mrb[0].mxu0 %v4337
        %v4424 = vpop.f32.mrb[0].mxu0
        %v4425 = vadd.f32 0.0, %v4424
        %v4426 = vpop.f32.mrb[0].mxu0
        %v4427 = vpop.f32.mrb[0].mxu0
        %v4428 = vadd.f32 0.0, %v4427
        %v4429 = vpop.f32.mrb[0].mxu0
        %4430 = vmatprep.mubr.bf16.mxu0 0
        %4431 = vmatmul.mubr.bf16.gmra.mrb[0].mxu0 %v4340
        %v4432 = vpop.f32.mrb[0].mxu0
        %v4433 = vadd.f32 0.0, %v4432
        %v4434 = vpop.f32.mrb[0].mxu0
        %v4435 = vpop.f32.mrb[0].mxu0
        %v4436 = vadd.f32 0.0, %v4435
        %v4437 = vpop.f32.mrb[0].mxu0
        %4438 = vdwg.mxu0
        %v4443 = vunpack.c.l.b16 %v4294
        %v4444 = vunpack.c.l.b16 %v4295
        %v4445 = vunpack.c.l.b16 %v4296
        %v4446 = vunpack.c.l.b16 %v4297
        %v4447 = vpack.c.b16 %v4444, %v4443
        %v4448 = vpack.c.b16 %v4446, %v4445
        %v4452 = vsel %vm1297, %v4266, 0
        %v4455 = vsel %vm1297, %v4267, 0
        %v4458 = vsel %vm1297, %v4268, 0
        %v4461 = vsel %vm1297, %v4269, 0
        %v4464 = vsel %vm1297, %v4270, 0
        %v4467 = vsel %vm1297, %v4271, 0
        %v4470 = vsel %vm1297, %v4272, 0
        %v4473 = vsel %vm1297, %v4273, 0
        %4475 = vmatprep.subr.bf16.mxu0 0
        %4476 = vmatpush1.bf16.msra.mxu0 %v4447
        %4477 = vmatprep.subr.bf16.mxu0 0
        %4478 = vmatpush1.bf16.msra.mxu0 %v4448
        %4479 = vmatprep.subr.bf16.mxu0 0
        %4480 = vmatpush1.bf16.msra.mxu0 0
        %4481 = vmatprep.subr.bf16.mxu0 0
        %4482 = vmatpush1.bf16.msra.mxu0 0
        %4483 = vmatprep.subr.bf16.mxu0 0
        %4484 = vmatpush1.bf16.msra.mxu0 0
        %4485 = vmatprep.subr.bf16.mxu0 0
        %4486 = vmatpush1.bf16.msra.mxu0 0
        %4487 = vmatprep.subr.bf16.mxu0 0
        %4488 = vmatpush1.bf16.msra.mxu0 0
        %4489 = vmatprep.subr.bf16.mxu0 0
        %4490 = vmatpush1.bf16.msra.mxu0 0
        %4491 = vmatprep.subr.bf16.mxu0 0
        %4492 = vmatpush1.bf16.msra.mxu0 0
        %4493 = vmatprep.subr.bf16.mxu0 0
        %4494 = vmatpush1.bf16.msra.mxu0 0
        %4495 = vmatprep.subr.bf16.mxu0 0
        %4496 = vmatpush1.bf16.msra.mxu0 0
        %4497 = vmatprep.subr.bf16.mxu0 0
        %4498 = vmatpush1.bf16.msra.mxu0 0
        %4499 = vmatprep.subr.bf16.mxu0 0
        %4500 = vmatpush1.bf16.msra.mxu0 0
        %4501 = vmatprep.subr.bf16.mxu0 0
        %4502 = vmatpush1.bf16.msra.mxu0 0
        %4503 = vmatprep.subr.bf16.mxu0 0
        %4504 = vmatpush1.bf16.msra.mxu0 0
        %4505 = vmatprep.subr.bf16.mxu0 0
        %4506 = vmatpush1.bf16.msra.mxu0 0
        %4507 = vmatprep.mubr.bf16.mxu0 0
        %4508 = vmatmul.mubr.bf16.gmra.mrb[0].mxu0 %v4452
        %v4509 = vpop.f32.mrb[0].mxu0
        %v4510 = vadd.f32 0.0, %v4509
        %v4511 = vpop.f32.mrb[0].mxu0
        %v4512 = vpop.f32.mrb[0].mxu0
        %v4513 = vadd.f32 0.0, %v4512
        %v4514 = vpop.f32.mrb[0].mxu0
        %4515 = vmatprep.mubr.bf16.mxu0 0
        %4516 = vmatmul.mubr.bf16.gmra.mrb[0].mxu0 %v4455
        %v4517 = vpop.f32.mrb[0].mxu0
        %v4518 = vadd.f32 0.0, %v4517
        %v4519 = vpop.f32.mrb[0].mxu0
        %v4520 = vpop.f32.mrb[0].mxu0
        %v4521 = vadd.f32 0.0, %v4520
        %v4522 = vpop.f32.mrb[0].mxu0
        %4523 = vmatprep.mubr.bf16.mxu0 0
        %4524 = vmatmul.mubr.bf16.gmra.mrb[0].mxu0 %v4458
        %v4525 = vpop.f32.mrb[0].mxu0
        %v4526 = vadd.f32 0.0, %v4525
        %v4527 = vpop.f32.mrb[0].mxu0
        %v4528 = vpop.f32.mrb[0].mxu0
        %v4529 = vadd.f32 0.0, %v4528
        %v4530 = vpop.f32.mrb[0].mxu0
        %4531 = vmatprep.mubr.bf16.mxu0 0
        %4532 = vmatmul.mubr.bf16.gmra.mrb[0].mxu0 %v4461
        %v4533 = vpop.f32.mrb[0].mxu0
        %v4534 = vadd.f32 0.0, %v4533
        %v4535 = vpop.f32.mrb[0].mxu0
        %v4536 = vpop.f32.mrb[0].mxu0
        %v4537 = vadd.f32 0.0, %v4536
        %v4538 = vpop.f32.mrb[0].mxu0
        %4539 = vmatprep.mubr.bf16.mxu0 0
        %4540 = vmatmul.mubr.bf16.gmra.mrb[0].mxu0 %v4464
        %v4541 = vpop.f32.mrb[0].mxu0
        %v4542 = vadd.f32 0.0, %v4541
        %v4543 = vpop.f32.mrb[0].mxu0
        %v4544 = vpop.f32.mrb[0].mxu0
        %v4545 = vadd.f32 0.0, %v4544
        %v4546 = vpop.f32.mrb[0].mxu0
        %4547 = vmatprep.mubr.bf16.mxu0 0
        %4548 = vmatmul.mubr.bf16.gmra.mrb[0].mxu0 %v4467
        %v4549 = vpop.f32.mrb[0].mxu0
        %v4550 = vadd.f32 0.0, %v4549
        %v4551 = vpop.f32.mrb[0].mxu0
        %v4552 = vpop.f32.mrb[0].mxu0
        %v4553 = vadd.f32 0.0, %v4552
        %v4554 = vpop.f32.mrb[0].mxu0
        %4555 = vmatprep.mubr.bf16.mxu0 0
        %4556 = vmatmul.mubr.bf16.gmra.mrb[0].mxu0 %v4470
        %v4557 = vpop.f32.mrb[0].mxu0
        %v4558 = vadd.f32 0.0, %v4557
        %v4559 = vpop.f32.mrb[0].mxu0
        %v4560 = vpop.f32.mrb[0].mxu0
        %v4561 = vadd.f32 0.0, %v4560
        %v4562 = vpop.f32.mrb[0].mxu0
        %4563 = vmatprep.mubr.bf16.mxu0 0
        %4564 = vmatmul.mubr.bf16.gmra.mrb[0].mxu0 %v4473
        %v4565 = vpop.f32.mrb[0].mxu0
        %v4566 = vadd.f32 0.0, %v4565
        %v4567 = vpop.f32.mrb[0].mxu0
        %v4568 = vpop.f32.mrb[0].mxu0
        %v4569 = vadd.f32 0.0, %v4568
        %v4570 = vpop.f32.mrb[0].mxu0
        %4571 = vdwg.mxu0
        %v4576 = vunpack.c.l.b16 %v4298
        %v4577 = vunpack.c.l.b16 %v4299
        %v4578 = vunpack.c.l.b16 %v4300
        %v4579 = vunpack.c.l.b16 %v4301
        %v4580 = vpack.c.b16 %v4577, %v4576
        %v4581 = vpack.c.b16 %v4579, %v4578
        %v4585 = vsel %vm1297, %v4274, 0
        %v4588 = vsel %vm1297, %v4275, 0
        %v4591 = vsel %vm1297, %v4276, 0
        %v4594 = vsel %vm1297, %v4277, 0
        %v4597 = vsel %vm1297, %v4278, 0
        %v4600 = vsel %vm1297, %v4279, 0
        %v4603 = vsel %vm1297, %v4280, 0
        %v4606 = vsel %vm1297, %v4281, 0
        %4608 = vmatprep.subr.bf16.mxu0 0
        %4609 = vmatpush1.bf16.msra.mxu0 %v4580
        %4610 = vmatprep.subr.bf16.mxu0 0
        %4611 = vmatpush1.bf16.msra.mxu0 %v4581
        %4612 = vmatprep.subr.bf16.mxu0 0
        %4613 = vmatpush1.bf16.msra.mxu0 0
        %4614 = vmatprep.subr.bf16.mxu0 0
        %4615 = vmatpush1.bf16.msra.mxu0 0
        %4616 = vmatprep.subr.bf16.mxu0 0
        %4617 = vmatpush1.bf16.msra.mxu0 0
        %4618 = vmatprep.subr.bf16.mxu0 0
        %4619 = vmatpush1.bf16.msra.mxu0 0
        %4620 = vmatprep.subr.bf16.mxu0 0
        %4621 = vmatpush1.bf16.msra.mxu0 0
        %4622 = vmatprep.subr.bf16.mxu0 0
        %4623 = vmatpush1.bf16.msra.mxu0 0
        %4624 = vmatprep.subr.bf16.mxu0 0
        %4625 = vmatpush1.bf16.msra.mxu0 0
        %4626 = vmatprep.subr.bf16.mxu0 0
        %4627 = vmatpush1.bf16.msra.mxu0 0
        %4628 = vmatprep.subr.bf16.mxu0 0
        %4629 = vmatpush1.bf16.msra.mxu0 0
        %4630 = vmatprep.subr.bf16.mxu0 0
        %4631 = vmatpush1.bf16.msra.mxu0 0
        %4632 = vmatprep.subr.bf16.mxu0 0
        %4633 = vmatpush1.bf16.msra.mxu0 0
        %4634 = vmatprep.subr.bf16.mxu0 0
        %4635 = vmatpush1.bf16.msra.mxu0 0
        %4636 = vmatprep.subr.bf16.mxu0 0
        %4637 = vmatpush1.bf16.msra.mxu0 0
        %4638 = vmatprep.subr.bf16.mxu0 0
        %4639 = vmatpush1.bf16.msra.mxu0 0
        %4640 = vmatprep.mubr.bf16.mxu0 0
        %4641 = vmatmul.mubr.bf16.gmra.mrb[0].mxu0 %v4585
        %v4642 = vpop.f32.mrb[0].mxu0
        %v4643 = vadd.f32 0.0, %v4642
        %v4644 = vpop.f32.mrb[0].mxu0
        %v4645 = vpop.f32.mrb[0].mxu0
        %v4646 = vadd.f32 0.0, %v4645
        %v4647 = vpop.f32.mrb[0].mxu0
        %4648 = vmatprep.mubr.bf16.mxu0 0
        %4649 = vmatmul.mubr.bf16.gmra.mrb[0].mxu0 %v4588
        %v4650 = vpop.f32.mrb[0].mxu0
        %v4651 = vadd.f32 0.0, %v4650
        %v4652 = vpop.f32.mrb[0].mxu0
        %v4653 = vpop.f32.mrb[0].mxu0
        %v4654 = vadd.f32 0.0, %v4653
        %v4655 = vpop.f32.mrb[0].mxu0
        %4656 = vmatprep.mubr.bf16.mxu0 0
        %4657 = vmatmul.mubr.bf16.gmra.mrb[0].mxu0 %v4591
        %v4658 = vpop.f32.mrb[0].mxu0
        %v4659 = vadd.f32 0.0, %v4658
        %v4660 = vpop.f32.mrb[0].mxu0
        %v4661 = vpop.f32.mrb[0].mxu0
        %v4662 = vadd.f32 0.0, %v4661
        %v4663 = vpop.f32.mrb[0].mxu0
        %4664 = vmatprep.mubr.bf16.mxu0 0
        %4665 = vmatmul.mubr.bf16.gmra.mrb[0].mxu0 %v4594
        %v4666 = vpop.f32.mrb[0].mxu0
        %v4667 = vadd.f32 0.0, %v4666
        %v4668 = vpop.f32.mrb[0].mxu0
        %v4669 = vpop.f32.mrb[0].mxu0
        %v4670 = vadd.f32 0.0, %v4669
        %v4671 = vpop.f32.mrb[0].mxu0
        %4672 = vmatprep.mubr.bf16.mxu0 0
        %4673 = vmatmul.mubr.bf16.gmra.mrb[0].mxu0 %v4597
        %v4674 = vpop.f32.mrb[0].mxu0
        %v4675 = vadd.f32 0.0, %v4674
        %v4676 = vpop.f32.mrb[0].mxu0
        %v4677 = vpop.f32.mrb[0].mxu0
        %v4678 = vadd.f32 0.0, %v4677
        %v4679 = vpop.f32.mrb[0].mxu0
        %4680 = vmatprep.mubr.bf16.mxu0 0
        %4681 = vmatmul.mubr.bf16.gmra.mrb[0].mxu0 %v4600
        %v4682 = vpop.f32.mrb[0].mxu0
        %v4683 = vadd.f32 0.0, %v4682
        %v4684 = vpop.f32.mrb[0].mxu0
        %v4685 = vpop.f32.mrb[0].mxu0
        %v4686 = vadd.f32 0.0, %v4685
        %v4687 = vpop.f32.mrb[0].mxu0
        %4688 = vmatprep.mubr.bf16.mxu0 0
        %4689 = vmatmul.mubr.bf16.gmra.mrb[0].mxu0 %v4603
        %v4690 = vpop.f32.mrb[0].mxu0
        %v4691 = vadd.f32 0.0, %v4690
        %v4692 = vpop.f32.mrb[0].mxu0
        %v4693 = vpop.f32.mrb[0].mxu0
        %v4694 = vadd.f32 0.0, %v4693
        %v4695 = vpop.f32.mrb[0].mxu0
        %4696 = vmatprep.mubr.bf16.mxu0 0
        %4697 = vmatmul.mubr.bf16.gmra.mrb[0].mxu0 %v4606
        %v4698 = vpop.f32.mrb[0].mxu0
        %v4699 = vadd.f32 0.0, %v4698
        %v4700 = vpop.f32.mrb[0].mxu0
        %v4701 = vpop.f32.mrb[0].mxu0
        %v4702 = vadd.f32 0.0, %v4701
        %v4703 = vpop.f32.mrb[0].mxu0
        %4704 = vdwg.mxu0
        %v4709 = vunpack.c.l.b16 %v4302
        %v4710 = vunpack.c.l.b16 %v4303
        %v4711 = vunpack.c.l.b16 %v4304
        %v4712 = vunpack.c.l.b16 %v4305
        %v4713 = vpack.c.b16 %v4710, %v4709
        %v4714 = vpack.c.b16 %v4712, %v4711
        %v4718 = vsel %vm1297, %v4282, 0
        %v4721 = vsel %vm1297, %v4283, 0
        %v4724 = vsel %vm1297, %v4284, 0
        %v4727 = vsel %vm1297, %v4285, 0
        %v4730 = vsel %vm1297, %v4286, 0
        %v4733 = vsel %vm1297, %v4287, 0
        %v4736 = vsel %vm1297, %v4288, 0
        %v4739 = vsel %vm1297, %v4289, 0
        %4741 = vmatprep.subr.bf16.mxu0 0
        %4742 = vmatpush1.bf16.msra.mxu0 %v4713
        %4743 = vmatprep.subr.bf16.mxu0 0
        %4744 = vmatpush1.bf16.msra.mxu0 %v4714
        %4745 = vmatprep.subr.bf16.mxu0 0
        %4746 = vmatpush1.bf16.msra.mxu0 0
        %4747 = vmatprep.subr.bf16.mxu0 0
        %4748 = vmatpush1.bf16.msra.mxu0 0
        %4749 = vmatprep.subr.bf16.mxu0 0
        %4750 = vmatpush1.bf16.msra.mxu0 0
        %4751 = vmatprep.subr.bf16.mxu0 0
        %4752 = vmatpush1.bf16.msra.mxu0 0
        %4753 = vmatprep.subr.bf16.mxu0 0
        %4754 = vmatpush1.bf16.msra.mxu0 0
        %4755 = vmatprep.subr.bf16.mxu0 0
        %4756 = vmatpush1.bf16.msra.mxu0 0
        %4757 = vmatprep.subr.bf16.mxu0 0
        %4758 = vmatpush1.bf16.msra.mxu0 0
        %4759 = vmatprep.subr.bf16.mxu0 0
        %4760 = vmatpush1.bf16.msra.mxu0 0
        %4761 = vmatprep.subr.bf16.mxu0 0
        %4762 = vmatpush1.bf16.msra.mxu0 0
        %4763 = vmatprep.subr.bf16.mxu0 0
        %4764 = vmatpush1.bf16.msra.mxu0 0
        %4765 = vmatprep.subr.bf16.mxu0 0
        %4766 = vmatpush1.bf16.msra.mxu0 0
        %4767 = vmatprep.subr.bf16.mxu0 0
        %4768 = vmatpush1.bf16.msra.mxu0 0
        %4769 = vmatprep.subr.bf16.mxu0 0
        %4770 = vmatpush1.bf16.msra.mxu0 0
        %4771 = vmatprep.subr.bf16.mxu0 0
        %4772 = vmatpush1.bf16.msra.mxu0 0
        %4773 = vmatprep.mubr.bf16.mxu0 0
        %4774 = vmatmul.mubr.bf16.gmra.mrb[0].mxu0 %v4718
        %v4775 = vpop.f32.mrb[0].mxu0
        %v4776 = vadd.f32 0.0, %v4775
        %v4777 = vpop.f32.mrb[0].mxu0
        %v4778 = vpop.f32.mrb[0].mxu0
        %v4779 = vadd.f32 0.0, %v4778
        %v4780 = vpop.f32.mrb[0].mxu0
        %4781 = vmatprep.mubr.bf16.mxu0 0
        %4782 = vmatmul.mubr.bf16.gmra.mrb[0].mxu0 %v4721
        %v4783 = vpop.f32.mrb[0].mxu0
        %v4784 = vadd.f32 0.0, %v4783
        %v4785 = vpop.f32.mrb[0].mxu0
        %v4786 = vpop.f32.mrb[0].mxu0
        %v4787 = vadd.f32 0.0, %v4786
        %v4788 = vpop.f32.mrb[0].mxu0
        %4789 = vmatprep.mubr.bf16.mxu0 0
        %4790 = vmatmul.mubr.bf16.gmra.mrb[0].mxu0 %v4724
        %v4791 = vpop.f32.mrb[0].mxu0
        %v4792 = vadd.f32 0.0, %v4791
        %v4793 = vpop.f32.mrb[0].mxu0
        %v4794 = vpop.f32.mrb[0].mxu0
        %v4795 = vadd.f32 0.0, %v4794
        %v4796 = vpop.f32.mrb[0].mxu0
        %4797 = vmatprep.mubr.bf16.mxu0 0
        %4798 = vmatmul.mubr.bf16.gmra.mrb[0].mxu0 %v4727
        %v4799 = vpop.f32.mrb[0].mxu0
        %v4800 = vadd.f32 0.0, %v4799
        %v4801 = vpop.f32.mrb[0].mxu0
        %v4802 = vpop.f32.mrb[0].mxu0
        %v4803 = vadd.f32 0.0, %v4802
        %v4804 = vpop.f32.mrb[0].mxu0
        %4805 = vmatprep.mubr.bf16.mxu0 0
        %4806 = vmatmul.mubr.bf16.gmra.mrb[0].mxu0 %v4730
        %v4807 = vpop.f32.mrb[0].mxu0
        %v4808 = vadd.f32 0.0, %v4807
        %v4809 = vpop.f32.mrb[0].mxu0
        %v4810 = vpop.f32.mrb[0].mxu0
        %v4811 = vadd.f32 0.0, %v4810
        %v4812 = vpop.f32.mrb[0].mxu0
        %4813 = vmatprep.mubr.bf16.mxu0 0
        %4814 = vmatmul.mubr.bf16.gmra.mrb[0].mxu0 %v4733
        %v4815 = vpop.f32.mrb[0].mxu0
        %v4816 = vadd.f32 0.0, %v4815
        %v4817 = vpop.f32.mrb[0].mxu0
        %v4818 = vpop.f32.mrb[0].mxu0
        %v4819 = vadd.f32 0.0, %v4818
        %v4820 = vpop.f32.mrb[0].mxu0
        %4821 = vmatprep.mubr.bf16.mxu0 0
        %4822 = vmatmul.mubr.bf16.gmra.mrb[0].mxu0 %v4736
        %v4823 = vpop.f32.mrb[0].mxu0
        %v4824 = vadd.f32 0.0, %v4823
        %v4825 = vpop.f32.mrb[0].mxu0
        %v4826 = vpop.f32.mrb[0].mxu0
        %v4827 = vadd.f32 0.0, %v4826
        %v4828 = vpop.f32.mrb[0].mxu0
        %4829 = vmatprep.mubr.bf16.mxu0 0
        %4830 = vmatmul.mubr.bf16.gmra.mrb[0].mxu0 %v4739
        %v4831 = vpop.f32.mrb[0].mxu0
        %v4832 = vadd.f32 0.0, %v4831
        %v4833 = vpop.f32.mrb[0].mxu0
        %v4834 = vpop.f32.mrb[0].mxu0
        %v4835 = vadd.f32 0.0, %v4834
        %v4836 = vpop.f32.mrb[0].mxu0
        %4837 = vdwg.mxu0
        %v4838 = vadd.f32 %v4377, %v4510
        %v4839 = vadd.f32 %v4838, %v4643
        %v4840 = vadd.f32 %v4839, %v4776
        %v4841 = vadd.f32 %v4380, %v4513
        %v4842 = vadd.f32 %v4841, %v4646
        %v4843 = vadd.f32 %v4842, %v4779
        %v4844 = vadd.f32 %v4385, %v4518
        %v4845 = vadd.f32 %v4844, %v4651
        %v4846 = vadd.f32 %v4845, %v4784
        %v4847 = vadd.f32 %v4388, %v4521
        %v4848 = vadd.f32 %v4847, %v4654
        %v4849 = vadd.f32 %v4848, %v4787
        %v4850 = vadd.f32 %v4393, %v4526
        %v4851 = vadd.f32 %v4850, %v4659
        %v4852 = vadd.f32 %v4851, %v4792
        %v4853 = vadd.f32 %v4396, %v4529
        %v4854 = vadd.f32 %v4853, %v4662
        %v4855 = vadd.f32 %v4854, %v4795
        %v4856 = vadd.f32 %v4401, %v4534
        %v4857 = vadd.f32 %v4856, %v4667
        %v4858 = vadd.f32 %v4857, %v4800
        %v4859 = vadd.f32 %v4404, %v4537
        %v4860 = vadd.f32 %v4859, %v4670
        %v4861 = vadd.f32 %v4860, %v4803
        %v4862 = vadd.f32 %v4409, %v4542
        %v4863 = vadd.f32 %v4862, %v4675
        %v4864 = vadd.f32 %v4863, %v4808
        %v4865 = vadd.f32 %v4412, %v4545
        %v4866 = vadd.f32 %v4865, %v4678
        %v4867 = vadd.f32 %v4866, %v4811
        %v4868 = vadd.f32 %v4417, %v4550
        %v4869 = vadd.f32 %v4868, %v4683
        %v4870 = vadd.f32 %v4869, %v4816
        %v4871 = vadd.f32 %v4420, %v4553
        %v4872 = vadd.f32 %v4871, %v4686
        %v4873 = vadd.f32 %v4872, %v4819
        %v4874 = vadd.f32 %v4425, %v4558
        %v4875 = vadd.f32 %v4874, %v4691
        %v4876 = vadd.f32 %v4875, %v4824
        %v4877 = vadd.f32 %v4428, %v4561
        %v4878 = vadd.f32 %v4877, %v4694
        %v4879 = vadd.f32 %v4878, %v4827
        %v4880 = vadd.f32 %v4433, %v4566
        %v4881 = vadd.f32 %v4880, %v4699
        %v4882 = vadd.f32 %v4881, %v4832
        %v4883 = vadd.f32 %v4436, %v4569
        %v4884 = vadd.f32 %v4883, %v4702
        %v4885 = vadd.f32 %v4884, %v4835
        %v4886 = vld [vmem:[%s5] sm:$0x1]
        %v4888 = vlaneseq
        %v4889 = vshrl.u32 %v4888, 7
        %v4890 = vsub.s32 0, %v4889
        %v4891 = vrot.slane %v4886, %v4890
        %v4893 = vadd.f32 %v4840, %v4891
        %v4894 = vadd.f32 %v4843, %v4891
        %v4895 = vadd.f32 %v4846, %v4891
        %v4896 = vadd.f32 %v4849, %v4891
        %v4897 = vadd.f32 %v4852, %v4891
        %v4898 = vadd.f32 %v4855, %v4891
        %v4899 = vadd.f32 %v4858, %v4891
        %v4900 = vadd.f32 %v4861, %v4891
        %v4901 = vadd.f32 %v4864, %v4891
        %v4902 = vadd.f32 %v4867, %v4891
        %v4903 = vadd.f32 %v4870, %v4891
        %v4904 = vadd.f32 %v4873, %v4891
        %v4905 = vadd.f32 %v4876, %v4891
        %v4906 = vadd.f32 %v4879, %v4891
        %v4907 = vadd.f32 %v4882, %v4891
        %v4908 = vadd.f32 %v4885, %v4891
        %v4909 = vld [vmem:[%s853] sm:$0xff]
        %v4910 = vld [vmem:[%s853 + $0x8] sm:$0xff]
        %v4911 = vld [vmem:[%s853 + $0x10] sm:$0xff]
        %v4912 = vld [vmem:[%s853 + $0x18] sm:$0xff]
        %v4913 = vld [vmem:[%s853 + $0x20] sm:$0xff]
        %v4914 = vld [vmem:[%s853 + $0x28] sm:$0xff]
        %v4915 = vld [vmem:[%s853 + $0x30] sm:$0xff]
        %v4916 = vld [vmem:[%s853 + $0x38] sm:$0xff]
        %v4917 = vld [vmem:[%s853 + $0x40] sm:$0xff]
        %v4918 = vld [vmem:[%s853 + $0x48] sm:$0xff]
        %v4919 = vld [vmem:[%s853 + $0x50] sm:$0xff]
        %v4920 = vld [vmem:[%s853 + $0x58] sm:$0xff]
        %v4921 = vld [vmem:[%s853 + $0x60] sm:$0xff]
        %v4922 = vld [vmem:[%s853 + $0x68] sm:$0xff]
        %v4923 = vld [vmem:[%s853 + $0x70] sm:$0xff]
        %v4924 = vld [vmem:[%s853 + $0x78] sm:$0xff]
        %v4925 = vadd.f32 %v4893, %v4909
        %v4926 = vadd.f32 %v4894, %v4910
        %v4927 = vadd.f32 %v4895, %v4911
        %v4928 = vadd.f32 %v4896, %v4912
        %v4929 = vadd.f32 %v4897, %v4913
        %v4930 = vadd.f32 %v4898, %v4914
        %v4931 = vadd.f32 %v4899, %v4915
        %v4932 = vadd.f32 %v4900, %v4916
        %v4933 = vadd.f32 %v4901, %v4917
        %v4934 = vadd.f32 %v4902, %v4918
        %v4935 = vadd.f32 %v4903, %v4919
        %v4936 = vadd.f32 %v4904, %v4920
        %v4937 = vadd.f32 %v4905, %v4921
        %v4938 = vadd.f32 %v4906, %v4922
        %v4939 = vadd.f32 %v4907, %v4923
        %v4940 = vadd.f32 %v4908, %v4924
        %v4941 = vld [vmem:[%s10] sm:$0x1]
        %v4942 = vld [vmem:[%s11] sm:$0x1]
        %4943 = vadd.xlane.f32.xlu0 %v4925
        %v4944 = vpop.xlane.xlu0 %4943
        %4945 = vadd.xlane.f32.xlu0 %v4926
        %v4946 = vpop.xlane.xlu0 %4945
        %4947 = vadd.xlane.f32.xlu0 %v4927
        %v4948 = vpop.xlane.xlu0 %4947
        %4949 = vadd.xlane.f32.xlu0 %v4928
        %v4950 = vpop.xlane.xlu0 %4949
        %4951 = vadd.xlane.f32.xlu0 %v4929
        %v4952 = vpop.xlane.xlu0 %4951
        %4953 = vadd.xlane.f32.xlu0 %v4930
        %v4954 = vpop.xlane.xlu0 %4953
        %4955 = vadd.xlane.f32.xlu0 %v4931
        %v4956 = vpop.xlane.xlu0 %4955
        %4957 = vadd.xlane.f32.xlu0 %v4932
        %v4958 = vpop.xlane.xlu0 %4957
        %4959 = vadd.xlane.f32.xlu0 %v4933
        %v4960 = vpop.xlane.xlu0 %4959
        %4961 = vadd.xlane.f32.xlu0 %v4934
        %v4962 = vpop.xlane.xlu0 %4961
        %4963 = vadd.xlane.f32.xlu0 %v4935
        %v4964 = vpop.xlane.xlu0 %4963
        %4965 = vadd.xlane.f32.xlu0 %v4936
        %v4966 = vpop.xlane.xlu0 %4965
        %4967 = vadd.xlane.f32.xlu0 %v4937
        %v4968 = vpop.xlane.xlu0 %4967
        %4969 = vadd.xlane.f32.xlu0 %v4938
        %v4970 = vpop.xlane.xlu0 %4969
        %4971 = vadd.xlane.f32.xlu0 %v4939
        %v4972 = vpop.xlane.xlu0 %4971
        %4973 = vadd.xlane.f32.xlu0 %v4940
        %v4974 = vpop.xlane.xlu0 %4973
        %v4975 = vrcp.pop 128.0
        %v4976 = vmul.f32 %v4944, %v4975
        %v4977 = vmul.f32 %v4946, %v4975
        %v4978 = vmul.f32 %v4948, %v4975
        %v4979 = vmul.f32 %v4950, %v4975
        %v4980 = vmul.f32 %v4952, %v4975
        %v4981 = vmul.f32 %v4954, %v4975
        %v4982 = vmul.f32 %v4956, %v4975
        %v4983 = vmul.f32 %v4958, %v4975
        %v4984 = vmul.f32 %v4960, %v4975
        %v4985 = vmul.f32 %v4962, %v4975
        %v4986 = vmul.f32 %v4964, %v4975
        %v4987 = vmul.f32 %v4966, %v4975
        %v4988 = vmul.f32 %v4968, %v4975
        %v4989 = vmul.f32 %v4970, %v4975
        %v4990 = vmul.f32 %v4972, %v4975
        %v4991 = vmul.f32 %v4974, %v4975
        %v4992 = vmul.f32 %v4925, %v4925
        %v4993 = vmul.f32 %v4926, %v4926
        %v4994 = vmul.f32 %v4927, %v4927
        %v4995 = vmul.f32 %v4928, %v4928
        %v4996 = vmul.f32 %v4929, %v4929
        %v4997 = vmul.f32 %v4930, %v4930
        %v4998 = vmul.f32 %v4931, %v4931
        %v4999 = vmul.f32 %v4932, %v4932
        %v5000 = vmul.f32 %v4933, %v4933
        %v5001 = vmul.f32 %v4934, %v4934
        %v5002 = vmul.f32 %v4935, %v4935
        %v5003 = vmul.f32 %v4936, %v4936
        %v5004 = vmul.f32 %v4937, %v4937
        %v5005 = vmul.f32 %v4938, %v4938
        %v5006 = vmul.f32 %v4939, %v4939
        %v5007 = vmul.f32 %v4940, %v4940
        %5008 = vadd.xlane.f32.xlu0 %v4992
        %v5009 = vpop.xlane.xlu0 %5008
        %5010 = vadd.xlane.f32.xlu0 %v4993
        %v5011 = vpop.xlane.xlu0 %5010
        %5012 = vadd.xlane.f32.xlu0 %v4994
        %v5013 = vpop.xlane.xlu0 %5012
        %5014 = vadd.xlane.f32.xlu0 %v4995
        %v5015 = vpop.xlane.xlu0 %5014
        %5016 = vadd.xlane.f32.xlu0 %v4996
        %v5017 = vpop.xlane.xlu0 %5016
        %5018 = vadd.xlane.f32.xlu0 %v4997
        %v5019 = vpop.xlane.xlu0 %5018
        %5020 = vadd.xlane.f32.xlu0 %v4998
        %v5021 = vpop.xlane.xlu0 %5020
        %5022 = vadd.xlane.f32.xlu0 %v4999
        %v5023 = vpop.xlane.xlu0 %5022
        %5024 = vadd.xlane.f32.xlu0 %v5000
        %v5025 = vpop.xlane.xlu0 %5024
        %5026 = vadd.xlane.f32.xlu0 %v5001
        %v5027 = vpop.xlane.xlu0 %5026
        %5028 = vadd.xlane.f32.xlu0 %v5002
        %v5029 = vpop.xlane.xlu0 %5028
        %5030 = vadd.xlane.f32.xlu0 %v5003
        %v5031 = vpop.xlane.xlu0 %5030
        %5032 = vadd.xlane.f32.xlu0 %v5004
        %v5033 = vpop.xlane.xlu0 %5032
        %5034 = vadd.xlane.f32.xlu0 %v5005
        %v5035 = vpop.xlane.xlu0 %5034
        %5036 = vadd.xlane.f32.xlu0 %v5006
        %v5037 = vpop.xlane.xlu0 %5036
        %5038 = vadd.xlane.f32.xlu0 %v5007
        %v5039 = vpop.xlane.xlu0 %5038
        %v5040 = vmul.f32 %v5009, %v4975
        %v5041 = vmul.f32 %v5011, %v4975
        %v5042 = vmul.f32 %v5013, %v4975
        %v5043 = vmul.f32 %v5015, %v4975
        %v5044 = vmul.f32 %v5017, %v4975
        %v5045 = vmul.f32 %v5019, %v4975
        %v5046 = vmul.f32 %v5021, %v4975
        %v5047 = vmul.f32 %v5023, %v4975
        %v5048 = vmul.f32 %v5025, %v4975
        %v5049 = vmul.f32 %v5027, %v4975
        %v5050 = vmul.f32 %v5029, %v4975
        %v5051 = vmul.f32 %v5031, %v4975
        %v5052 = vmul.f32 %v5033, %v4975
        %v5053 = vmul.f32 %v5035, %v4975
        %v5054 = vmul.f32 %v5037, %v4975
        %v5055 = vmul.f32 %v5039, %v4975
        %v5056 = vmul.f32 %v4976, %v4976
        %v5057 = vmul.f32 %v4977, %v4977
        %v5058 = vmul.f32 %v4978, %v4978
        %v5059 = vmul.f32 %v4979, %v4979
        %v5060 = vmul.f32 %v4980, %v4980
        %v5061 = vmul.f32 %v4981, %v4981
        %v5062 = vmul.f32 %v4982, %v4982
        %v5063 = vmul.f32 %v4983, %v4983
        %v5064 = vmul.f32 %v4984, %v4984
        %v5065 = vmul.f32 %v4985, %v4985
        %v5066 = vmul.f32 %v4986, %v4986
        %v5067 = vmul.f32 %v4987, %v4987
        %v5068 = vmul.f32 %v4988, %v4988
        %v5069 = vmul.f32 %v4989, %v4989
        %v5070 = vmul.f32 %v4990, %v4990
        %v5071 = vmul.f32 %v4991, %v4991
        %v5072 = vsub.f32 %v5040, %v5056
        %v5073 = vsub.f32 %v5041, %v5057
        %v5074 = vsub.f32 %v5042, %v5058
        %v5075 = vsub.f32 %v5043, %v5059
        %v5076 = vsub.f32 %v5044, %v5060
        %v5077 = vsub.f32 %v5045, %v5061
        %v5078 = vsub.f32 %v5046, %v5062
        %v5079 = vsub.f32 %v5047, %v5063
        %v5080 = vsub.f32 %v5048, %v5064
        %v5081 = vsub.f32 %v5049, %v5065
        %v5082 = vsub.f32 %v5050, %v5066
        %v5083 = vsub.f32 %v5051, %v5067
        %v5084 = vsub.f32 %v5052, %v5068
        %v5085 = vsub.f32 %v5053, %v5069
        %v5086 = vsub.f32 %v5054, %v5070
        %v5087 = vsub.f32 %v5055, %v5071
        %v5088 = vsub.f32 %v4925, %v4976
        %v5089 = vsub.f32 %v4926, %v4977
        %v5090 = vsub.f32 %v4927, %v4978
        %v5091 = vsub.f32 %v4928, %v4979
        %v5092 = vsub.f32 %v4929, %v4980
        %v5093 = vsub.f32 %v4930, %v4981
        %v5094 = vsub.f32 %v4931, %v4982
        %v5095 = vsub.f32 %v4932, %v4983
        %v5096 = vsub.f32 %v4933, %v4984
        %v5097 = vsub.f32 %v4934, %v4985
        %v5098 = vsub.f32 %v4935, %v4986
        %v5099 = vsub.f32 %v4936, %v4987
        %v5100 = vsub.f32 %v4937, %v4988
        %v5101 = vsub.f32 %v4938, %v4989
        %v5102 = vsub.f32 %v4939, %v4990
        %v5103 = vsub.f32 %v4940, %v4991
        %v5104 = vadd.f32 %v5072, 1e-05
        %v5105 = vadd.f32 %v5073, 1e-05
        %v5106 = vadd.f32 %v5074, 1e-05
        %v5107 = vadd.f32 %v5075, 1e-05
        %v5108 = vadd.f32 %v5076, 1e-05
        %v5109 = vadd.f32 %v5077, 1e-05
        %v5110 = vadd.f32 %v5078, 1e-05
        %v5111 = vadd.f32 %v5079, 1e-05
        %v5112 = vadd.f32 %v5080, 1e-05
        %v5113 = vadd.f32 %v5081, 1e-05
        %v5114 = vadd.f32 %v5082, 1e-05
        %v5115 = vadd.f32 %v5083, 1e-05
        %v5116 = vadd.f32 %v5084, 1e-05
        %v5117 = vadd.f32 %v5085, 1e-05
        %v5118 = vadd.f32 %v5086, 1e-05
        %v5119 = vadd.f32 %v5087, 1e-05
        %v5120 = vrsqrt.pop %v5104
        %v5121 = vrsqrt.pop %v5105
        %v5122 = vrsqrt.pop %v5106
        %v5123 = vrsqrt.pop %v5107
        %v5124 = vrsqrt.pop %v5108
        %v5125 = vrsqrt.pop %v5109
        %v5126 = vrsqrt.pop %v5110
        %v5127 = vrsqrt.pop %v5111
        %v5128 = vrsqrt.pop %v5112
        %v5129 = vrsqrt.pop %v5113
        %v5130 = vrsqrt.pop %v5114
        %v5131 = vrsqrt.pop %v5115
        %v5132 = vrsqrt.pop %v5116
        %v5133 = vrsqrt.pop %v5117
        %v5134 = vrsqrt.pop %v5118
        %v5135 = vrsqrt.pop %v5119
        %v5136 = vmul.f32 %v5088, %v5120
        %v5137 = vmul.f32 %v5089, %v5121
        %v5138 = vmul.f32 %v5090, %v5122
        %v5139 = vmul.f32 %v5091, %v5123
        %v5140 = vmul.f32 %v5092, %v5124
        %v5141 = vmul.f32 %v5093, %v5125
        %v5142 = vmul.f32 %v5094, %v5126
        %v5143 = vmul.f32 %v5095, %v5127
        %v5144 = vmul.f32 %v5096, %v5128
        %v5145 = vmul.f32 %v5097, %v5129
        %v5146 = vmul.f32 %v5098, %v5130
        %v5147 = vmul.f32 %v5099, %v5131
        %v5148 = vmul.f32 %v5100, %v5132
        %v5149 = vmul.f32 %v5101, %v5133
        %v5150 = vmul.f32 %v5102, %v5134
        %v5151 = vmul.f32 %v5103, %v5135
        %v5153 = vlaneseq
        %v5154 = vshrl.u32 %v5153, 7
        %v5155 = vsub.s32 0, %v5154
        %v5156 = vrot.slane %v4941, %v5155
        %v5158 = vmul.f32 %v5136, %v5156
        %v5159 = vmul.f32 %v5137, %v5156
        %v5160 = vmul.f32 %v5138, %v5156
        %v5161 = vmul.f32 %v5139, %v5156
        %v5162 = vmul.f32 %v5140, %v5156
        %v5163 = vmul.f32 %v5141, %v5156
        %v5164 = vmul.f32 %v5142, %v5156
        %v5165 = vmul.f32 %v5143, %v5156
        %v5166 = vmul.f32 %v5144, %v5156
        %v5167 = vmul.f32 %v5145, %v5156
        %v5168 = vmul.f32 %v5146, %v5156
        %v5169 = vmul.f32 %v5147, %v5156
        %v5170 = vmul.f32 %v5148, %v5156
        %v5171 = vmul.f32 %v5149, %v5156
        %v5172 = vmul.f32 %v5150, %v5156
        %v5173 = vmul.f32 %v5151, %v5156
        %v5175 = vlaneseq
        %v5176 = vshrl.u32 %v5175, 7
        %v5177 = vsub.s32 0, %v5176
        %v5178 = vrot.slane %v4942, %v5177
        %v5180 = vadd.f32 %v5158, %v5178
        %v5181 = vadd.f32 %v5159, %v5178
        %v5182 = vadd.f32 %v5160, %v5178
        %v5183 = vadd.f32 %v5161, %v5178
        %v5184 = vadd.f32 %v5162, %v5178
        %v5185 = vadd.f32 %v5163, %v5178
        %v5186 = vadd.f32 %v5164, %v5178
        %v5187 = vadd.f32 %v5165, %v5178
        %v5188 = vadd.f32 %v5166, %v5178
        %v5189 = vadd.f32 %v5167, %v5178
        %v5190 = vadd.f32 %v5168, %v5178
        %v5191 = vadd.f32 %v5169, %v5178
        %v5192 = vadd.f32 %v5170, %v5178
        %v5193 = vadd.f32 %v5171, %v5178
        %v5194 = vadd.f32 %v5172, %v5178
        %v5195 = vadd.f32 %v5173, %v5178
        %v5196 = vpack.c.bf16 %v5181, %v5180
        %v5197 = vpack.c.bf16 %v5183, %v5182
        %v5198 = vpack.c.bf16 %v5185, %v5184
        %v5199 = vpack.c.bf16 %v5187, %v5186
        %v5200 = vpack.c.bf16 %v5189, %v5188
        %v5201 = vpack.c.bf16 %v5191, %v5190
        %v5202 = vpack.c.bf16 %v5193, %v5192
        %v5203 = vpack.c.bf16 %v5195, %v5194
        %v5204 = vld [vmem:[%s6] sm:$0xff]
        %v5205 = vld [vmem:[%s6 + $0x8] sm:$0xff]
        %v5206 = vld [vmem:[%s6 + $0x10] sm:$0xff]
        %v5207 = vld [vmem:[%s6 + $0x18] sm:$0xff]
        %v5208 = vld [vmem:[%s6 + $0x20] sm:$0xff]
        %v5209 = vld [vmem:[%s6 + $0x28] sm:$0xff]
        %v5210 = vld [vmem:[%s6 + $0x30] sm:$0xff]
        %v5211 = vld [vmem:[%s6 + $0x38] sm:$0xff]
        %v5212 = vld [vmem:[%s6 + $0x40] sm:$0xff]
        %v5213 = vld [vmem:[%s6 + $0x48] sm:$0xff]
        %v5214 = vld [vmem:[%s6 + $0x50] sm:$0xff]
        %v5215 = vld [vmem:[%s6 + $0x58] sm:$0xff]
        %v5216 = vld [vmem:[%s6 + $0x60] sm:$0xff]
        %v5217 = vld [vmem:[%s6 + $0x68] sm:$0xff]
        %v5218 = vld [vmem:[%s6 + $0x70] sm:$0xff]
        %v5219 = vld [vmem:[%s6 + $0x78] sm:$0xff]
        %v5220 = vld [vmem:[%s6 + $0x80] sm:$0xff]
        %v5221 = vld [vmem:[%s6 + $0x88] sm:$0xff]
        %v5222 = vld [vmem:[%s6 + $0x90] sm:$0xff]
        %v5223 = vld [vmem:[%s6 + $0x98] sm:$0xff]
        %v5224 = vld [vmem:[%s6 + $0xa0] sm:$0xff]
        %v5225 = vld [vmem:[%s6 + $0xa8] sm:$0xff]
        %v5226 = vld [vmem:[%s6 + $0xb0] sm:$0xff]
        %v5227 = vld [vmem:[%s6 + $0xb8] sm:$0xff]
        %v5228 = vld [vmem:[%s6 + $0xc0] sm:$0xff]
        %v5229 = vld [vmem:[%s6 + $0xc8] sm:$0xff]
        %v5230 = vld [vmem:[%s6 + $0xd0] sm:$0xff]
        %v5231 = vld [vmem:[%s6 + $0xd8] sm:$0xff]
        %v5232 = vld [vmem:[%s6 + $0xe0] sm:$0xff]
        %v5233 = vld [vmem:[%s6 + $0xe8] sm:$0xff]
        %v5234 = vld [vmem:[%s6 + $0xf0] sm:$0xff]
        %v5235 = vld [vmem:[%s6 + $0xf8] sm:$0xff]
        %v5236 = vld [vmem:[%s7] sm:$0xf]
        %v5238 = vlaneseq
        %v5239 = vshrl.u32 %v5238, 7
        %v5240 = vsub.s32 0, %v5239
        %v5241 = vrot.slane %v5236, %v5240
        %v5242 = vlaneseq
        %v5243 = vshrl.u32 %v5242, 7
        %v5244 = vsub.s32 1, %v5243
        %v5245 = vrot.slane %v5236, %v5244
        %v5246 = vlaneseq
        %v5247 = vshrl.u32 %v5246, 7
        %v5248 = vsub.s32 2, %v5247
        %v5249 = vrot.slane %v5236, %v5248
        %v5250 = vlaneseq
        %v5251 = vshrl.u32 %v5250, 7
        %v5252 = vsub.s32 3, %v5251
        %v5253 = vrot.slane %v5236, %v5252
        %v5290 = vunpack.c.l.b16 %v5204
        %v5291 = vunpack.c.h.b16 %v5204
        %v5292 = vunpack.c.l.b16 %v5205
        %v5293 = vunpack.c.h.b16 %v5205
        %v5294 = vunpack.c.l.b16 %v5206
        %v5295 = vunpack.c.h.b16 %v5206
        %v5296 = vunpack.c.l.b16 %v5207
        %v5297 = vunpack.c.h.b16 %v5207
        %v5298 = vunpack.c.l.b16 %v5208
        %v5299 = vunpack.c.h.b16 %v5208
        %v5300 = vunpack.c.l.b16 %v5209
        %v5301 = vunpack.c.h.b16 %v5209
        %v5302 = vunpack.c.l.b16 %v5210
        %v5303 = vunpack.c.h.b16 %v5210
        %v5304 = vunpack.c.l.b16 %v5211
        %v5305 = vunpack.c.h.b16 %v5211
        %v5306 = vunpack.c.l.b16 %v5212
        %v5307 = vunpack.c.h.b16 %v5212
        %v5308 = vunpack.c.l.b16 %v5213
        %v5309 = vunpack.c.h.b16 %v5213
        %v5310 = vunpack.c.l.b16 %v5214
        %v5311 = vunpack.c.h.b16 %v5214
        %v5312 = vunpack.c.l.b16 %v5215
        %v5313 = vunpack.c.h.b16 %v5215
        %v5314 = vunpack.c.l.b16 %v5216
        %v5315 = vunpack.c.h.b16 %v5216
        %v5316 = vunpack.c.l.b16 %v5217
        %v5317 = vunpack.c.h.b16 %v5217
        %v5318 = vunpack.c.l.b16 %v5218
        %v5319 = vunpack.c.h.b16 %v5218
        %v5320 = vunpack.c.l.b16 %v5219
        %v5321 = vunpack.c.h.b16 %v5219
        %v5322 = vunpack.c.l.b16 %v5220
        %v5323 = vunpack.c.h.b16 %v5220
        %v5324 = vunpack.c.l.b16 %v5221
        %v5325 = vunpack.c.h.b16 %v5221
        %v5326 = vunpack.c.l.b16 %v5222
        %v5327 = vunpack.c.h.b16 %v5222
        %v5328 = vunpack.c.l.b16 %v5223
        %v5329 = vunpack.c.h.b16 %v5223
        %v5330 = vunpack.c.l.b16 %v5224
        %v5331 = vunpack.c.h.b16 %v5224
        %v5332 = vunpack.c.l.b16 %v5225
        %v5333 = vunpack.c.h.b16 %v5225
        %v5334 = vunpack.c.l.b16 %v5226
        %v5335 = vunpack.c.h.b16 %v5226
        %v5336 = vunpack.c.l.b16 %v5227
        %v5337 = vunpack.c.h.b16 %v5227
        %v5338 = vunpack.c.l.b16 %v5228
        %v5339 = vunpack.c.h.b16 %v5228
        %v5340 = vunpack.c.l.b16 %v5229
        %v5341 = vunpack.c.h.b16 %v5229
        %v5342 = vunpack.c.l.b16 %v5230
        %v5343 = vunpack.c.h.b16 %v5230
        %v5344 = vunpack.c.l.b16 %v5231
        %v5345 = vunpack.c.h.b16 %v5231
        %v5346 = vunpack.c.l.b16 %v5232
        %v5347 = vunpack.c.h.b16 %v5232
        %v5348 = vunpack.c.l.b16 %v5233
        %v5349 = vunpack.c.h.b16 %v5233
        %v5350 = vunpack.c.l.b16 %v5234
        %v5351 = vunpack.c.h.b16 %v5234
        %v5352 = vunpack.c.l.b16 %v5235
        %v5353 = vunpack.c.h.b16 %v5235
        %v5354 = vpack.c.b16 %v5294, %v5290
        %v5355 = vpack.c.b16 %v5295, %v5291
        %v5356 = vpack.c.b16 %v5296, %v5292
        %v5357 = vpack.c.b16 %v5297, %v5293
        %v5358 = vpack.c.b16 %v5302, %v5298
        %v5359 = vpack.c.b16 %v5303, %v5299
        %v5360 = vpack.c.b16 %v5304, %v5300
        %v5361 = vpack.c.b16 %v5305, %v5301
        %v5362 = vpack.c.b16 %v5310, %v5306
        %v5363 = vpack.c.b16 %v5311, %v5307
        %v5364 = vpack.c.b16 %v5312, %v5308
        %v5365 = vpack.c.b16 %v5313, %v5309
        %v5366 = vpack.c.b16 %v5318, %v5314
        %v5367 = vpack.c.b16 %v5319, %v5315
        %v5368 = vpack.c.b16 %v5320, %v5316
        %v5369 = vpack.c.b16 %v5321, %v5317
        %v5370 = vpack.c.b16 %v5326, %v5322
        %v5371 = vpack.c.b16 %v5327, %v5323
        %v5372 = vpack.c.b16 %v5328, %v5324
        %v5373 = vpack.c.b16 %v5329, %v5325
        %v5374 = vpack.c.b16 %v5334, %v5330
        %v5375 = vpack.c.b16 %v5335, %v5331
        %v5376 = vpack.c.b16 %v5336, %v5332
        %v5377 = vpack.c.b16 %v5337, %v5333
        %v5378 = vpack.c.b16 %v5342, %v5338
        %v5379 = vpack.c.b16 %v5343, %v5339
        %v5380 = vpack.c.b16 %v5344, %v5340
        %v5381 = vpack.c.b16 %v5345, %v5341
        %v5382 = vpack.c.b16 %v5350, %v5346
        %v5383 = vpack.c.b16 %v5351, %v5347
        %v5384 = vpack.c.b16 %v5352, %v5348
        %v5385 = vpack.c.b16 %v5353, %v5349
        %5418 = vmatprep.subr.bf16.mxu0 %v5355
        %5419 = vmatpush1.bf16.msra.mxu0 %v5354
        %5420 = vmatprep.subr.bf16.mxu0 %v5359
        %5421 = vmatpush1.bf16.msra.mxu0 %v5358
        %5422 = vmatprep.subr.bf16.mxu0 %v5363
        %5423 = vmatpush1.bf16.msra.mxu0 %v5362
        %5424 = vmatprep.subr.bf16.mxu0 %v5367
        %5425 = vmatpush1.bf16.msra.mxu0 %v5366
        %5426 = vmatprep.subr.bf16.mxu0 %v5371
        %5427 = vmatpush1.bf16.msra.mxu0 %v5370
        %5428 = vmatprep.subr.bf16.mxu0 %v5375
        %5429 = vmatpush1.bf16.msra.mxu0 %v5374
        %5430 = vmatprep.subr.bf16.mxu0 %v5379
        %5431 = vmatpush1.bf16.msra.mxu0 %v5378
        %5432 = vmatprep.subr.bf16.mxu0 %v5383
        %5433 = vmatpush1.bf16.msra.mxu0 %v5382
        %5434 = vmatprep.subr.bf16.mxu0 0
        %5435 = vmatpush1.bf16.msra.mxu0 0
        %5436 = vmatprep.subr.bf16.mxu0 0
        %5437 = vmatpush1.bf16.msra.mxu0 0
        %5438 = vmatprep.subr.bf16.mxu0 0
        %5439 = vmatpush1.bf16.msra.mxu0 0
        %5440 = vmatprep.subr.bf16.mxu0 0
        %5441 = vmatpush1.bf16.msra.mxu0 0
        %5442 = vmatprep.subr.bf16.mxu0 0
        %5443 = vmatpush1.bf16.msra.mxu0 0
        %5444 = vmatprep.subr.bf16.mxu0 0
        %5445 = vmatpush1.bf16.msra.mxu0 0
        %5446 = vmatprep.subr.bf16.mxu0 0
        %5447 = vmatpush1.bf16.msra.mxu0 0
        %5448 = vmatprep.subr.bf16.mxu0 0
        %5449 = vmatpush1.bf16.msra.mxu0 0
        %5450 = vmatprep.mubr.bf16.mxu0 0
        %5451 = vmatmul.mubr.bf16.gmra.mrb[0].mxu0 %v5196
        %v5452 = vpop.f32.mrb[0].mxu0
        %v5453 = vadd.f32 %v5241, %v5452
        %v5454 = vpop.f32.mrb[0].mxu0
        %v5455 = vadd.f32 %v5245, %v5454
        %v5456 = vpop.f32.mrb[0].mxu0
        %v5457 = vadd.f32 %v5241, %v5456
        %v5458 = vpop.f32.mrb[0].mxu0
        %v5459 = vadd.f32 %v5245, %v5458
        %5460 = vmatprep.mubr.bf16.mxu0 0
        %5461 = vmatmul.mubr.bf16.gmra.mrb[0].mxu0 %v5197
        %v5462 = vpop.f32.mrb[0].mxu0
        %v5463 = vadd.f32 %v5241, %v5462
        %v5464 = vpop.f32.mrb[0].mxu0
        %v5465 = vadd.f32 %v5245, %v5464
        %v5466 = vpop.f32.mrb[0].mxu0
        %v5467 = vadd.f32 %v5241, %v5466
        %v5468 = vpop.f32.mrb[0].mxu0
        %v5469 = vadd.f32 %v5245, %v5468
        %5470 = vmatprep.mubr.bf16.mxu0 0
        %5471 = vmatmul.mubr.bf16.gmra.mrb[0].mxu0 %v5198
        %v5472 = vpop.f32.mrb[0].mxu0
        %v5473 = vadd.f32 %v5241, %v5472
        %v5474 = vpop.f32.mrb[0].mxu0
        %v5475 = vadd.f32 %v5245, %v5474
        %v5476 = vpop.f32.mrb[0].mxu0
        %v5477 = vadd.f32 %v5241, %v5476
        %v5478 = vpop.f32.mrb[0].mxu0
        %v5479 = vadd.f32 %v5245, %v5478
        %5480 = vmatprep.mubr.bf16.mxu0 0
        %5481 = vmatmul.mubr.bf16.gmra.mrb[0].mxu0 %v5199
        %v5482 = vpop.f32.mrb[0].mxu0
        %v5483 = vadd.f32 %v5241, %v5482
        %v5484 = vpop.f32.mrb[0].mxu0
        %v5485 = vadd.f32 %v5245, %v5484
        %v5486 = vpop.f32.mrb[0].mxu0
        %v5487 = vadd.f32 %v5241, %v5486
        %v5488 = vpop.f32.mrb[0].mxu0
        %v5489 = vadd.f32 %v5245, %v5488
        %5490 = vmatprep.mubr.bf16.mxu0 0
        %5491 = vmatmul.mubr.bf16.gmra.mrb[0].mxu0 %v5200
        %v5492 = vpop.f32.mrb[0].mxu0
        %v5493 = vadd.f32 %v5241, %v5492
        %v5494 = vpop.f32.mrb[0].mxu0
        %v5495 = vadd.f32 %v5245, %v5494
        %v5496 = vpop.f32.mrb[0].mxu0
        %v5497 = vadd.f32 %v5241, %v5496
        %v5498 = vpop.f32.mrb[0].mxu0
        %v5499 = vadd.f32 %v5245, %v5498
        %5500 = vmatprep.mubr.bf16.mxu0 0
        %5501 = vmatmul.mubr.bf16.gmra.mrb[0].mxu0 %v5201
        %v5502 = vpop.f32.mrb[0].mxu0
        %v5503 = vadd.f32 %v5241, %v5502
        %v5504 = vpop.f32.mrb[0].mxu0
        %v5505 = vadd.f32 %v5245, %v5504
        %v5506 = vpop.f32.mrb[0].mxu0
        %v5507 = vadd.f32 %v5241, %v5506
        %v5508 = vpop.f32.mrb[0].mxu0
        %v5509 = vadd.f32 %v5245, %v5508
        %5510 = vmatprep.mubr.bf16.mxu0 0
        %5511 = vmatmul.mubr.bf16.gmra.mrb[0].mxu0 %v5202
        %v5512 = vpop.f32.mrb[0].mxu0
        %v5513 = vadd.f32 %v5241, %v5512
        %v5514 = vpop.f32.mrb[0].mxu0
        %v5515 = vadd.f32 %v5245, %v5514
        %v5516 = vpop.f32.mrb[0].mxu0
        %v5517 = vadd.f32 %v5241, %v5516
        %v5518 = vpop.f32.mrb[0].mxu0
        %v5519 = vadd.f32 %v5245, %v5518
        %5520 = vmatprep.mubr.bf16.mxu0 0
        %5521 = vmatmul.mubr.bf16.gmra.mrb[0].mxu0 %v5203
        %v5522 = vpop.f32.mrb[0].mxu0
        %v5523 = vadd.f32 %v5241, %v5522
        %v5524 = vpop.f32.mrb[0].mxu0
        %v5525 = vadd.f32 %v5245, %v5524
        %v5526 = vpop.f32.mrb[0].mxu0
        %v5527 = vadd.f32 %v5241, %v5526
        %v5528 = vpop.f32.mrb[0].mxu0
        %v5529 = vadd.f32 %v5245, %v5528
        %5530 = vdwg.mxu0
        %5531 = vmatprep.subr.bf16.mxu0 %v5357
        %5532 = vmatpush1.bf16.msra.mxu0 %v5356
        %5533 = vmatprep.subr.bf16.mxu0 %v5361
        %5534 = vmatpush1.bf16.msra.mxu0 %v5360
        %5535 = vmatprep.subr.bf16.mxu0 %v5365
        %5536 = vmatpush1.bf16.msra.mxu0 %v5364
        %5537 = vmatprep.subr.bf16.mxu0 %v5369
        %5538 = vmatpush1.bf16.msra.mxu0 %v5368
        %5539 = vmatprep.subr.bf16.mxu0 %v5373
        %5540 = vmatpush1.bf16.msra.mxu0 %v5372
        %5541 = vmatprep.subr.bf16.mxu0 %v5377
        %5542 = vmatpush1.bf16.msra.mxu0 %v5376
        %5543 = vmatprep.subr.bf16.mxu0 %v5381
        %5544 = vmatpush1.bf16.msra.mxu0 %v5380
        %5545 = vmatprep.subr.bf16.mxu0 %v5385
        %5546 = vmatpush1.bf16.msra.mxu0 %v5384
        %5547 = vmatprep.subr.bf16.mxu0 0
        %5548 = vmatpush1.bf16.msra.mxu0 0
        %5549 = vmatprep.subr.bf16.mxu0 0
        %5550 = vmatpush1.bf16.msra.mxu0 0
        %5551 = vmatprep.subr.bf16.mxu0 0
        %5552 = vmatpush1.bf16.msra.mxu0 0
        %5553 = vmatprep.subr.bf16.mxu0 0
        %5554 = vmatpush1.bf16.msra.mxu0 0
        %5555 = vmatprep.subr.bf16.mxu0 0
        %5556 = vmatpush1.bf16.msra.mxu0 0
        %5557 = vmatprep.subr.bf16.mxu0 0
        %5558 = vmatpush1.bf16.msra.mxu0 0
        %5559 = vmatprep.subr.bf16.mxu0 0
        %5560 = vmatpush1.bf16.msra.mxu0 0
        %5561 = vmatprep.subr.bf16.mxu0 0
        %5562 = vmatpush1.bf16.msra.mxu0 0
        %5563 = vmatprep.mubr.bf16.mxu0 0
        %5564 = vmatmul.mubr.bf16.gmra.mrb[0].mxu0 %v5196
        %v5565 = vpop.f32.mrb[0].mxu0
        %v5566 = vadd.f32 %v5249, %v5565
        %v5567 = vpop.f32.mrb[0].mxu0
        %v5568 = vadd.f32 %v5253, %v5567
        %v5569 = vpop.f32.mrb[0].mxu0
        %v5570 = vadd.f32 %v5249, %v5569
        %v5571 = vpop.f32.mrb[0].mxu0
        %v5572 = vadd.f32 %v5253, %v5571
        %5573 = vmatprep.mubr.bf16.mxu0 0
        %5574 = vmatmul.mubr.bf16.gmra.mrb[0].mxu0 %v5197
        %v5575 = vpop.f32.mrb[0].mxu0
        %v5576 = vadd.f32 %v5249, %v5575
        %v5577 = vpop.f32.mrb[0].mxu0
        %v5578 = vadd.f32 %v5253, %v5577
        %v5579 = vpop.f32.mrb[0].mxu0
        %v5580 = vadd.f32 %v5249, %v5579
        %v5581 = vpop.f32.mrb[0].mxu0
        %v5582 = vadd.f32 %v5253, %v5581
        %5583 = vmatprep.mubr.bf16.mxu0 0
        %5584 = vmatmul.mubr.bf16.gmra.mrb[0].mxu0 %v5198
        %v5585 = vpop.f32.mrb[0].mxu0
        %v5586 = vadd.f32 %v5249, %v5585
        %v5587 = vpop.f32.mrb[0].mxu0
        %v5588 = vadd.f32 %v5253, %v5587
        %v5589 = vpop.f32.mrb[0].mxu0
        %v5590 = vadd.f32 %v5249, %v5589
        %v5591 = vpop.f32.mrb[0].mxu0
        %v5592 = vadd.f32 %v5253, %v5591
        %5593 = vmatprep.mubr.bf16.mxu0 0
        %5594 = vmatmul.mubr.bf16.gmra.mrb[0].mxu0 %v5199
        %v5595 = vpop.f32.mrb[0].mxu0
        %v5596 = vadd.f32 %v5249, %v5595
        %v5597 = vpop.f32.mrb[0].mxu0
        %v5598 = vadd.f32 %v5253, %v5597
        %v5599 = vpop.f32.mrb[0].mxu0
        %v5600 = vadd.f32 %v5249, %v5599
        %v5601 = vpop.f32.mrb[0].mxu0
        %v5602 = vadd.f32 %v5253, %v5601
        %5603 = vmatprep.mubr.bf16.mxu0 0
        %5604 = vmatmul.mubr.bf16.gmra.mrb[0].mxu0 %v5200
        %v5605 = vpop.f32.mrb[0].mxu0
        %v5606 = vadd.f32 %v5249, %v5605
        %v5607 = vpop.f32.mrb[0].mxu0
        %v5608 = vadd.f32 %v5253, %v5607
        %v5609 = vpop.f32.mrb[0].mxu0
        %v5610 = vadd.f32 %v5249, %v5609
        %v5611 = vpop.f32.mrb[0].mxu0
        %v5612 = vadd.f32 %v5253, %v5611
        %5613 = vmatprep.mubr.bf16.mxu0 0
        %5614 = vmatmul.mubr.bf16.gmra.mrb[0].mxu0 %v5201
        %v5615 = vpop.f32.mrb[0].mxu0
        %v5616 = vadd.f32 %v5249, %v5615
        %v5617 = vpop.f32.mrb[0].mxu0
        %v5618 = vadd.f32 %v5253, %v5617
        %v5619 = vpop.f32.mrb[0].mxu0
        %v5620 = vadd.f32 %v5249, %v5619
        %v5621 = vpop.f32.mrb[0].mxu0
        %v5622 = vadd.f32 %v5253, %v5621
        %5623 = vmatprep.mubr.bf16.mxu0 0
        %5624 = vmatmul.mubr.bf16.gmra.mrb[0].mxu0 %v5202
        %v5625 = vpop.f32.mrb[0].mxu0
        %v5626 = vadd.f32 %v5249, %v5625
        %v5627 = vpop.f32.mrb[0].mxu0
        %v5628 = vadd.f32 %v5253, %v5627
        %v5629 = vpop.f32.mrb[0].mxu0
        %v5630 = vadd.f32 %v5249, %v5629
        %v5631 = vpop.f32.mrb[0].mxu0
        %v5632 = vadd.f32 %v5253, %v5631
        %5633 = vmatprep.mubr.bf16.mxu0 0
        %5634 = vmatmul.mubr.bf16.gmra.mrb[0].mxu0 %v5203
        %v5635 = vpop.f32.mrb[0].mxu0
        %v5636 = vadd.f32 %v5249, %v5635
        %v5637 = vpop.f32.mrb[0].mxu0
        %v5638 = vadd.f32 %v5253, %v5637
        %v5639 = vpop.f32.mrb[0].mxu0
        %v5640 = vadd.f32 %v5249, %v5639
        %v5641 = vpop.f32.mrb[0].mxu0
        %v5642 = vadd.f32 %v5253, %v5641
        %5643 = vdwg.mxu0
        %v5644 = vmax.f32 %v5453, 0.0
        %v5645 = vmax.f32 %v5455, 0.0
        %v5646 = vmax.f32 %v5566, 0.0
        %v5647 = vmax.f32 %v5568, 0.0
        %v5648 = vmax.f32 %v5457, 0.0
        %v5649 = vmax.f32 %v5459, 0.0
        %v5650 = vmax.f32 %v5570, 0.0
        %v5651 = vmax.f32 %v5572, 0.0
        %v5652 = vmax.f32 %v5463, 0.0
        %v5653 = vmax.f32 %v5465, 0.0
        %v5654 = vmax.f32 %v5576, 0.0
        %v5655 = vmax.f32 %v5578, 0.0
        %v5656 = vmax.f32 %v5467, 0.0
        %v5657 = vmax.f32 %v5469, 0.0
        %v5658 = vmax.f32 %v5580, 0.0
        %v5659 = vmax.f32 %v5582, 0.0
        %v5660 = vmax.f32 %v5473, 0.0
        %v5661 = vmax.f32 %v5475, 0.0
        %v5662 = vmax.f32 %v5586, 0.0
        %v5663 = vmax.f32 %v5588, 0.0
        %v5664 = vmax.f32 %v5477, 0.0
        %v5665 = vmax.f32 %v5479, 0.0
        %v5666 = vmax.f32 %v5590, 0.0
        %v5667 = vmax.f32 %v5592, 0.0
        %v5668 = vmax.f32 %v5483, 0.0
        %v5669 = vmax.f32 %v5485, 0.0
        %v5670 = vmax.f32 %v5596, 0.0
        %v5671 = vmax.f32 %v5598, 0.0
        %v5672 = vmax.f32 %v5487, 0.0
        %v5673 = vmax.f32 %v5489, 0.0
        %v5674 = vmax.f32 %v5600, 0.0
        %v5675 = vmax.f32 %v5602, 0.0
        %v5676 = vmax.f32 %v5493, 0.0
        %v5677 = vmax.f32 %v5495, 0.0
        %v5678 = vmax.f32 %v5606, 0.0
        %v5679 = vmax.f32 %v5608, 0.0
        %v5680 = vmax.f32 %v5497, 0.0
        %v5681 = vmax.f32 %v5499, 0.0
        %v5682 = vmax.f32 %v5610, 0.0
        %v5683 = vmax.f32 %v5612, 0.0
        %v5684 = vmax.f32 %v5503, 0.0
        %v5685 = vmax.f32 %v5505, 0.0
        %v5686 = vmax.f32 %v5616, 0.0
        %v5687 = vmax.f32 %v5618, 0.0
        %v5688 = vmax.f32 %v5507, 0.0
        %v5689 = vmax.f32 %v5509, 0.0
        %v5690 = vmax.f32 %v5620, 0.0
        %v5691 = vmax.f32 %v5622, 0.0
        %v5692 = vmax.f32 %v5513, 0.0
        %v5693 = vmax.f32 %v5515, 0.0
        %v5694 = vmax.f32 %v5626, 0.0
        %v5695 = vmax.f32 %v5628, 0.0
        %v5696 = vmax.f32 %v5517, 0.0
        %v5697 = vmax.f32 %v5519, 0.0
        %v5698 = vmax.f32 %v5630, 0.0
        %v5699 = vmax.f32 %v5632, 0.0
        %v5700 = vmax.f32 %v5523, 0.0
        %v5701 = vmax.f32 %v5525, 0.0
        %v5702 = vmax.f32 %v5636, 0.0
        %v5703 = vmax.f32 %v5638, 0.0
        %v5704 = vmax.f32 %v5527, 0.0
        %v5705 = vmax.f32 %v5529, 0.0
        %v5706 = vmax.f32 %v5640, 0.0
        %v5707 = vmax.f32 %v5642, 0.0
        %v5708 = vpack.c.bf16 %v5648, %v5644
        %v5709 = vpack.c.bf16 %v5649, %v5645
        %v5710 = vpack.c.bf16 %v5650, %v5646
        %v5711 = vpack.c.bf16 %v5651, %v5647
        %v5712 = vpack.c.bf16 %v5656, %v5652
        %v5713 = vpack.c.bf16 %v5657, %v5653
        %v5714 = vpack.c.bf16 %v5658, %v5654
        %v5715 = vpack.c.bf16 %v5659, %v5655
        %v5716 = vpack.c.bf16 %v5664, %v5660
        %v5717 = vpack.c.bf16 %v5665, %v5661
        %v5718 = vpack.c.bf16 %v5666, %v5662
        %v5719 = vpack.c.bf16 %v5667, %v5663
        %v5720 = vpack.c.bf16 %v5672, %v5668
        %v5721 = vpack.c.bf16 %v5673, %v5669
        %v5722 = vpack.c.bf16 %v5674, %v5670
        %v5723 = vpack.c.bf16 %v5675, %v5671
        %v5724 = vpack.c.bf16 %v5680, %v5676
        %v5725 = vpack.c.bf16 %v5681, %v5677
        %v5726 = vpack.c.bf16 %v5682, %v5678
        %v5727 = vpack.c.bf16 %v5683, %v5679
        %v5728 = vpack.c.bf16 %v5688, %v5684
        %v5729 = vpack.c.bf16 %v5689, %v5685
        %v5730 = vpack.c.bf16 %v5690, %v5686
        %v5731 = vpack.c.bf16 %v5691, %v5687
        %v5732 = vpack.c.bf16 %v5696, %v5692
        %v5733 = vpack.c.bf16 %v5697, %v5693
        %v5734 = vpack.c.bf16 %v5698, %v5694
        %v5735 = vpack.c.bf16 %v5699, %v5695
        %v5736 = vpack.c.bf16 %v5704, %v5700
        %v5737 = vpack.c.bf16 %v5705, %v5701
        %v5738 = vpack.c.bf16 %v5706, %v5702
        %v5739 = vpack.c.bf16 %v5707, %v5703
        %v5740 = vld [vmem:[%s8] sm:$0xf]
        %v5741 = vld [vmem:[%s8 + $0x4] sm:$0xf]
        %v5742 = vld [vmem:[%s8 + $0x8] sm:$0xf]
        %v5743 = vld [vmem:[%s8 + $0xc] sm:$0xf]
        %v5744 = vld [vmem:[%s8 + $0x10] sm:$0xf]
        %v5745 = vld [vmem:[%s8 + $0x14] sm:$0xf]
        %v5746 = vld [vmem:[%s8 + $0x18] sm:$0xf]
        %v5747 = vld [vmem:[%s8 + $0x1c] sm:$0xf]
        %v5748 = vld [vmem:[%s8 + $0x20] sm:$0xf]
        %v5749 = vld [vmem:[%s8 + $0x24] sm:$0xf]
        %v5750 = vld [vmem:[%s8 + $0x28] sm:$0xf]
        %v5751 = vld [vmem:[%s8 + $0x2c] sm:$0xf]
        %v5752 = vld [vmem:[%s8 + $0x30] sm:$0xf]
        %v5753 = vld [vmem:[%s8 + $0x34] sm:$0xf]
        %v5754 = vld [vmem:[%s8 + $0x38] sm:$0xf]
        %v5755 = vld [vmem:[%s8 + $0x3c] sm:$0xf]
        %v5756 = vld [vmem:[%s8 + $0x40] sm:$0xf]
        %v5757 = vld [vmem:[%s8 + $0x44] sm:$0xf]
        %v5758 = vld [vmem:[%s8 + $0x48] sm:$0xf]
        %v5759 = vld [vmem:[%s8 + $0x4c] sm:$0xf]
        %v5760 = vld [vmem:[%s8 + $0x50] sm:$0xf]
        %v5761 = vld [vmem:[%s8 + $0x54] sm:$0xf]
        %v5762 = vld [vmem:[%s8 + $0x58] sm:$0xf]
        %v5763 = vld [vmem:[%s8 + $0x5c] sm:$0xf]
        %v5764 = vld [vmem:[%s8 + $0x60] sm:$0xf]
        %v5765 = vld [vmem:[%s8 + $0x64] sm:$0xf]
        %v5766 = vld [vmem:[%s8 + $0x68] sm:$0xf]
        %v5767 = vld [vmem:[%s8 + $0x6c] sm:$0xf]
        %v5768 = vld [vmem:[%s8 + $0x70] sm:$0xf]
        %v5769 = vld [vmem:[%s8 + $0x74] sm:$0xf]
        %v5770 = vld [vmem:[%s8 + $0x78] sm:$0xf]
        %v5771 = vld [vmem:[%s8 + $0x7c] sm:$0xf]
        %v5772 = vld [vmem:[%s8 + $0x80] sm:$0xf]
        %v5773 = vld [vmem:[%s8 + $0x84] sm:$0xf]
        %v5774 = vld [vmem:[%s8 + $0x88] sm:$0xf]
        %v5775 = vld [vmem:[%s8 + $0x8c] sm:$0xf]
        %v5776 = vld [vmem:[%s8 + $0x90] sm:$0xf]
        %v5777 = vld [vmem:[%s8 + $0x94] sm:$0xf]
        %v5778 = vld [vmem:[%s8 + $0x98] sm:$0xf]
        %v5779 = vld [vmem:[%s8 + $0x9c] sm:$0xf]
        %v5780 = vld [vmem:[%s8 + $0xa0] sm:$0xf]
        %v5781 = vld [vmem:[%s8 + $0xa4] sm:$0xf]
        %v5782 = vld [vmem:[%s8 + $0xa8] sm:$0xf]
        %v5783 = vld [vmem:[%s8 + $0xac] sm:$0xf]
        %v5784 = vld [vmem:[%s8 + $0xb0] sm:$0xf]
        %v5785 = vld [vmem:[%s8 + $0xb4] sm:$0xf]
        %v5786 = vld [vmem:[%s8 + $0xb8] sm:$0xf]
        %v5787 = vld [vmem:[%s8 + $0xbc] sm:$0xf]
        %v5788 = vld [vmem:[%s8 + $0xc0] sm:$0xf]
        %v5789 = vld [vmem:[%s8 + $0xc4] sm:$0xf]
        %v5790 = vld [vmem:[%s8 + $0xc8] sm:$0xf]
        %v5791 = vld [vmem:[%s8 + $0xcc] sm:$0xf]
        %v5792 = vld [vmem:[%s8 + $0xd0] sm:$0xf]
        %v5793 = vld [vmem:[%s8 + $0xd4] sm:$0xf]
        %v5794 = vld [vmem:[%s8 + $0xd8] sm:$0xf]
        %v5795 = vld [vmem:[%s8 + $0xdc] sm:$0xf]
        %v5796 = vld [vmem:[%s8 + $0xe0] sm:$0xf]
        %v5797 = vld [vmem:[%s8 + $0xe4] sm:$0xf]
        %v5798 = vld [vmem:[%s8 + $0xe8] sm:$0xf]
        %v5799 = vld [vmem:[%s8 + $0xec] sm:$0xf]
        %v5800 = vld [vmem:[%s8 + $0xf0] sm:$0xf]
        %v5801 = vld [vmem:[%s8 + $0xf4] sm:$0xf]
        %v5802 = vld [vmem:[%s8 + $0xf8] sm:$0xf]
        %v5803 = vld [vmem:[%s8 + $0xfc] sm:$0xf]
        %v5804 = vld [vmem:[%s9] sm:$0x1]
        %v5806 = vlaneseq
        %v5807 = vshrl.u32 %v5806, 7
        %v5808 = vsub.s32 0, %v5807
        %v5809 = vrot.slane %v5804, %v5808
        %v5875 = vunpack.c.l.b16 %v5740
        %v5876 = vunpack.c.l.b16 %v5741
        %v5877 = vunpack.c.l.b16 %v5742
        %v5878 = vunpack.c.l.b16 %v5743
        %v5879 = vunpack.c.l.b16 %v5744
        %v5880 = vunpack.c.l.b16 %v5745
        %v5881 = vunpack.c.l.b16 %v5746
        %v5882 = vunpack.c.l.b16 %v5747
        %v5883 = vunpack.c.l.b16 %v5748
        %v5884 = vunpack.c.l.b16 %v5749
        %v5885 = vunpack.c.l.b16 %v5750
        %v5886 = vunpack.c.l.b16 %v5751
        %v5887 = vunpack.c.l.b16 %v5752
        %v5888 = vunpack.c.l.b16 %v5753
        %v5889 = vunpack.c.l.b16 %v5754
        %v5890 = vunpack.c.l.b16 %v5755
        %v5891 = vunpack.c.l.b16 %v5756
        %v5892 = vunpack.c.l.b16 %v5757
        %v5893 = vunpack.c.l.b16 %v5758
        %v5894 = vunpack.c.l.b16 %v5759
        %v5895 = vunpack.c.l.b16 %v5760
        %v5896 = vunpack.c.l.b16 %v5761
        %v5897 = vunpack.c.l.b16 %v5762
        %v5898 = vunpack.c.l.b16 %v5763
        %v5899 = vunpack.c.l.b16 %v5764
        %v5900 = vunpack.c.l.b16 %v5765
        %v5901 = vunpack.c.l.b16 %v5766
        %v5902 = vunpack.c.l.b16 %v5767
        %v5903 = vunpack.c.l.b16 %v5768
        %v5904 = vunpack.c.l.b16 %v5769
        %v5905 = vunpack.c.l.b16 %v5770
        %v5906 = vunpack.c.l.b16 %v5771
        %v5907 = vunpack.c.l.b16 %v5772
        %v5908 = vunpack.c.l.b16 %v5773
        %v5909 = vunpack.c.l.b16 %v5774
        %v5910 = vunpack.c.l.b16 %v5775
        %v5911 = vunpack.c.l.b16 %v5776
        %v5912 = vunpack.c.l.b16 %v5777
        %v5913 = vunpack.c.l.b16 %v5778
        %v5914 = vunpack.c.l.b16 %v5779
        %v5915 = vunpack.c.l.b16 %v5780
        %v5916 = vunpack.c.l.b16 %v5781
        %v5917 = vunpack.c.l.b16 %v5782
        %v5918 = vunpack.c.l.b16 %v5783
        %v5919 = vunpack.c.l.b16 %v5784
        %v5920 = vunpack.c.l.b16 %v5785
        %v5921 = vunpack.c.l.b16 %v5786
        %v5922 = vunpack.c.l.b16 %v5787
        %v5923 = vunpack.c.l.b16 %v5788
        %v5924 = vunpack.c.l.b16 %v5789
        %v5925 = vunpack.c.l.b16 %v5790
        %v5926 = vunpack.c.l.b16 %v5791
        %v5927 = vunpack.c.l.b16 %v5792
        %v5928 = vunpack.c.l.b16 %v5793
        %v5929 = vunpack.c.l.b16 %v5794
        %v5930 = vunpack.c.l.b16 %v5795
        %v5931 = vunpack.c.l.b16 %v5796
        %v5932 = vunpack.c.l.b16 %v5797
        %v5933 = vunpack.c.l.b16 %v5798
        %v5934 = vunpack.c.l.b16 %v5799
        %v5935 = vunpack.c.l.b16 %v5800
        %v5936 = vunpack.c.l.b16 %v5801
        %v5937 = vunpack.c.l.b16 %v5802
        %v5938 = vunpack.c.l.b16 %v5803
        %v5939 = vpack.c.b16 %v5876, %v5875
        %v5940 = vpack.c.b16 %v5878, %v5877
        %v5941 = vpack.c.b16 %v5880, %v5879
        %v5942 = vpack.c.b16 %v5882, %v5881
        %v5943 = vpack.c.b16 %v5884, %v5883
        %v5944 = vpack.c.b16 %v5886, %v5885
        %v5945 = vpack.c.b16 %v5888, %v5887
        %v5946 = vpack.c.b16 %v5890, %v5889
        %v5947 = vpack.c.b16 %v5892, %v5891
        %v5948 = vpack.c.b16 %v5894, %v5893
        %v5949 = vpack.c.b16 %v5896, %v5895
        %v5950 = vpack.c.b16 %v5898, %v5897
        %v5951 = vpack.c.b16 %v5900, %v5899
        %v5952 = vpack.c.b16 %v5902, %v5901
        %v5953 = vpack.c.b16 %v5904, %v5903
        %v5954 = vpack.c.b16 %v5906, %v5905
        %v5955 = vpack.c.b16 %v5908, %v5907
        %v5956 = vpack.c.b16 %v5910, %v5909
        %v5957 = vpack.c.b16 %v5912, %v5911
        %v5958 = vpack.c.b16 %v5914, %v5913
        %v5959 = vpack.c.b16 %v5916, %v5915
        %v5960 = vpack.c.b16 %v5918, %v5917
        %v5961 = vpack.c.b16 %v5920, %v5919
        %v5962 = vpack.c.b16 %v5922, %v5921
        %v5963 = vpack.c.b16 %v5924, %v5923
        %v5964 = vpack.c.b16 %v5926, %v5925
        %v5965 = vpack.c.b16 %v5928, %v5927
        %v5966 = vpack.c.b16 %v5930, %v5929
        %v5967 = vpack.c.b16 %v5932, %v5931
        %v5968 = vpack.c.b16 %v5934, %v5933
        %v5969 = vpack.c.b16 %v5936, %v5935
        %v5970 = vpack.c.b16 %v5938, %v5937
        %6003 = vmatprep.subr.bf16.mxu0 0
        %6004 = vmatpush1.bf16.msra.mxu0 %v5939
        %6005 = vmatprep.subr.bf16.mxu0 0
        %6006 = vmatpush1.bf16.msra.mxu0 %v5940
        %6007 = vmatprep.subr.bf16.mxu0 0
        %6008 = vmatpush1.bf16.msra.mxu0 %v5941
        %6009 = vmatprep.subr.bf16.mxu0 0
        %6010 = vmatpush1.bf16.msra.mxu0 %v5942
        %6011 = vmatprep.subr.bf16.mxu0 0
        %6012 = vmatpush1.bf16.msra.mxu0 %v5943
        %6013 = vmatprep.subr.bf16.mxu0 0
        %6014 = vmatpush1.bf16.msra.mxu0 %v5944
        %6015 = vmatprep.subr.bf16.mxu0 0
        %6016 = vmatpush1.bf16.msra.mxu0 %v5945
        %6017 = vmatprep.subr.bf16.mxu0 0
        %6018 = vmatpush1.bf16.msra.mxu0 %v5946
        %6019 = vmatprep.subr.bf16.mxu0 0
        %6020 = vmatpush1.bf16.msra.mxu0 %v5947
        %6021 = vmatprep.subr.bf16.mxu0 0
        %6022 = vmatpush1.bf16.msra.mxu0 %v5948
        %6023 = vmatprep.subr.bf16.mxu0 0
        %6024 = vmatpush1.bf16.msra.mxu0 %v5949
        %6025 = vmatprep.subr.bf16.mxu0 0
        %6026 = vmatpush1.bf16.msra.mxu0 %v5950
        %6027 = vmatprep.subr.bf16.mxu0 0
        %6028 = vmatpush1.bf16.msra.mxu0 %v5951
        %6029 = vmatprep.subr.bf16.mxu0 0
        %6030 = vmatpush1.bf16.msra.mxu0 %v5952
        %6031 = vmatprep.subr.bf16.mxu0 0
        %6032 = vmatpush1.bf16.msra.mxu0 %v5953
        %6033 = vmatprep.subr.bf16.mxu0 0
        %6034 = vmatpush1.bf16.msra.mxu0 %v5954
        %6035 = vmatprep.mubr.bf16.mxu0 %v5709
        %6036 = vmatmul.mubr.bf16.gmra.mrb[0].mxu0 %v5708
        %v6037 = vpop.f32.mrb[0].mxu0
        %v6038 = vadd.f32 %v5809, %v6037
        %v6039 = vpop.f32.mrb[0].mxu0
        %v6040 = vpop.f32.mrb[0].mxu0
        %v6041 = vadd.f32 %v5809, %v6040
        %v6042 = vpop.f32.mrb[0].mxu0
        %6043 = vmatprep.mubr.bf16.mxu0 %v5713
        %6044 = vmatmul.mubr.bf16.gmra.mrb[0].mxu0 %v5712
        %v6045 = vpop.f32.mrb[0].mxu0
        %v6046 = vadd.f32 %v5809, %v6045
        %v6047 = vpop.f32.mrb[0].mxu0
        %v6048 = vpop.f32.mrb[0].mxu0
        %v6049 = vadd.f32 %v5809, %v6048
        %v6050 = vpop.f32.mrb[0].mxu0
        %6051 = vmatprep.mubr.bf16.mxu0 %v5717
        %6052 = vmatmul.mubr.bf16.gmra.mrb[0].mxu0 %v5716
        %v6053 = vpop.f32.mrb[0].mxu0
        %v6054 = vadd.f32 %v5809, %v6053
        %v6055 = vpop.f32.mrb[0].mxu0
        %v6056 = vpop.f32.mrb[0].mxu0
        %v6057 = vadd.f32 %v5809, %v6056
        %v6058 = vpop.f32.mrb[0].mxu0
        %6059 = vmatprep.mubr.bf16.mxu0 %v5721
        %6060 = vmatmul.mubr.bf16.gmra.mrb[0].mxu0 %v5720
        %v6061 = vpop.f32.mrb[0].mxu0
        %v6062 = vadd.f32 %v5809, %v6061
        %v6063 = vpop.f32.mrb[0].mxu0
        %v6064 = vpop.f32.mrb[0].mxu0
        %v6065 = vadd.f32 %v5809, %v6064
        %v6066 = vpop.f32.mrb[0].mxu0
        %6067 = vmatprep.mubr.bf16.mxu0 %v5725
        %6068 = vmatmul.mubr.bf16.gmra.mrb[0].mxu0 %v5724
        %v6069 = vpop.f32.mrb[0].mxu0
        %v6070 = vadd.f32 %v5809, %v6069
        %v6071 = vpop.f32.mrb[0].mxu0
        %v6072 = vpop.f32.mrb[0].mxu0
        %v6073 = vadd.f32 %v5809, %v6072
        %v6074 = vpop.f32.mrb[0].mxu0
        %6075 = vmatprep.mubr.bf16.mxu0 %v5729
        %6076 = vmatmul.mubr.bf16.gmra.mrb[0].mxu0 %v5728
        %v6077 = vpop.f32.mrb[0].mxu0
        %v6078 = vadd.f32 %v5809, %v6077
        %v6079 = vpop.f32.mrb[0].mxu0
        %v6080 = vpop.f32.mrb[0].mxu0
        %v6081 = vadd.f32 %v5809, %v6080
        %v6082 = vpop.f32.mrb[0].mxu0
        %6083 = vmatprep.mubr.bf16.mxu0 %v5733
        %6084 = vmatmul.mubr.bf16.gmra.mrb[0].mxu0 %v5732
        %v6085 = vpop.f32.mrb[0].mxu0
        %v6086 = vadd.f32 %v5809, %v6085
        %v6087 = vpop.f32.mrb[0].mxu0
        %v6088 = vpop.f32.mrb[0].mxu0
        %v6089 = vadd.f32 %v5809, %v6088
        %v6090 = vpop.f32.mrb[0].mxu0
        %6091 = vmatprep.mubr.bf16.mxu0 %v5737
        %6092 = vmatmul.mubr.bf16.gmra.mrb[0].mxu0 %v5736
        %v6093 = vpop.f32.mrb[0].mxu0
        %v6094 = vadd.f32 %v5809, %v6093
        %v6095 = vpop.f32.mrb[0].mxu0
        %v6096 = vpop.f32.mrb[0].mxu0
        %v6097 = vadd.f32 %v5809, %v6096
        %v6098 = vpop.f32.mrb[0].mxu0
        %6099 = vdwg.mxu0
        %6100 = vmatprep.subr.bf16.mxu0 0
        %6101 = vmatpush1.bf16.msra.mxu0 %v5955
        %6102 = vmatprep.subr.bf16.mxu0 0
        %6103 = vmatpush1.bf16.msra.mxu0 %v5956
        %6104 = vmatprep.subr.bf16.mxu0 0
        %6105 = vmatpush1.bf16.msra.mxu0 %v5957
        %6106 = vmatprep.subr.bf16.mxu0 0
        %6107 = vmatpush1.bf16.msra.mxu0 %v5958
        %6108 = vmatprep.subr.bf16.mxu0 0
        %6109 = vmatpush1.bf16.msra.mxu0 %v5959
        %6110 = vmatprep.subr.bf16.mxu0 0
        %6111 = vmatpush1.bf16.msra.mxu0 %v5960
        %6112 = vmatprep.subr.bf16.mxu0 0
        %6113 = vmatpush1.bf16.msra.mxu0 %v5961
        %6114 = vmatprep.subr.bf16.mxu0 0
        %6115 = vmatpush1.bf16.msra.mxu0 %v5962
        %6116 = vmatprep.subr.bf16.mxu0 0
        %6117 = vmatpush1.bf16.msra.mxu0 %v5963
        %6118 = vmatprep.subr.bf16.mxu0 0
        %6119 = vmatpush1.bf16.msra.mxu0 %v5964
        %6120 = vmatprep.subr.bf16.mxu0 0
        %6121 = vmatpush1.bf16.msra.mxu0 %v5965
        %6122 = vmatprep.subr.bf16.mxu0 0
        %6123 = vmatpush1.bf16.msra.mxu0 %v5966
        %6124 = vmatprep.subr.bf16.mxu0 0
        %6125 = vmatpush1.bf16.msra.mxu0 %v5967
        %6126 = vmatprep.subr.bf16.mxu0 0
        %6127 = vmatpush1.bf16.msra.mxu0 %v5968
        %6128 = vmatprep.subr.bf16.mxu0 0
        %6129 = vmatpush1.bf16.msra.mxu0 %v5969
        %6130 = vmatprep.subr.bf16.mxu0 0
        %6131 = vmatpush1.bf16.msra.mxu0 %v5970
        %6132 = vmatprep.mubr.bf16.mxu0 %v5711
        %6133 = vmatmul.mubr.bf16.gmra.mrb[0].mxu0 %v5710
        %v6134 = vpop.f32.mrb[0].mxu0
        %v6135 = vadd.f32 %v6038, %v6134
        %v6136 = vpop.f32.mrb[0].mxu0
        %v6137 = vpop.f32.mrb[0].mxu0
        %v6138 = vadd.f32 %v6041, %v6137
        %v6139 = vpop.f32.mrb[0].mxu0
        %6140 = vmatprep.mubr.bf16.mxu0 %v5715
        %6141 = vmatmul.mubr.bf16.gmra.mrb[0].mxu0 %v5714
        %v6142 = vpop.f32.mrb[0].mxu0
        %v6143 = vadd.f32 %v6046, %v6142
        %v6144 = vpop.f32.mrb[0].mxu0
        %v6145 = vpop.f32.mrb[0].mxu0
        %v6146 = vadd.f32 %v6049, %v6145
        %v6147 = vpop.f32.mrb[0].mxu0
        %6148 = vmatprep.mubr.bf16.mxu0 %v5719
        %6149 = vmatmul.mubr.bf16.gmra.mrb[0].mxu0 %v5718
        %v6150 = vpop.f32.mrb[0].mxu0
        %v6151 = vadd.f32 %v6054, %v6150
        %v6152 = vpop.f32.mrb[0].mxu0
        %v6153 = vpop.f32.mrb[0].mxu0
        %v6154 = vadd.f32 %v6057, %v6153
        %v6155 = vpop.f32.mrb[0].mxu0
        %6156 = vmatprep.mubr.bf16.mxu0 %v5723
        %6157 = vmatmul.mubr.bf16.gmra.mrb[0].mxu0 %v5722
        %v6158 = vpop.f32.mrb[0].mxu0
        %v6159 = vadd.f32 %v6062, %v6158
        %v6160 = vpop.f32.mrb[0].mxu0
        %v6161 = vpop.f32.mrb[0].mxu0
        %v6162 = vadd.f32 %v6065, %v6161
        %v6163 = vpop.f32.mrb[0].mxu0
        %6164 = vmatprep.mubr.bf16.mxu0 %v5727
        %6165 = vmatmul.mubr.bf16.gmra.mrb[0].mxu0 %v5726
        %v6166 = vpop.f32.mrb[0].mxu0
        %v6167 = vadd.f32 %v6070, %v6166
        %v6168 = vpop.f32.mrb[0].mxu0
        %v6169 = vpop.f32.mrb[0].mxu0
        %v6170 = vadd.f32 %v6073, %v6169
        %v6171 = vpop.f32.mrb[0].mxu0
        %6172 = vmatprep.mubr.bf16.mxu0 %v5731
        %6173 = vmatmul.mubr.bf16.gmra.mrb[0].mxu0 %v5730
        %v6174 = vpop.f32.mrb[0].mxu0
        %v6175 = vadd.f32 %v6078, %v6174
        %v6176 = vpop.f32.mrb[0].mxu0
        %v6177 = vpop.f32.mrb[0].mxu0
        %v6178 = vadd.f32 %v6081, %v6177
        %v6179 = vpop.f32.mrb[0].mxu0
        %6180 = vmatprep.mubr.bf16.mxu0 %v5735
        %6181 = vmatmul.mubr.bf16.gmra.mrb[0].mxu0 %v5734
        %v6182 = vpop.f32.mrb[0].mxu0
        %v6183 = vadd.f32 %v6086, %v6182
        %v6184 = vpop.f32.mrb[0].mxu0
        %v6185 = vpop.f32.mrb[0].mxu0
        %v6186 = vadd.f32 %v6089, %v6185
        %v6187 = vpop.f32.mrb[0].mxu0
        %6188 = vmatprep.mubr.bf16.mxu0 %v5739
        %6189 = vmatmul.mubr.bf16.gmra.mrb[0].mxu0 %v5738
        %v6190 = vpop.f32.mrb[0].mxu0
        %v6191 = vadd.f32 %v6094, %v6190
        %v6192 = vpop.f32.mrb[0].mxu0
        %v6193 = vpop.f32.mrb[0].mxu0
        %v6194 = vadd.f32 %v6097, %v6193
        %v6195 = vpop.f32.mrb[0].mxu0
        %6196 = vdwg.mxu0
        %v6197 = vadd.f32 %v6135, %v5180
        %v6198 = vadd.f32 %v6138, %v5181
        %v6199 = vadd.f32 %v6143, %v5182
        %v6200 = vadd.f32 %v6146, %v5183
        %v6201 = vadd.f32 %v6151, %v5184
        %v6202 = vadd.f32 %v6154, %v5185
        %v6203 = vadd.f32 %v6159, %v5186
        %v6204 = vadd.f32 %v6162, %v5187
        %v6205 = vadd.f32 %v6167, %v5188
        %v6206 = vadd.f32 %v6170, %v5189
        %v6207 = vadd.f32 %v6175, %v5190
        %v6208 = vadd.f32 %v6178, %v5191
        %v6209 = vadd.f32 %v6183, %v5192
        %v6210 = vadd.f32 %v6186, %v5193
        %v6211 = vadd.f32 %v6191, %v5194
        %v6212 = vadd.f32 %v6194, %v5195
        %v6213 = vld [vmem:[%s12] sm:$0x1]
        %v6214 = vld [vmem:[%s13] sm:$0x1]
        %6215 = vadd.xlane.f32.xlu0 %v6197
        %v6216 = vpop.xlane.xlu0 %6215
        %6217 = vadd.xlane.f32.xlu0 %v6198
        %v6218 = vpop.xlane.xlu0 %6217
        %6219 = vadd.xlane.f32.xlu0 %v6199
        %v6220 = vpop.xlane.xlu0 %6219
        %6221 = vadd.xlane.f32.xlu0 %v6200
        %v6222 = vpop.xlane.xlu0 %6221
        %6223 = vadd.xlane.f32.xlu0 %v6201
        %v6224 = vpop.xlane.xlu0 %6223
        %6225 = vadd.xlane.f32.xlu0 %v6202
        %v6226 = vpop.xlane.xlu0 %6225
        %6227 = vadd.xlane.f32.xlu0 %v6203
        %v6228 = vpop.xlane.xlu0 %6227
        %6229 = vadd.xlane.f32.xlu0 %v6204
        %v6230 = vpop.xlane.xlu0 %6229
        %6231 = vadd.xlane.f32.xlu0 %v6205
        %v6232 = vpop.xlane.xlu0 %6231
        %6233 = vadd.xlane.f32.xlu0 %v6206
        %v6234 = vpop.xlane.xlu0 %6233
        %6235 = vadd.xlane.f32.xlu0 %v6207
        %v6236 = vpop.xlane.xlu0 %6235
        %6237 = vadd.xlane.f32.xlu0 %v6208
        %v6238 = vpop.xlane.xlu0 %6237
        %6239 = vadd.xlane.f32.xlu0 %v6209
        %v6240 = vpop.xlane.xlu0 %6239
        %6241 = vadd.xlane.f32.xlu0 %v6210
        %v6242 = vpop.xlane.xlu0 %6241
        %6243 = vadd.xlane.f32.xlu0 %v6211
        %v6244 = vpop.xlane.xlu0 %6243
        %6245 = vadd.xlane.f32.xlu0 %v6212
        %v6246 = vpop.xlane.xlu0 %6245
        %v6247 = vmul.f32 %v6216, %v4975
        %v6248 = vmul.f32 %v6218, %v4975
        %v6249 = vmul.f32 %v6220, %v4975
        %v6250 = vmul.f32 %v6222, %v4975
        %v6251 = vmul.f32 %v6224, %v4975
        %v6252 = vmul.f32 %v6226, %v4975
        %v6253 = vmul.f32 %v6228, %v4975
        %v6254 = vmul.f32 %v6230, %v4975
        %v6255 = vmul.f32 %v6232, %v4975
        %v6256 = vmul.f32 %v6234, %v4975
        %v6257 = vmul.f32 %v6236, %v4975
        %v6258 = vmul.f32 %v6238, %v4975
        %v6259 = vmul.f32 %v6240, %v4975
        %v6260 = vmul.f32 %v6242, %v4975
        %v6261 = vmul.f32 %v6244, %v4975
        %v6262 = vmul.f32 %v6246, %v4975
        %v6263 = vmul.f32 %v6197, %v6197
        %v6264 = vmul.f32 %v6198, %v6198
        %v6265 = vmul.f32 %v6199, %v6199
        %v6266 = vmul.f32 %v6200, %v6200
        %v6267 = vmul.f32 %v6201, %v6201
        %v6268 = vmul.f32 %v6202, %v6202
        %v6269 = vmul.f32 %v6203, %v6203
        %v6270 = vmul.f32 %v6204, %v6204
        %v6271 = vmul.f32 %v6205, %v6205
        %v6272 = vmul.f32 %v6206, %v6206
        %v6273 = vmul.f32 %v6207, %v6207
        %v6274 = vmul.f32 %v6208, %v6208
        %v6275 = vmul.f32 %v6209, %v6209
        %v6276 = vmul.f32 %v6210, %v6210
        %v6277 = vmul.f32 %v6211, %v6211
        %v6278 = vmul.f32 %v6212, %v6212
        %6279 = vadd.xlane.f32.xlu0 %v6263
        %v6280 = vpop.xlane.xlu0 %6279
        %6281 = vadd.xlane.f32.xlu0 %v6264
        %v6282 = vpop.xlane.xlu0 %6281
        %6283 = vadd.xlane.f32.xlu0 %v6265
        %v6284 = vpop.xlane.xlu0 %6283
        %6285 = vadd.xlane.f32.xlu0 %v6266
        %v6286 = vpop.xlane.xlu0 %6285
        %6287 = vadd.xlane.f32.xlu0 %v6267
        %v6288 = vpop.xlane.xlu0 %6287
        %6289 = vadd.xlane.f32.xlu0 %v6268
        %v6290 = vpop.xlane.xlu0 %6289
        %6291 = vadd.xlane.f32.xlu0 %v6269
        %v6292 = vpop.xlane.xlu0 %6291
        %6293 = vadd.xlane.f32.xlu0 %v6270
        %v6294 = vpop.xlane.xlu0 %6293
        %6295 = vadd.xlane.f32.xlu0 %v6271
        %v6296 = vpop.xlane.xlu0 %6295
        %6297 = vadd.xlane.f32.xlu0 %v6272
        %v6298 = vpop.xlane.xlu0 %6297
        %6299 = vadd.xlane.f32.xlu0 %v6273
        %v6300 = vpop.xlane.xlu0 %6299
        %6301 = vadd.xlane.f32.xlu0 %v6274
        %v6302 = vpop.xlane.xlu0 %6301
        %6303 = vadd.xlane.f32.xlu0 %v6275
        %v6304 = vpop.xlane.xlu0 %6303
        %6305 = vadd.xlane.f32.xlu0 %v6276
        %v6306 = vpop.xlane.xlu0 %6305
        %6307 = vadd.xlane.f32.xlu0 %v6277
        %v6308 = vpop.xlane.xlu0 %6307
        %6309 = vadd.xlane.f32.xlu0 %v6278
        %v6310 = vpop.xlane.xlu0 %6309
        %v6311 = vmul.f32 %v6280, %v4975
        %v6312 = vmul.f32 %v6282, %v4975
        %v6313 = vmul.f32 %v6284, %v4975
        %v6314 = vmul.f32 %v6286, %v4975
        %v6315 = vmul.f32 %v6288, %v4975
        %v6316 = vmul.f32 %v6290, %v4975
        %v6317 = vmul.f32 %v6292, %v4975
        %v6318 = vmul.f32 %v6294, %v4975
        %v6319 = vmul.f32 %v6296, %v4975
        %v6320 = vmul.f32 %v6298, %v4975
        %v6321 = vmul.f32 %v6300, %v4975
        %v6322 = vmul.f32 %v6302, %v4975
        %v6323 = vmul.f32 %v6304, %v4975
        %v6324 = vmul.f32 %v6306, %v4975
        %v6325 = vmul.f32 %v6308, %v4975
        %v6326 = vmul.f32 %v6310, %v4975
        %v6327 = vmul.f32 %v6247, %v6247
        %v6328 = vmul.f32 %v6248, %v6248
        %v6329 = vmul.f32 %v6249, %v6249
        %v6330 = vmul.f32 %v6250, %v6250
        %v6331 = vmul.f32 %v6251, %v6251
        %v6332 = vmul.f32 %v6252, %v6252
        %v6333 = vmul.f32 %v6253, %v6253
        %v6334 = vmul.f32 %v6254, %v6254
        %v6335 = vmul.f32 %v6255, %v6255
        %v6336 = vmul.f32 %v6256, %v6256
        %v6337 = vmul.f32 %v6257, %v6257
        %v6338 = vmul.f32 %v6258, %v6258
        %v6339 = vmul.f32 %v6259, %v6259
        %v6340 = vmul.f32 %v6260, %v6260
        %v6341 = vmul.f32 %v6261, %v6261
        %v6342 = vmul.f32 %v6262, %v6262
        %v6343 = vsub.f32 %v6311, %v6327
        %v6344 = vsub.f32 %v6312, %v6328
        %v6345 = vsub.f32 %v6313, %v6329
        %v6346 = vsub.f32 %v6314, %v6330
        %v6347 = vsub.f32 %v6315, %v6331
        %v6348 = vsub.f32 %v6316, %v6332
        %v6349 = vsub.f32 %v6317, %v6333
        %v6350 = vsub.f32 %v6318, %v6334
        %v6351 = vsub.f32 %v6319, %v6335
        %v6352 = vsub.f32 %v6320, %v6336
        %v6353 = vsub.f32 %v6321, %v6337
        %v6354 = vsub.f32 %v6322, %v6338
        %v6355 = vsub.f32 %v6323, %v6339
        %v6356 = vsub.f32 %v6324, %v6340
        %v6357 = vsub.f32 %v6325, %v6341
        %v6358 = vsub.f32 %v6326, %v6342
        %v6359 = vsub.f32 %v6197, %v6247
        %v6360 = vsub.f32 %v6198, %v6248
        %v6361 = vsub.f32 %v6199, %v6249
        %v6362 = vsub.f32 %v6200, %v6250
        %v6363 = vsub.f32 %v6201, %v6251
        %v6364 = vsub.f32 %v6202, %v6252
        %v6365 = vsub.f32 %v6203, %v6253
        %v6366 = vsub.f32 %v6204, %v6254
        %v6367 = vsub.f32 %v6205, %v6255
        %v6368 = vsub.f32 %v6206, %v6256
        %v6369 = vsub.f32 %v6207, %v6257
        %v6370 = vsub.f32 %v6208, %v6258
        %v6371 = vsub.f32 %v6209, %v6259
        %v6372 = vsub.f32 %v6210, %v6260
        %v6373 = vsub.f32 %v6211, %v6261
        %v6374 = vsub.f32 %v6212, %v6262
        %v6375 = vadd.f32 %v6343, 1e-05
        %v6376 = vadd.f32 %v6344, 1e-05
        %v6377 = vadd.f32 %v6345, 1e-05
        %v6378 = vadd.f32 %v6346, 1e-05
        %v6379 = vadd.f32 %v6347, 1e-05
        %v6380 = vadd.f32 %v6348, 1e-05
        %v6381 = vadd.f32 %v6349, 1e-05
        %v6382 = vadd.f32 %v6350, 1e-05
        %v6383 = vadd.f32 %v6351, 1e-05
        %v6384 = vadd.f32 %v6352, 1e-05
        %v6385 = vadd.f32 %v6353, 1e-05
        %v6386 = vadd.f32 %v6354, 1e-05
        %v6387 = vadd.f32 %v6355, 1e-05
        %v6388 = vadd.f32 %v6356, 1e-05
        %v6389 = vadd.f32 %v6357, 1e-05
        %v6390 = vadd.f32 %v6358, 1e-05
        %v6391 = vrsqrt.pop %v6375
        %v6392 = vrsqrt.pop %v6376
        %v6393 = vrsqrt.pop %v6377
        %v6394 = vrsqrt.pop %v6378
        %v6395 = vrsqrt.pop %v6379
        %v6396 = vrsqrt.pop %v6380
        %v6397 = vrsqrt.pop %v6381
        %v6398 = vrsqrt.pop %v6382
        %v6399 = vrsqrt.pop %v6383
        %v6400 = vrsqrt.pop %v6384
        %v6401 = vrsqrt.pop %v6385
        %v6402 = vrsqrt.pop %v6386
        %v6403 = vrsqrt.pop %v6387
        %v6404 = vrsqrt.pop %v6388
        %v6405 = vrsqrt.pop %v6389
        %v6406 = vrsqrt.pop %v6390
        %v6407 = vmul.f32 %v6359, %v6391
        %v6408 = vmul.f32 %v6360, %v6392
        %v6409 = vmul.f32 %v6361, %v6393
        %v6410 = vmul.f32 %v6362, %v6394
        %v6411 = vmul.f32 %v6363, %v6395
        %v6412 = vmul.f32 %v6364, %v6396
        %v6413 = vmul.f32 %v6365, %v6397
        %v6414 = vmul.f32 %v6366, %v6398
        %v6415 = vmul.f32 %v6367, %v6399
        %v6416 = vmul.f32 %v6368, %v6400
        %v6417 = vmul.f32 %v6369, %v6401
        %v6418 = vmul.f32 %v6370, %v6402
        %v6419 = vmul.f32 %v6371, %v6403
        %v6420 = vmul.f32 %v6372, %v6404
        %v6421 = vmul.f32 %v6373, %v6405
        %v6422 = vmul.f32 %v6374, %v6406
        %v6424 = vlaneseq
        %v6425 = vshrl.u32 %v6424, 7
        %v6426 = vsub.s32 0, %v6425
        %v6427 = vrot.slane %v6213, %v6426
        %v6429 = vmul.f32 %v6407, %v6427
        %v6430 = vmul.f32 %v6408, %v6427
        %v6431 = vmul.f32 %v6409, %v6427
        %v6432 = vmul.f32 %v6410, %v6427
        %v6433 = vmul.f32 %v6411, %v6427
        %v6434 = vmul.f32 %v6412, %v6427
        %v6435 = vmul.f32 %v6413, %v6427
        %v6436 = vmul.f32 %v6414, %v6427
        %v6437 = vmul.f32 %v6415, %v6427
        %v6438 = vmul.f32 %v6416, %v6427
        %v6439 = vmul.f32 %v6417, %v6427
        %v6440 = vmul.f32 %v6418, %v6427
        %v6441 = vmul.f32 %v6419, %v6427
        %v6442 = vmul.f32 %v6420, %v6427
        %v6443 = vmul.f32 %v6421, %v6427
        %v6444 = vmul.f32 %v6422, %v6427
        %v6446 = vlaneseq
        %v6447 = vshrl.u32 %v6446, 7
        %v6448 = vsub.s32 0, %v6447
        %v6449 = vrot.slane %v6214, %v6448
        %v6451 = vadd.f32 %v6429, %v6449
        %v6452 = vadd.f32 %v6430, %v6449
        %v6453 = vadd.f32 %v6431, %v6449
        %v6454 = vadd.f32 %v6432, %v6449
        %v6455 = vadd.f32 %v6433, %v6449
        %v6456 = vadd.f32 %v6434, %v6449
        %v6457 = vadd.f32 %v6435, %v6449
        %v6458 = vadd.f32 %v6436, %v6449
        %v6459 = vadd.f32 %v6437, %v6449
        %v6460 = vadd.f32 %v6438, %v6449
        %v6461 = vadd.f32 %v6439, %v6449
        %v6462 = vadd.f32 %v6440, %v6449
        %v6463 = vadd.f32 %v6441, %v6449
        %v6464 = vadd.f32 %v6442, %v6449
        %v6465 = vadd.f32 %v6443, %v6449
        %v6466 = vadd.f32 %v6444, %v6449
        %6467 = vst [vmem:[%s833] sm:$0xff] %v6451
        %6468 = vst [vmem:[%s833 + $0x8] sm:$0xff] %v6452
        %6469 = vst [vmem:[%s833 + $0x10] sm:$0xff] %v6453
        %6470 = vst [vmem:[%s833 + $0x18] sm:$0xff] %v6454
        %6471 = vst [vmem:[%s833 + $0x20] sm:$0xff] %v6455
        %6472 = vst [vmem:[%s833 + $0x28] sm:$0xff] %v6456
        %6473 = vst [vmem:[%s833 + $0x30] sm:$0xff] %v6457
        %6474 = vst [vmem:[%s833 + $0x38] sm:$0xff] %v6458
        %6475 = vst [vmem:[%s833 + $0x40] sm:$0xff] %v6459
        %6476 = vst [vmem:[%s833 + $0x48] sm:$0xff] %v6460
        %6477 = vst [vmem:[%s833 + $0x50] sm:$0xff] %v6461
        %6478 = vst [vmem:[%s833 + $0x58] sm:$0xff] %v6462
        %6479 = vst [vmem:[%s833 + $0x60] sm:$0xff] %v6463
        %6480 = vst [vmem:[%s833 + $0x68] sm:$0xff] %v6464
        %6481 = vst [vmem:[%s833 + $0x70] sm:$0xff] %v6465
        %6482 = vst [vmem:[%s833 + $0x78] sm:$0xff] %v6466
        %s6483 = sand.u32 %s368, 1
        %s6484 = scalar_lea.sflag [#allocation4], %s6483
        %s6485 = sand.u32 %s368, 1
        %s6486 = smul.addr %s6485, 128
        %s6487 = scalar_lea.vmem [#allocation3], %s6486
        // Predicated region
        $region118: #{transformer_block.1} parent=112 // pred_check
          %p6488 = pneg %p378
        $region119: #{transformer_block.1} parent=112 // pred_check_branch
          %6490 = sbr.rel (%p6488) target = $region121
        $region120: #{transformer_block.1} parent=112 // pred_region
          %s6491 = smul.u32 16, %s33
          %s6493 = ssub.s32 2048, 2048
          %6494 = vsyncadd %s6484, %s6493
          %s6495 = smul.addr %s32, 32
          %s6496 = sadd.s32 %s6491, %s6495
          %s6497 = smul.addr %s6496, 128
          %s6498 = scalar_lea.hbm %s14, %s6497
          %s6499 = sshll.u32 %s6487, 4
          %s6500 = int_to_ptr.vmem [resolvable:$true] %s6499
          %6505 = dma.vmem_to_hbm [thread:$0]  %s6500, 2048, %s6498, %s6484, 128, 128, 8
        $region121: #{transformer_block.1} parent=112 // pred_fallthru
          _
      $region113: #{transformer_block.1} parent=5 // pred_fallthru
        _
      %p6506 = scmp.le.s32.totalorder 2, %s23
      // Predicated region
      $region122: #{transformer_block.1} parent=5 // pred_check
        %p6507 = pneg %p6506
      $region123: #{transformer_block.1} parent=5 // pred_check_branch
        %6509 = sbr.rel (%p6507) target = $region125
      $region124: #{transformer_block.1} parent=5 // pred_region
        %s6510 = ssub.s32 %s23, 2
        // Predicated region
        $region126: #{transformer_block.1} parent=124 // pred_check
          %p6511 = pneg %p384
        $region127: #{transformer_block.1} parent=124 // pred_check_branch
          %6513 = sbr.rel (%p6511) target = $region129
        $region128: #{transformer_block.1} parent=124 // pred_region
          %s6514 = sand.u32 %s369, 1
          %s6515 = scalar_lea.sflag [#allocation4], %s6514
          %s6516 = sand.u32 %s369, 1
          %s6517 = smul.addr %s6516, 128
          %s6518 = scalar_lea.vmem [#allocation3], %s6517
          %6519 = dma.done %s6515, 2048
        $region129: #{transformer_block.1} parent=124 // pred_fallthru
          _
      $region125: #{transformer_block.1} parent=5 // pred_fallthru
        _
    $region6: #{transformer_block.1} parent=1 // loop_footer
      %s27 = sadd.s32 1, %s23
    $region7: #{transformer_block.1} parent=1 // loop_footer_branch
      %22 = sbr.rel target = $region3
    $region8: #{transformer_block.1} parent=1 // loop_exit
      _
    %6520 = vsyncpa [#allocation4], 1
    %s6521 = scalar_lea.sflag [#allocation4], 1
    %6522 = vsyncpa %s6521, 1

</llo_original>
